<compile_context>
chip_gen: v5e
topology: v5e:2x2
jax: 0.10.0
libtpu: 0.0.40
codegen_flags: <defaults>
</compile_context>

<pallas_src>
import jax
import jax.numpy as jnp
from jax.experimental import pallas as pl
from jax.experimental.pallas import tpu as pltpu

# --- module constants (mirror Marina.py) ---
INPUT_LENGTH = 100
INTERMEDIATE_LENGTH = 24
N_UNITS = 50
INPUT_N_LAYERS = 3
CASCADE_N_LAYERS = 2
FORECAST_N_LAYERS = 2

LANE = 128  # padded feature width (lane-dense)

N_LAYERS_PER_BLOCK = INPUT_N_LAYERS + (CASCADE_N_LAYERS + 1) + (FORECAST_N_LAYERS + 1)  # 9
N_LAYERS_TOTAL = 2 * N_LAYERS_PER_BLOCK                                                  # 18
# square (LANE x LANE) layers per block after fusing the two branch-entry layers
N_SQ_PER_BLOCK = INPUT_N_LAYERS + CASCADE_N_LAYERS + FORECAST_N_LAYERS                   # 7
N_SQ_TOTAL = 2 * N_SQ_PER_BLOCK                                                           # 14

# logical (fan_in, fan_out) of every Linear in one MLPBlock, module order:
#   input[0..2], cascade.layers[0..1], cascade.fc2, forecast.layers[0..1], forecast.fc2
_LAYER_DIMS_ONE_BLOCK = (
    [(INPUT_LENGTH, N_UNITS)] + [(N_UNITS, N_UNITS)] * (INPUT_N_LAYERS - 1)
    + [(N_UNITS, N_UNITS)] * CASCADE_N_LAYERS + [(N_UNITS, INPUT_LENGTH)]
    + [(N_UNITS, N_UNITS)] * FORECAST_N_LAYERS + [(N_UNITS, INTERMEDIATE_LENGTH)]
)
_LAYER_DIMS = _LAYER_DIMS_ONE_BLOCK * 2   # mlp1 then mlp2 (18 layers)


def _temporal_kernel(x_ref, wsq_ref, bsq_ref, wbr_ref, bbr_ref, out_ref):
    # x_ref:   (TILE_B, LANE)        f32 padded input tile
    # wsq_ref: (14, LANE, LANE)      bf16 square-layer weights, (in, out) layout
    # bsq_ref: (14, 1, LANE)         f32 square-layer biases
    # wbr_ref: (2, LANE, 2*LANE)     bf16 fused [cascade0 | forecast0] per block
    # bbr_ref: (2, 1, 2*LANE)        f32 fused biases
    # out_ref: (TILE_B, LANE)        f32 padded forecast sum

    def linear_relu(h, w, b):
        # bf16 operands -> native MXU rate; f32 accumulation, f32 bias/ReLU (VPU)
        y = jnp.dot(h.astype(jnp.bfloat16), w, preferred_element_type=jnp.float32)
        return jnp.maximum(y + b, 0.0)

    def mlp_block(h, blk):
        sq = blk * N_SQ_PER_BLOCK
        # InputSubBlock
        for j in range(INPUT_N_LAYERS):
            h = linear_relu(h, wsq_ref[sq + j], bsq_ref[sq + j])
        # Fused branch entry: cascade.layers[0] and forecasting.layers[0] share h.
        # One (TILE_B,128)x(128,256) matmul fills the 256-wide MXU on v6e/v7x.
        hb = linear_relu(h, wbr_ref[blk], bbr_ref[blk])
        c = hb[:, :LANE]        # cascade hidden
        f = hb[:, LANE:]        # forecast hidden
        # remaining CascadeSubBlock layers + fc2
        off = sq + INPUT_N_LAYERS
        for j in range(CASCADE_N_LAYERS - 1):
            c = linear_relu(c, wsq_ref[off + j], bsq_ref[off + j])
        cascade = linear_relu(c, wsq_ref[off + CASCADE_N_LAYERS - 1],
                              bsq_ref[off + CASCADE_N_LAYERS - 1])
        # remaining ForecastingSubBlock layers + fc2
        off = sq + INPUT_N_LAYERS + CASCADE_N_LAYERS
        for j in range(FORECAST_N_LAYERS - 1):
            f = linear_relu(f, wsq_ref[off + j], bsq_ref[off + j])
        forecast = linear_relu(f, wsq_ref[off + FORECAST_N_LAYERS - 1],
                               bsq_ref[off + FORECAST_N_LAYERS - 1])
        return cascade, forecast

    x = x_ref[...]
    cascade1, forecast1 = mlp_block(x, 0)
    out_ref[...] = forecast1.astype(out_ref.dtype)   # retire forecast1 buffer early
    new_x = cascade1 - x                             # mlp1_out - input
    _, forecast2 = mlp_block(new_x, 1)
    out_ref[...] = out_ref[...] + forecast2.astype(out_ref.dtype)


def _choose_tile_b(batch: int) -> int:
    """Batch tile: multiple of 8 (sublane); big tiles for big batches, but keep
    >= 4 grid steps when possible so both v7x TensorCores get work."""
    b8 = -(-batch // 8) * 8
    if b8 <= 512:
        return b8                       # single grid step, minimal row padding
    for tile in (512, 256, 128):
        if -(-b8 // tile) >= 4:
            return tile
    return 256


def temporal_module(x, params):
    """x: (batch, INPUT_LENGTH) f32. Returns (batch, INTERMEDIATE_LENGTH) f32."""
    w_sq, b_sq, w_br, b_br = params
    batch = x.shape[0]
    tile_b = _choose_tile_b(batch)

    # pad features 100 -> 128 lanes (zeros are exact through the padded weights)
    x_pad = jnp.pad(x, ((0, 0), (0, LANE - INPUT_LENGTH)))
    pad_rows = (-batch) % tile_b
    if pad_rows:
        x_pad = jnp.pad(x_pad, ((0, pad_rows), (0, 0)))
    padded_batch = x_pad.shape[0]
    grid = (padded_batch // tile_b,)

    flops = 2 * padded_batch * LANE * LANE * N_LAYERS_TOTAL
    bytes_accessed = (w_sq.size * 2 + w_br.size * 2 + b_sq.size * 4 + b_br.size * 4
                      + 2 * padded_batch * LANE * 4)

    out = pl.pallas_call(
        _temporal_kernel,
        out_shape=jax.ShapeDtypeStruct((padded_batch, LANE), jnp.float32),
        grid_spec=pltpu.PrefetchScalarGridSpec(
            num_scalar_prefetch=0,
            grid=grid,
            in_specs=[
                # activations stream per batch tile
                pl.BlockSpec((tile_b, LANE), lambda i: (i, 0)),
                # weights/biases: same block every step -> VMEM-resident
                pl.BlockSpec((N_SQ_TOTAL, LANE, LANE), lambda i: (0, 0, 0)),
                pl.BlockSpec((N_SQ_TOTAL, 1, LANE), lambda i: (0, 0, 0)),
                pl.BlockSpec((2, LANE, 2 * LANE), lambda i: (0, 0, 0)),
                pl.BlockSpec((2, 1, 2 * LANE), lambda i: (0, 0, 0)),
            ],
            out_specs=pl.BlockSpec((tile_b, LANE), lambda i: (i, 0)),
        ),
        compiler_params=pltpu.CompilerParams(
            dimension_semantics=("parallel",),
        ),
        cost_estimate=pl.CostEstimate(
            flops=flops, transcendentals=0, bytes_accessed=bytes_accessed
        ),
    )(x_pad, w_sq, b_sq, w_br, b_br)
    # slice back to the logical output width and batch
    return out[:batch, :INTERMEDIATE_LENGTH]


def init_params(key):
    """PyTorch-like init: uniform(-1/sqrt(fan_in), 1/sqrt(fan_in)).
    Weights stored (in, out) (transposed vs. nn.Linear), biases (out,)."""
    ws, bs = [], []
    for fan_in, fan_out in _LAYER_DIMS:
        key, kw, kb = jax.random.split(key, 3)
        bound = 1.0 / jnp.sqrt(fan_in)
        ws.append(jax.random.uniform(kw, (fan_in, fan_out), jnp.float32, -bound, bound))
        bs.append(jax.random.uniform(kb, (fan_out,), jnp.float32, -bound, bound))
    return ws, bs


def _pad2(w):
    return jnp.pad(w, ((0, LANE - w.shape[0]), (0, LANE - w.shape[1])))


def _pad1(b):
    return jnp.pad(b, (0, LANE - b.shape[0]))


def pack_params(ws, bs):
    """Zero-pad every layer to 128 lanes, fuse the two branch-entry layers of
    each MLPBlock into a single (128, 256) weight, store weights in bf16."""
    w_sq, b_sq, w_br, b_br = [], [], [], []
    for blk in range(2):
        base = blk * N_LAYERS_PER_BLOCK
        idx_in = [base + j for j in range(INPUT_N_LAYERS)]
        idx_casc = [base + INPUT_N_LAYERS + j for j in range(CASCADE_N_LAYERS + 1)]
        idx_fore = [base + INPUT_N_LAYERS + CASCADE_N_LAYERS + 1 + j
                    for j in range(FORECAST_N_LAYERS + 1)]
        # square layers: input[0..2], cascade[1..], cascade.fc2, forecast[1..], forecast.fc2
        for i in idx_in + idx_casc[1:] + idx_fore[1:]:
            w_sq.append(_pad2(ws[i]))
            b_sq.append(_pad1(bs[i])[None, :])
        # fused branch entry: [cascade.layers[0] | forecasting.layers[0]]
        w_br.append(jnp.concatenate([_pad2(ws[idx_casc[0]]), _pad2(ws[idx_fore[0]])], axis=1))
        b_br.append(jnp.concatenate([_pad1(bs[idx_casc[0]]), _pad1(bs[idx_fore[0]])])[None, :])
    return (jnp.stack(w_sq).astype(jnp.bfloat16),
            jnp.stack(b_sq).astype(jnp.float32),
            jnp.stack(w_br).astype(jnp.bfloat16),
            jnp.stack(b_br).astype(jnp.float32))


def reference_forward(x, ws, bs, cast_bf16=False):
    """Pure-JAX TemporalModule forward at logical (unpadded) shapes.
    With cast_bf16=True the matmul operands are rounded to bf16 exactly like
    the kernel (f32 accumulation, f32 bias/ReLU)."""
    def linear_relu(h, i):
        if cast_bf16:
            y = jnp.dot(h.astype(jnp.bfloat16), ws[i].astype(jnp.bfloat16),
                        preferred_element_type=jnp.float32)
        else:
            y = h @ ws[i]
        return jnp.maximum(y + bs[i], 0.0)

    def mlp_block(h, base):
        for j in range(INPUT_N_LAYERS):
            h = linear_relu(h, base + j)
        c = h
        off = base + INPUT_N_LAYERS
        for j in range(CASCADE_N_LAYERS):
            c = linear_relu(c, off + j)
        cascade = linear_relu(c, off + CASCADE_N_LAYERS)
        f = h
        off = base + INPUT_N_LAYERS + CASCADE_N_LAYERS + 1
        for j in range(FORECAST_N_LAYERS):
            f = linear_relu(f, off + j)
        forecast = linear_relu(f, off + FORECAST_N_LAYERS)
        return cascade, forecast

    c1, f1 = mlp_block(x, 0)
    new_x = c1 - x
    _, f2 = mlp_block(new_x, N_LAYERS_PER_BLOCK)
    return f1 + f2


if __name__ == "__main__":
    key = jax.random.PRNGKey(0)
    key, kx = jax.random.split(key)

    batch = 200  # small; not a multiple of 8 or 128 -> exercises adaptive tiling + padding
    x = jax.random.normal(kx, (batch, INPUT_LENGTH), jnp.float32)

    ws, bs = init_params(key)
    params = pack_params(ws, bs)

    out = jax.block_until_ready(temporal_module(x, params))
    assert out.shape == (batch, INTERMEDIATE_LENGTH)

    # exact-semantics check: same bf16-operand / f32-accumulate arithmetic as the kernel
    ref_bf16 = reference_forward(x, ws, bs, cast_bf16=True)
    err_bf = float(jnp.max(jnp.abs(out - ref_bf16)))
    assert jnp.allclose(out, ref_bf16, atol=1e-4, rtol=1e-4), err_bf

    # sanity check against the full-f32 reference (bf16 operand rounding only)
    ref_f32 = reference_forward(x, ws, bs, cast_bf16=False)
    err_f32 = float(jnp.max(jnp.abs(out - ref_f32)))
    assert jnp.allclose(out, ref_f32, atol=1e-1, rtol=1e-1), err_f32

    print("KERNEL_OK")
</pallas_src>

<mosaic_0001>
module attributes {stable_mosaic.version = 11 : i64} {
  func.func @_temporal_kernel(%arg0: i32, %arg1: memref<200x128xf32, #tpu.memory_space<vmem>>, %arg2: memref<14x128x128xbf16, #tpu.memory_space<vmem>>, %arg3: memref<14x1x128xf32, #tpu.memory_space<vmem>>, %arg4: memref<2x128x256xbf16, #tpu.memory_space<vmem>>, %arg5: memref<2x1x256xf32, #tpu.memory_space<vmem>>, %arg6: memref<200x128xf32, #tpu.memory_space<vmem>>) attributes {dimension_semantics = [#tpu.dimension_semantics<parallel>], iteration_bounds = array<i64: 1>, scalar_prefetch = 0 : i64, scratch_operands = 0 : i64, tpu.core_type = #tpu.core_type<tc>, window_params = [{transform_indices = @transform_0, window_bounds = array<i64: 200, 128>}, {pipeline_mode = #tpu.pipeline_mode<synchronous>, transform_indices = @transform_1, window_bounds = array<i64: 14, 128, 128>}, {pipeline_mode = #tpu.pipeline_mode<synchronous>, transform_indices = @transform_2, window_bounds = array<i64: 14, 1, 128>}, {pipeline_mode = #tpu.pipeline_mode<synchronous>, transform_indices = @transform_3, window_bounds = array<i64: 2, 128, 256>}, {pipeline_mode = #tpu.pipeline_mode<synchronous>, transform_indices = @transform_4, window_bounds = array<i64: 2, 1, 256>}, {transform_indices = @transform_5, window_bounds = array<i64: 200, 128>}]} {
    %c0 = arith.constant 0 : index
    %c0_0 = arith.constant 0 : index
    %0 = vector.load %arg1[%c0, %c0_0] : memref<200x128xf32, #tpu.memory_space<vmem>>, vector<200x128xf32>
    %c0_1 = arith.constant 0 : index
    %c0_2 = arith.constant 0 : index
    %c0_3 = arith.constant 0 : index
    %1 = vector.load %arg2[%c0_1, %c0_2, %c0_3] : memref<14x128x128xbf16, #tpu.memory_space<vmem>>, vector<1x128x128xbf16>
    %2 = vector.shape_cast %1 : vector<1x128x128xbf16> to vector<128x128xbf16>
    %c0_4 = arith.constant 0 : index
    %c0_5 = arith.constant 0 : index
    %c0_6 = arith.constant 0 : index
    %3 = vector.load %arg3[%c0_4, %c0_5, %c0_6] : memref<14x1x128xf32, #tpu.memory_space<vmem>>, vector<1x1x128xf32>
    %4 = vector.shape_cast %3 : vector<1x1x128xf32> to vector<1x128xf32>
    %5 = arith.truncf %0 : vector<200x128xf32> to vector<200x128xbf16>
    %cst = arith.constant dense<0.000000e+00> : vector<200x128xf32>
    %6 = tpu.matmul %5, %2, %cst {dimension_numbers = #tpu.dot_dimension_numbers<[1], [0], [0], [1], [0, 0, 1, 1], [], []>} : vector<200x128xbf16>, vector<128x128xbf16>, vector<200x128xf32> -> vector<200x128xf32>
    %7 = vector.broadcast %4 : vector<1x128xf32> to vector<200x128xf32>
    %8 = arith.addf %6, %7 : vector<200x128xf32>
    %cst_7 = arith.constant 0.000000e+00 : f32
    %9 = vector.broadcast %cst_7 : f32 to vector<200x128xf32>
    %10 = arith.maximumf %8, %9 : vector<200x128xf32>
    %c1 = arith.constant 1 : index
    %c0_8 = arith.constant 0 : index
    %c0_9 = arith.constant 0 : index
    %11 = vector.load %arg2[%c1, %c0_8, %c0_9] : memref<14x128x128xbf16, #tpu.memory_space<vmem>>, vector<1x128x128xbf16>
    %12 = vector.shape_cast %11 : vector<1x128x128xbf16> to vector<128x128xbf16>
    %c1_10 = arith.constant 1 : index
    %c0_11 = arith.constant 0 : index
    %c0_12 = arith.constant 0 : index
    %13 = vector.load %arg3[%c1_10, %c0_11, %c0_12] : memref<14x1x128xf32, #tpu.memory_space<vmem>>, vector<1x1x128xf32>
    %14 = vector.shape_cast %13 : vector<1x1x128xf32> to vector<1x128xf32>
    %15 = arith.truncf %10 : vector<200x128xf32> to vector<200x128xbf16>
    %cst_13 = arith.constant dense<0.000000e+00> : vector<200x128xf32>
    %16 = tpu.matmul %15, %12, %cst_13 {dimension_numbers = #tpu.dot_dimension_numbers<[1], [0], [0], [1], [0, 0, 1, 1], [], []>} : vector<200x128xbf16>, vector<128x128xbf16>, vector<200x128xf32> -> vector<200x128xf32>
    %17 = vector.broadcast %14 : vector<1x128xf32> to vector<200x128xf32>
    %18 = arith.addf %16, %17 : vector<200x128xf32>
    %cst_14 = arith.constant 0.000000e+00 : f32
    %19 = vector.broadcast %cst_14 : f32 to vector<200x128xf32>
    %20 = arith.maximumf %18, %19 : vector<200x128xf32>
    %c2 = arith.constant 2 : index
    %c0_15 = arith.constant 0 : index
    %c0_16 = arith.constant 0 : index
    %21 = vector.load %arg2[%c2, %c0_15, %c0_16] : memref<14x128x128xbf16, #tpu.memory_space<vmem>>, vector<1x128x128xbf16>
    %22 = vector.shape_cast %21 : vector<1x128x128xbf16> to vector<128x128xbf16>
    %c2_17 = arith.constant 2 : index
    %c0_18 = arith.constant 0 : index
    %c0_19 = arith.constant 0 : index
    %23 = vector.load %arg3[%c2_17, %c0_18, %c0_19] : memref<14x1x128xf32, #tpu.memory_space<vmem>>, vector<1x1x128xf32>
    %24 = vector.shape_cast %23 : vector<1x1x128xf32> to vector<1x128xf32>
    %25 = arith.truncf %20 : vector<200x128xf32> to vector<200x128xbf16>
    %cst_20 = arith.constant dense<0.000000e+00> : vector<200x128xf32>
    %26 = tpu.matmul %25, %22, %cst_20 {dimension_numbers = #tpu.dot_dimension_numbers<[1], [0], [0], [1], [0, 0, 1, 1], [], []>} : vector<200x128xbf16>, vector<128x128xbf16>, vector<200x128xf32> -> vector<200x128xf32>
    %27 = vector.broadcast %24 : vector<1x128xf32> to vector<200x128xf32>
    %28 = arith.addf %26, %27 : vector<200x128xf32>
    %cst_21 = arith.constant 0.000000e+00 : f32
    %29 = vector.broadcast %cst_21 : f32 to vector<200x128xf32>
    %30 = arith.maximumf %28, %29 : vector<200x128xf32>
    %c0_22 = arith.constant 0 : index
    %c0_23 = arith.constant 0 : index
    %c0_24 = arith.constant 0 : index
    %31 = vector.load %arg4[%c0_22, %c0_23, %c0_24] : memref<2x128x256xbf16, #tpu.memory_space<vmem>>, vector<1x128x256xbf16>
    %32 = vector.shape_cast %31 : vector<1x128x256xbf16> to vector<128x256xbf16>
    %c0_25 = arith.constant 0 : index
    %c0_26 = arith.constant 0 : index
    %c0_27 = arith.constant 0 : index
    %33 = vector.load %arg5[%c0_25, %c0_26, %c0_27] : memref<2x1x256xf32, #tpu.memory_space<vmem>>, vector<1x1x256xf32>
    %34 = vector.shape_cast %33 : vector<1x1x256xf32> to vector<1x256xf32>
    %35 = arith.truncf %30 : vector<200x128xf32> to vector<200x128xbf16>
    %cst_28 = arith.constant dense<0.000000e+00> : vector<200x256xf32>
    %36 = tpu.matmul %35, %32, %cst_28 {dimension_numbers = #tpu.dot_dimension_numbers<[1], [0], [0], [1], [0, 0, 1, 1], [], []>} : vector<200x128xbf16>, vector<128x256xbf16>, vector<200x256xf32> -> vector<200x256xf32>
    %37 = vector.broadcast %34 : vector<1x256xf32> to vector<200x256xf32>
    %38 = arith.addf %36, %37 : vector<200x256xf32>
    %cst_29 = arith.constant 0.000000e+00 : f32
    %39 = vector.broadcast %cst_29 : f32 to vector<200x256xf32>
    %40 = arith.maximumf %38, %39 : vector<200x256xf32>
    %41 = vector.extract_strided_slice %40 {offsets = [0, 0], sizes = [200, 128], strides = [1, 1]} : vector<200x256xf32> to vector<200x128xf32>
    %42 = vector.extract_strided_slice %40 {offsets = [0, 128], sizes = [200, 128], strides = [1, 1]} : vector<200x256xf32> to vector<200x128xf32>
    %c3 = arith.constant 3 : index
    %c0_30 = arith.constant 0 : index
    %c0_31 = arith.constant 0 : index
    %43 = vector.load %arg2[%c3, %c0_30, %c0_31] : memref<14x128x128xbf16, #tpu.memory_space<vmem>>, vector<1x128x128xbf16>
    %44 = vector.shape_cast %43 : vector<1x128x128xbf16> to vector<128x128xbf16>
    %c3_32 = arith.constant 3 : index
    %c0_33 = arith.constant 0 : index
    %c0_34 = arith.constant 0 : index
    %45 = vector.load %arg3[%c3_32, %c0_33, %c0_34] : memref<14x1x128xf32, #tpu.memory_space<vmem>>, vector<1x1x128xf32>
    %46 = vector.shape_cast %45 : vector<1x1x128xf32> to vector<1x128xf32>
    %47 = arith.truncf %41 : vector<200x128xf32> to vector<200x128xbf16>
    %cst_35 = arith.constant dense<0.000000e+00> : vector<200x128xf32>
    %48 = tpu.matmul %47, %44, %cst_35 {dimension_numbers = #tpu.dot_dimension_numbers<[1], [0], [0], [1], [0, 0, 1, 1], [], []>} : vector<200x128xbf16>, vector<128x128xbf16>, vector<200x128xf32> -> vector<200x128xf32>
    %49 = vector.broadcast %46 : vector<1x128xf32> to vector<200x128xf32>
    %50 = arith.addf %48, %49 : vector<200x128xf32>
    %cst_36 = arith.constant 0.000000e+00 : f32
    %51 = vector.broadcast %cst_36 : f32 to vector<200x128xf32>
    %52 = arith.maximumf %50, %51 : vector<200x128xf32>
    %c4 = arith.constant 4 : index
    %c0_37 = arith.constant 0 : index
    %c0_38 = arith.constant 0 : index
    %53 = vector.load %arg2[%c4, %c0_37, %c0_38] : memref<14x128x128xbf16, #tpu.memory_space<vmem>>, vector<1x128x128xbf16>
    %54 = vector.shape_cast %53 : vector<1x128x128xbf16> to vector<128x128xbf16>
    %c4_39 = arith.constant 4 : index
    %c0_40 = arith.constant 0 : index
    %c0_41 = arith.constant 0 : index
    %55 = vector.load %arg3[%c4_39, %c0_40, %c0_41] : memref<14x1x128xf32, #tpu.memory_space<vmem>>, vector<1x1x128xf32>
    %56 = vector.shape_cast %55 : vector<1x1x128xf32> to vector<1x128xf32>
    %57 = arith.truncf %52 : vector<200x128xf32> to vector<200x128xbf16>
    %cst_42 = arith.constant dense<0.000000e+00> : vector<200x128xf32>
    %58 = tpu.matmul %57, %54, %cst_42 {dimension_numbers = #tpu.dot_dimension_numbers<[1], [0], [0], [1], [0, 0, 1, 1], [], []>} : vector<200x128xbf16>, vector<128x128xbf16>, vector<200x128xf32> -> vector<200x128xf32>
    %59 = vector.broadcast %56 : vector<1x128xf32> to vector<200x128xf32>
    %60 = arith.addf %58, %59 : vector<200x128xf32>
    %cst_43 = arith.constant 0.000000e+00 : f32
    %61 = vector.broadcast %cst_43 : f32 to vector<200x128xf32>
    %62 = arith.maximumf %60, %61 : vector<200x128xf32>
    %c5 = arith.constant 5 : index
    %c0_44 = arith.constant 0 : index
    %c0_45 = arith.constant 0 : index
    %63 = vector.load %arg2[%c5, %c0_44, %c0_45] : memref<14x128x128xbf16, #tpu.memory_space<vmem>>, vector<1x128x128xbf16>
    %64 = vector.shape_cast %63 : vector<1x128x128xbf16> to vector<128x128xbf16>
    %c5_46 = arith.constant 5 : index
    %c0_47 = arith.constant 0 : index
    %c0_48 = arith.constant 0 : index
    %65 = vector.load %arg3[%c5_46, %c0_47, %c0_48] : memref<14x1x128xf32, #tpu.memory_space<vmem>>, vector<1x1x128xf32>
    %66 = vector.shape_cast %65 : vector<1x1x128xf32> to vector<1x128xf32>
    %67 = arith.truncf %42 : vector<200x128xf32> to vector<200x128xbf16>
    %cst_49 = arith.constant dense<0.000000e+00> : vector<200x128xf32>
    %68 = tpu.matmul %67, %64, %cst_49 {dimension_numbers = #tpu.dot_dimension_numbers<[1], [0], [0], [1], [0, 0, 1, 1], [], []>} : vector<200x128xbf16>, vector<128x128xbf16>, vector<200x128xf32> -> vector<200x128xf32>
    %69 = vector.broadcast %66 : vector<1x128xf32> to vector<200x128xf32>
    %70 = arith.addf %68, %69 : vector<200x128xf32>
    %cst_50 = arith.constant 0.000000e+00 : f32
    %71 = vector.broadcast %cst_50 : f32 to vector<200x128xf32>
    %72 = arith.maximumf %70, %71 : vector<200x128xf32>
    %c6 = arith.constant 6 : index
    %c0_51 = arith.constant 0 : index
    %c0_52 = arith.constant 0 : index
    %73 = vector.load %arg2[%c6, %c0_51, %c0_52] : memref<14x128x128xbf16, #tpu.memory_space<vmem>>, vector<1x128x128xbf16>
    %74 = vector.shape_cast %73 : vector<1x128x128xbf16> to vector<128x128xbf16>
    %c6_53 = arith.constant 6 : index
    %c0_54 = arith.constant 0 : index
    %c0_55 = arith.constant 0 : index
    %75 = vector.load %arg3[%c6_53, %c0_54, %c0_55] : memref<14x1x128xf32, #tpu.memory_space<vmem>>, vector<1x1x128xf32>
    %76 = vector.shape_cast %75 : vector<1x1x128xf32> to vector<1x128xf32>
    %77 = arith.truncf %72 : vector<200x128xf32> to vector<200x128xbf16>
    %cst_56 = arith.constant dense<0.000000e+00> : vector<200x128xf32>
    %78 = tpu.matmul %77, %74, %cst_56 {dimension_numbers = #tpu.dot_dimension_numbers<[1], [0], [0], [1], [0, 0, 1, 1], [], []>} : vector<200x128xbf16>, vector<128x128xbf16>, vector<200x128xf32> -> vector<200x128xf32>
    %79 = vector.broadcast %76 : vector<1x128xf32> to vector<200x128xf32>
    %80 = arith.addf %78, %79 : vector<200x128xf32>
    %cst_57 = arith.constant 0.000000e+00 : f32
    %81 = vector.broadcast %cst_57 : f32 to vector<200x128xf32>
    %82 = arith.maximumf %80, %81 : vector<200x128xf32>
    %c0_58 = arith.constant 0 : index
    %c0_59 = arith.constant 0 : index
    %83 = vector.load %arg6[%c0_58, %c0_59] : memref<200x128xf32, #tpu.memory_space<vmem>>, vector<200x128xf32>
    tpu.vector_store %arg6[%c0_58, %c0_59], %82 {strides = array<i32>} : memref<200x128xf32, #tpu.memory_space<vmem>>, vector<200x128xf32>,
    %84 = arith.subf %62, %0 : vector<200x128xf32>
    %c7 = arith.constant 7 : index
    %c0_60 = arith.constant 0 : index
    %c0_61 = arith.constant 0 : index
    %85 = vector.load %arg2[%c7, %c0_60, %c0_61] : memref<14x128x128xbf16, #tpu.memory_space<vmem>>, vector<1x128x128xbf16>
    %86 = vector.shape_cast %85 : vector<1x128x128xbf16> to vector<128x128xbf16>
    %c7_62 = arith.constant 7 : index
    %c0_63 = arith.constant 0 : index
    %c0_64 = arith.constant 0 : index
    %87 = vector.load %arg3[%c7_62, %c0_63, %c0_64] : memref<14x1x128xf32, #tpu.memory_space<vmem>>, vector<1x1x128xf32>
    %88 = vector.shape_cast %87 : vector<1x1x128xf32> to vector<1x128xf32>
    %89 = arith.truncf %84 : vector<200x128xf32> to vector<200x128xbf16>
    %cst_65 = arith.constant dense<0.000000e+00> : vector<200x128xf32>
    %90 = tpu.matmul %89, %86, %cst_65 {dimension_numbers = #tpu.dot_dimension_numbers<[1], [0], [0], [1], [0, 0, 1, 1], [], []>} : vector<200x128xbf16>, vector<128x128xbf16>, vector<200x128xf32> -> vector<200x128xf32>
    %91 = vector.broadcast %88 : vector<1x128xf32> to vector<200x128xf32>
    %92 = arith.addf %90, %91 : vector<200x128xf32>
    %cst_66 = arith.constant 0.000000e+00 : f32
    %93 = vector.broadcast %cst_66 : f32 to vector<200x128xf32>
    %94 = arith.maximumf %92, %93 : vector<200x128xf32>
    %c8 = arith.constant 8 : index
    %c0_67 = arith.constant 0 : index
    %c0_68 = arith.constant 0 : index
    %95 = vector.load %arg2[%c8, %c0_67, %c0_68] : memref<14x128x128xbf16, #tpu.memory_space<vmem>>, vector<1x128x128xbf16>
    %96 = vector.shape_cast %95 : vector<1x128x128xbf16> to vector<128x128xbf16>
    %c8_69 = arith.constant 8 : index
    %c0_70 = arith.constant 0 : index
    %c0_71 = arith.constant 0 : index
    %97 = vector.load %arg3[%c8_69, %c0_70, %c0_71] : memref<14x1x128xf32, #tpu.memory_space<vmem>>, vector<1x1x128xf32>
    %98 = vector.shape_cast %97 : vector<1x1x128xf32> to vector<1x128xf32>
    %99 = arith.truncf %94 : vector<200x128xf32> to vector<200x128xbf16>
    %cst_72 = arith.constant dense<0.000000e+00> : vector<200x128xf32>
    %100 = tpu.matmul %99, %96, %cst_72 {dimension_numbers = #tpu.dot_dimension_numbers<[1], [0], [0], [1], [0, 0, 1, 1], [], []>} : vector<200x128xbf16>, vector<128x128xbf16>, vector<200x128xf32> -> vector<200x128xf32>
    %101 = vector.broadcast %98 : vector<1x128xf32> to vector<200x128xf32>
    %102 = arith.addf %100, %101 : vector<200x128xf32>
    %cst_73 = arith.constant 0.000000e+00 : f32
    %103 = vector.broadcast %cst_73 : f32 to vector<200x128xf32>
    %104 = arith.maximumf %102, %103 : vector<200x128xf32>
    %c9 = arith.constant 9 : index
    %c0_74 = arith.constant 0 : index
    %c0_75 = arith.constant 0 : index
    %105 = vector.load %arg2[%c9, %c0_74, %c0_75] : memref<14x128x128xbf16, #tpu.memory_space<vmem>>, vector<1x128x128xbf16>
    %106 = vector.shape_cast %105 : vector<1x128x128xbf16> to vector<128x128xbf16>
    %c9_76 = arith.constant 9 : index
    %c0_77 = arith.constant 0 : index
    %c0_78 = arith.constant 0 : index
    %107 = vector.load %arg3[%c9_76, %c0_77, %c0_78] : memref<14x1x128xf32, #tpu.memory_space<vmem>>, vector<1x1x128xf32>
    %108 = vector.shape_cast %107 : vector<1x1x128xf32> to vector<1x128xf32>
    %109 = arith.truncf %104 : vector<200x128xf32> to vector<200x128xbf16>
    %cst_79 = arith.constant dense<0.000000e+00> : vector<200x128xf32>
    %110 = tpu.matmul %109, %106, %cst_79 {dimension_numbers = #tpu.dot_dimension_numbers<[1], [0], [0], [1], [0, 0, 1, 1], [], []>} : vector<200x128xbf16>, vector<128x128xbf16>, vector<200x128xf32> -> vector<200x128xf32>
    %111 = vector.broadcast %108 : vector<1x128xf32> to vector<200x128xf32>
    %112 = arith.addf %110, %111 : vector<200x128xf32>
    %cst_80 = arith.constant 0.000000e+00 : f32
    %113 = vector.broadcast %cst_80 : f32 to vector<200x128xf32>
    %114 = arith.maximumf %112, %113 : vector<200x128xf32>
    %c1_81 = arith.constant 1 : index
    %c0_82 = arith.constant 0 : index
    %c0_83 = arith.constant 0 : index
    %115 = vector.load %arg4[%c1_81, %c0_82, %c0_83] : memref<2x128x256xbf16, #tpu.memory_space<vmem>>, vector<1x128x256xbf16>
    %116 = vector.shape_cast %115 : vector<1x128x256xbf16> to vector<128x256xbf16>
    %c1_84 = arith.constant 1 : index
    %c0_85 = arith.constant 0 : index
    %c0_86 = arith.constant 0 : index
    %117 = vector.load %arg5[%c1_84, %c0_85, %c0_86] : memref<2x1x256xf32, #tpu.memory_space<vmem>>, vector<1x1x256xf32>
    %118 = vector.shape_cast %117 : vector<1x1x256xf32> to vector<1x256xf32>
    %119 = arith.truncf %114 : vector<200x128xf32> to vector<200x128xbf16>
    %cst_87 = arith.constant dense<0.000000e+00> : vector<200x256xf32>
    %120 = tpu.matmul %119, %116, %cst_87 {dimension_numbers = #tpu.dot_dimension_numbers<[1], [0], [0], [1], [0, 0, 1, 1], [], []>} : vector<200x128xbf16>, vector<128x256xbf16>, vector<200x256xf32> -> vector<200x256xf32>
    %121 = vector.broadcast %118 : vector<1x256xf32> to vector<200x256xf32>
    %122 = arith.addf %120, %121 : vector<200x256xf32>
    %cst_88 = arith.constant 0.000000e+00 : f32
    %123 = vector.broadcast %cst_88 : f32 to vector<200x256xf32>
    %124 = arith.maximumf %122, %123 : vector<200x256xf32>
    %125 = vector.extract_strided_slice %124 {offsets = [0, 128], sizes = [200, 128], strides = [1, 1]} : vector<200x256xf32> to vector<200x128xf32>
    %c12 = arith.constant 12 : index
    %c0_89 = arith.constant 0 : index
    %c0_90 = arith.constant 0 : index
    %126 = vector.load %arg2[%c12, %c0_89, %c0_90] : memref<14x128x128xbf16, #tpu.memory_space<vmem>>, vector<1x128x128xbf16>
    %127 = vector.shape_cast %126 : vector<1x128x128xbf16> to vector<128x128xbf16>
    %c12_91 = arith.constant 12 : index
    %c0_92 = arith.constant 0 : index
    %c0_93 = arith.constant 0 : index
    %128 = vector.load %arg3[%c12_91, %c0_92, %c0_93] : memref<14x1x128xf32, #tpu.memory_space<vmem>>, vector<1x1x128xf32>
    %129 = vector.shape_cast %128 : vector<1x1x128xf32> to vector<1x128xf32>
    %130 = arith.truncf %125 : vector<200x128xf32> to vector<200x128xbf16>
    %cst_94 = arith.constant dense<0.000000e+00> : vector<200x128xf32>
    %131 = tpu.matmul %130, %127, %cst_94 {dimension_numbers = #tpu.dot_dimension_numbers<[1], [0], [0], [1], [0, 0, 1, 1], [], []>} : vector<200x128xbf16>, vector<128x128xbf16>, vector<200x128xf32> -> vector<200x128xf32>
    %132 = vector.broadcast %129 : vector<1x128xf32> to vector<200x128xf32>
    %133 = arith.addf %131, %132 : vector<200x128xf32>
    %cst_95 = arith.constant 0.000000e+00 : f32
    %134 = vector.broadcast %cst_95 : f32 to vector<200x128xf32>
    %135 = arith.maximumf %133, %134 : vector<200x128xf32>
    %c13 = arith.constant 13 : index
    %c0_96 = arith.constant 0 : index
    %c0_97 = arith.constant 0 : index
    %136 = vector.load %arg2[%c13, %c0_96, %c0_97] : memref<14x128x128xbf16, #tpu.memory_space<vmem>>, vector<1x128x128xbf16>
    %137 = vector.shape_cast %136 : vector<1x128x128xbf16> to vector<128x128xbf16>
    %c13_98 = arith.constant 13 : index
    %c0_99 = arith.constant 0 : index
    %c0_100 = arith.constant 0 : index
    %138 = vector.load %arg3[%c13_98, %c0_99, %c0_100] : memref<14x1x128xf32, #tpu.memory_space<vmem>>, vector<1x1x128xf32>
    %139 = vector.shape_cast %138 : vector<1x1x128xf32> to vector<1x128xf32>
    %140 = arith.truncf %135 : vector<200x128xf32> to vector<200x128xbf16>
    %cst_101 = arith.constant dense<0.000000e+00> : vector<200x128xf32>
    %141 = tpu.matmul %140, %137, %cst_101 {dimension_numbers = #tpu.dot_dimension_numbers<[1], [0], [0], [1], [0, 0, 1, 1], [], []>} : vector<200x128xbf16>, vector<128x128xbf16>, vector<200x128xf32> -> vector<200x128xf32>
    %142 = vector.broadcast %139 : vector<1x128xf32> to vector<200x128xf32>
    %143 = arith.addf %141, %142 : vector<200x128xf32>
    %cst_102 = arith.constant 0.000000e+00 : f32
    %144 = vector.broadcast %cst_102 : f32 to vector<200x128xf32>
    %145 = arith.maximumf %143, %144 : vector<200x128xf32>
    %c0_103 = arith.constant 0 : index
    %c0_104 = arith.constant 0 : index
    %146 = vector.load %arg6[%c0_103, %c0_104] : memref<200x128xf32, #tpu.memory_space<vmem>>, vector<200x128xf32>
    %147 = arith.addf %146, %145 : vector<200x128xf32>
    %c0_105 = arith.constant 0 : index
    %c0_106 = arith.constant 0 : index
    %148 = vector.load %arg6[%c0_105, %c0_106] : memref<200x128xf32, #tpu.memory_space<vmem>>, vector<200x128xf32>
    tpu.vector_store %arg6[%c0_105, %c0_106], %147 {strides = array<i32>} : memref<200x128xf32, #tpu.memory_space<vmem>>, vector<200x128xf32>,
    return
  }
  func.func @transform_0(%arg0: i32) -> (i32, i32) {
    %c0_i32 = arith.constant 0 : i32
    %c0_i32_0 = arith.constant 0 : i32
    return %arg0, %c0_i32 : i32, i32
  }
  func.func @transform_1(%arg0: i32) -> (i32, i32, i32) {
    %c0_i32 = arith.constant 0 : i32
    %c0_i32_0 = arith.constant 0 : i32
    %c0_i32_1 = arith.constant 0 : i32
    %c0_i32_2 = arith.constant 0 : i32
    return %c0_i32, %c0_i32_0, %c0_i32_1 : i32, i32, i32
  }
  func.func @transform_2(%arg0: i32) -> (i32, i32, i32) {
    %c0_i32 = arith.constant 0 : i32
    %c0_i32_0 = arith.constant 0 : i32
    %c0_i32_1 = arith.constant 0 : i32
    %c0_i32_2 = arith.constant 0 : i32
    return %c0_i32, %c0_i32_0, %c0_i32_1 : i32, i32, i32
  }
  func.func @transform_3(%arg0: i32) -> (i32, i32, i32) {
    %c0_i32 = arith.constant 0 : i32
    %c0_i32_0 = arith.constant 0 : i32
    %c0_i32_1 = arith.constant 0 : i32
    %c0_i32_2 = arith.constant 0 : i32
    return %c0_i32, %c0_i32_0, %c0_i32_1 : i32, i32, i32
  }
  func.func @transform_4(%arg0: i32) -> (i32, i32, i32) {
    %c0_i32 = arith.constant 0 : i32
    %c0_i32_0 = arith.constant 0 : i32
    %c0_i32_1 = arith.constant 0 : i32
    %c0_i32_2 = arith.constant 0 : i32
    return %c0_i32, %c0_i32_0, %c0_i32_1 : i32, i32, i32
  }
  func.func @transform_5(%arg0: i32) -> (i32, i32) {
    %c0_i32 = arith.constant 0 : i32
    %c0_i32_0 = arith.constant 0 : i32
    return %arg0, %c0_i32 : i32, i32
  }
}

</mosaic_0001>

<llo_original>
// kernel: tpu_custom_call.1
$region0: #{tpu_custom_call.1}
  #allocation0 [shape = 'u32[]', space=smem, size = 0x4, offset = 0x4, fixed_abs, tag = 'smem constant byte address 0x4 - core index']
  #allocation1 [shape = 'u32[72,128]{1,0:T(1,128)}', space=vmem, size = 0x9000, scoped, tag = 'internal scratch']
  %s0 = inlined_call_operand.hbm [shape: f32[200,128], index: 0, kind: input, shape index: {}]
  %s1 = inlined_call_operand.hbm [shape: bf16[14,128,128], index: 1, kind: input, shape index: {}]
  %s2 = inlined_call_operand.hbm [shape: f32[14,1,128], index: 2, kind: input, shape index: {}]
  %s3 = inlined_call_operand.hbm [shape: bf16[2,128,256], index: 3, kind: input, shape index: {}]
  %s4 = inlined_call_operand.hbm [shape: f32[2,1,256], index: 4, kind: input, shape index: {}]
  %s5 = inlined_call_operand.hbm [shape: f32[200,128], index: 5, kind: output, shape index: {}]
  %s6 = sld [smem:[#allocation0]]
  $region50: #{tpu_custom_call.1} parent=0
    _
  %s8 = ssub.s32 1, %s6
  %s9 = scalar_select 0, %s8, %s6
  $region1: #{tpu_custom_call.1} parent=0
    #allocation2 [shape = 'u8[102400]{0}', space=vmem, size = 0x19000, scoped, tag = 'input window, operand 0, single buffered']
    #allocation3 [shape = 's32[1]{0}', space=sflag, size = 0x4, scoped, tag = 'scoped memory for tpu_custom_call.1']
    #allocation4 [shape = 's32[1]{0}', space=sflag, size = 0x4, scoped, tag = 'scoped memory for tpu_custom_call.1']
    #allocation5 [shape = 'u8[458752]{0}', space=vmem, size = 0x70000, scoped, tag = 'input window, operand 1, single buffered']
    #allocation6 [shape = 's32[1]{0}', space=sflag, size = 0x4, scoped, tag = 'scoped memory for tpu_custom_call.1']
    #allocation7 [shape = 'u8[7168]{0}', space=vmem, size = 0x1c00, scoped, tag = 'input window, operand 2, single buffered']
    #allocation8 [shape = 'u8[131072]{0}', space=vmem, size = 0x20000, scoped, tag = 'input window, operand 3, single buffered']
    #allocation9 [shape = 's32[1]{0}', space=sflag, size = 0x4, scoped, tag = 'scoped memory for tpu_custom_call.1']
    #allocation10 [shape = 'u8[2048]{0}', space=vmem, size = 0x800, scoped, tag = 'input window, operand 4, single buffered']
    #allocation11 [shape = 'u8[102400]{0}', space=vmem, size = 0x19000, scoped, tag = 'output window, operand 0, single buffered']
    %10 = vsyncpa [#allocation3], 0
    %11 = vsyncpa [#allocation6], 0
    %12 = vsyncpa [#allocation9], 0
    %13 = vsyncpa [#allocation4], 0
    // Predicated region
    $region2: #{tpu_custom_call.1} parent=1 // pred_check
      _
    $region3: #{tpu_custom_call.1} parent=1 // pred_check_branch
      %15 = sbr.rel (0) target = $region5
    $region4: #{tpu_custom_call.1} parent=1 // pred_region
      %17 = vsyncadd [#allocation3], 0
      %s18 = sshll.u32 %s0, 4
      %s19 = int_to_ptr.hbm [resolvable:$true] %s18
      %s20 = sshll.u32 [#allocation2], 4
      %s21 = int_to_ptr.vmem [resolvable:$true] %s20
      %26 = dma.hbm_to_vmem [thread:$0]  %s19, 3200, %s21, [#allocation3], 128, 128, 8
    $region5: #{tpu_custom_call.1} parent=1 // pred_fallthru
      _
    // Predicated region
    $region6: #{tpu_custom_call.1} parent=1 // pred_check
      _
    $region7: #{tpu_custom_call.1} parent=1 // pred_check_branch
      %28 = sbr.rel (0) target = $region9
    $region8: #{tpu_custom_call.1} parent=1 // pred_region
      %30 = vsyncadd [#allocation6], 0
      %s31 = sshll.u32 %s1, 4
      %s32 = int_to_ptr.hbm [resolvable:$true] %s31
      %s33 = sshll.u32 [#allocation5], 4
      %s34 = int_to_ptr.vmem [resolvable:$true] %s33
      %39 = dma.hbm_to_vmem [thread:$0]  %s32, 14336, %s34, [#allocation6], 64, 64, 4
    $region9: #{tpu_custom_call.1} parent=1 // pred_fallthru
      _
    // Predicated region
    $region10: #{tpu_custom_call.1} parent=1 // pred_check
      _
    $region11: #{tpu_custom_call.1} parent=1 // pred_check_branch
      %41 = sbr.rel (0) target = $region13
    $region12: #{tpu_custom_call.1} parent=1 // pred_region
      %43 = vsyncadd [#allocation6], 0
      %s44 = sshll.u32 %s2, 4
      %s45 = int_to_ptr.hbm [resolvable:$true] %s44
      %s46 = sshll.u32 [#allocation7], 4
      %s47 = int_to_ptr.vmem [resolvable:$true] %s46
      %52 = dma.hbm_to_vmem [thread:$0]  %s45, 224, %s47, [#allocation6], 16, 16, 1
    $region13: #{tpu_custom_call.1} parent=1 // pred_fallthru
      _
    // Predicated region
    $region14: #{tpu_custom_call.1} parent=1 // pred_check
      _
    $region15: #{tpu_custom_call.1} parent=1 // pred_check_branch
      %54 = sbr.rel (0) target = $region17
    $region16: #{tpu_custom_call.1} parent=1 // pred_region
      %56 = vsyncadd [#allocation9], 0
      %s57 = sshll.u32 %s3, 4
      %s58 = int_to_ptr.hbm [resolvable:$true] %s57
      %s59 = sshll.u32 [#allocation8], 4
      %s60 = int_to_ptr.vmem [resolvable:$true] %s59
      %65 = dma.hbm_to_vmem [thread:$0]  %s58, 4096, %s60, [#allocation9], 128, 128, 8
    $region17: #{tpu_custom_call.1} parent=1 // pred_fallthru
      _
    // Predicated region
    $region18: #{tpu_custom_call.1} parent=1 // pred_check
      _
    $region19: #{tpu_custom_call.1} parent=1 // pred_check_branch
      %67 = sbr.rel (0) target = $region21
    $region20: #{tpu_custom_call.1} parent=1 // pred_region
      %69 = vsyncadd [#allocation9], 0
      %s70 = sshll.u32 %s4, 4
      %s71 = int_to_ptr.hbm [resolvable:$true] %s70
      %s72 = sshll.u32 [#allocation10], 4
      %s73 = int_to_ptr.vmem [resolvable:$true] %s72
      %78 = dma.hbm_to_vmem [thread:$0]  %s71, 64, %s73, [#allocation9], 32, 32, 2
    $region21: #{tpu_custom_call.1} parent=1 // pred_fallthru
      _
    // Predicated region
    $region22: #{tpu_custom_call.1} parent=1 // pred_check
      _
    $region23: #{tpu_custom_call.1} parent=1 // pred_check_branch
      %80 = sbr.rel (0) target = $region25
    $region24: #{tpu_custom_call.1} parent=1 // pred_region
      %82 = dma.done [#allocation3], 3200
    $region25: #{tpu_custom_call.1} parent=1 // pred_fallthru
      _
    // Predicated region
    $region26: #{tpu_custom_call.1} parent=1 // pred_check
      _
    $region27: #{tpu_custom_call.1} parent=1 // pred_check_branch
      %84 = sbr.rel (0) target = $region29
    $region28: #{tpu_custom_call.1} parent=1 // pred_region
      %86 = dma.done [#allocation6], 14336
    $region29: #{tpu_custom_call.1} parent=1 // pred_fallthru
      _
    // Predicated region
    $region30: #{tpu_custom_call.1} parent=1 // pred_check
      _
    $region31: #{tpu_custom_call.1} parent=1 // pred_check_branch
      %88 = sbr.rel (0) target = $region33
    $region32: #{tpu_custom_call.1} parent=1 // pred_region
      %90 = dma.done [#allocation6], 224
    $region33: #{tpu_custom_call.1} parent=1 // pred_fallthru
      _
    // Predicated region
    $region34: #{tpu_custom_call.1} parent=1 // pred_check
      _
    $region35: #{tpu_custom_call.1} parent=1 // pred_check_branch
      %92 = sbr.rel (0) target = $region37
    $region36: #{tpu_custom_call.1} parent=1 // pred_region
      %94 = dma.done [#allocation9], 4096
    $region37: #{tpu_custom_call.1} parent=1 // pred_fallthru
      _
    // Predicated region
    $region38: #{tpu_custom_call.1} parent=1 // pred_check
      _
    $region39: #{tpu_custom_call.1} parent=1 // pred_check_branch
      %96 = sbr.rel (0) target = $region41
    $region40: #{tpu_custom_call.1} parent=1 // pred_region
      %98 = dma.done [#allocation9], 64
    $region41: #{tpu_custom_call.1} parent=1 // pred_fallthru
      _
    %v99 = vld [vmem:[#allocation2] sm:$0xff]
    %v100 = vld [vmem:[#allocation2 + $0x8] sm:$0xff]
    %v101 = vld [vmem:[#allocation2 + $0x10] sm:$0xff]
    %v102 = vld [vmem:[#allocation2 + $0x18] sm:$0xff]
    %v103 = vld [vmem:[#allocation2 + $0x20] sm:$0xff]
    %v104 = vld [vmem:[#allocation2 + $0x28] sm:$0xff]
    %v105 = vld [vmem:[#allocation2 + $0x30] sm:$0xff]
    %v106 = vld [vmem:[#allocation2 + $0x38] sm:$0xff]
    %v107 = vld [vmem:[#allocation2 + $0x40] sm:$0xff]
    %v108 = vld [vmem:[#allocation2 + $0x48] sm:$0xff]
    %v109 = vld [vmem:[#allocation2 + $0x50] sm:$0xff]
    %v110 = vld [vmem:[#allocation2 + $0x58] sm:$0xff]
    %v111 = vld [vmem:[#allocation2 + $0x60] sm:$0xff]
    %v112 = vld [vmem:[#allocation2 + $0x68] sm:$0xff]
    %v113 = vld [vmem:[#allocation2 + $0x70] sm:$0xff]
    %v114 = vld [vmem:[#allocation2 + $0x78] sm:$0xff]
    %v115 = vld [vmem:[#allocation2 + $0x80] sm:$0xff]
    %v116 = vld [vmem:[#allocation2 + $0x88] sm:$0xff]
    %v117 = vld [vmem:[#allocation2 + $0x90] sm:$0xff]
    %v118 = vld [vmem:[#allocation2 + $0x98] sm:$0xff]
    %v119 = vld [vmem:[#allocation2 + $0xa0] sm:$0xff]
    %v120 = vld [vmem:[#allocation2 + $0xa8] sm:$0xff]
    %v121 = vld [vmem:[#allocation2 + $0xb0] sm:$0xff]
    %v122 = vld [vmem:[#allocation2 + $0xb8] sm:$0xff]
    %v123 = vld [vmem:[#allocation2 + $0xc0] sm:$0xff]
    %v124 = vld [vmem:[#allocation5] sm:$0xf]
    %v125 = vld [vmem:[#allocation5 + $0x4] sm:$0xf]
    %v126 = vld [vmem:[#allocation5 + $0x8] sm:$0xf]
    %v127 = vld [vmem:[#allocation5 + $0xc] sm:$0xf]
    %v128 = vld [vmem:[#allocation5 + $0x10] sm:$0xf]
    %v129 = vld [vmem:[#allocation5 + $0x14] sm:$0xf]
    %v130 = vld [vmem:[#allocation5 + $0x18] sm:$0xf]
    %v131 = vld [vmem:[#allocation5 + $0x1c] sm:$0xf]
    %v132 = vld [vmem:[#allocation5 + $0x20] sm:$0xf]
    %v133 = vld [vmem:[#allocation5 + $0x24] sm:$0xf]
    %v134 = vld [vmem:[#allocation5 + $0x28] sm:$0xf]
    %v135 = vld [vmem:[#allocation5 + $0x2c] sm:$0xf]
    %v136 = vld [vmem:[#allocation5 + $0x30] sm:$0xf]
    %v137 = vld [vmem:[#allocation5 + $0x34] sm:$0xf]
    %v138 = vld [vmem:[#allocation5 + $0x38] sm:$0xf]
    %v139 = vld [vmem:[#allocation5 + $0x3c] sm:$0xf]
    %v140 = vld [vmem:[#allocation7] sm:$0x1]
    %v141 = vpack.c.bf16 %v100, %v99
    %v142 = vpack.c.bf16 %v102, %v101
    %v143 = vpack.c.bf16 %v104, %v103
    %v144 = vpack.c.bf16 %v106, %v105
    %v145 = vpack.c.bf16 %v108, %v107
    %v146 = vpack.c.bf16 %v110, %v109
    %v147 = vpack.c.bf16 %v112, %v111
    %v148 = vpack.c.bf16 %v114, %v113
    %v149 = vpack.c.bf16 %v116, %v115
    %v150 = vpack.c.bf16 %v118, %v117
    %v151 = vpack.c.bf16 %v120, %v119
    %v152 = vpack.c.bf16 %v122, %v121
    %v153 = vpack.c.bf16 %v123, %v123
    %v155 = vperm.slane %v140, 0
    %v173 = vunpack.c.l.b16 %v124
    %v174 = vunpack.c.l.b16 %v125
    %v175 = vunpack.c.l.b16 %v126
    %v176 = vunpack.c.l.b16 %v127
    %v177 = vunpack.c.l.b16 %v128
    %v178 = vunpack.c.l.b16 %v129
    %v179 = vunpack.c.l.b16 %v130
    %v180 = vunpack.c.l.b16 %v131
    %v181 = vunpack.c.l.b16 %v132
    %v182 = vunpack.c.l.b16 %v133
    %v183 = vunpack.c.l.b16 %v134
    %v184 = vunpack.c.l.b16 %v135
    %v185 = vunpack.c.l.b16 %v136
    %v186 = vunpack.c.l.b16 %v137
    %v187 = vunpack.c.l.b16 %v138
    %v188 = vunpack.c.l.b16 %v139
    %v189 = vpack.c.b16 %v174, %v173
    %v190 = vpack.c.b16 %v176, %v175
    %v191 = vpack.c.b16 %v178, %v177
    %v192 = vpack.c.b16 %v180, %v179
    %v193 = vpack.c.b16 %v182, %v181
    %v194 = vpack.c.b16 %v184, %v183
    %v195 = vpack.c.b16 %v186, %v185
    %v196 = vpack.c.b16 %v188, %v187
    %205 = vmatpush.bf16.msra.mxu0 %v196
    %206 = vmatpush.bf16.msra.mxu0 %v195
    %207 = vmatpush.bf16.msra.mxu0 %v194
    %208 = vmatpush.bf16.msra.mxu0 %v193
    %209 = vmatpush.bf16.msra.mxu0 %v192
    %210 = vmatpush.bf16.msra.mxu0 %v191
    %211 = vmatpush.bf16.msra.mxu0 %v190
    %212 = vmatpush.bf16.msra.mxu0 %v189
    %213 = vmatmul.bf16.gmra.mxu0 %v141
    %v214 = vpop.f32.mrf.mxu0
    %v215 = vadd.f32 %v155, %v214
    %v216 = vpop.f32.mrf.mxu0
    %v217 = vadd.f32 %v155, %v216
    %218 = vmatmul.bf16.gmra.mxu0 %v142
    %v219 = vpop.f32.mrf.mxu0
    %v220 = vadd.f32 %v155, %v219
    %v221 = vpop.f32.mrf.mxu0
    %v222 = vadd.f32 %v155, %v221
    %223 = vmatmul.bf16.gmra.mxu0 %v143
    %v224 = vpop.f32.mrf.mxu0
    %v225 = vadd.f32 %v155, %v224
    %v226 = vpop.f32.mrf.mxu0
    %v227 = vadd.f32 %v155, %v226
    %228 = vmatmul.bf16.gmra.mxu0 %v144
    %v229 = vpop.f32.mrf.mxu0
    %v230 = vadd.f32 %v155, %v229
    %v231 = vpop.f32.mrf.mxu0
    %v232 = vadd.f32 %v155, %v231
    %233 = vmatmul.bf16.gmra.mxu0 %v145
    %v234 = vpop.f32.mrf.mxu0
    %v235 = vadd.f32 %v155, %v234
    %v236 = vpop.f32.mrf.mxu0
    %v237 = vadd.f32 %v155, %v236
    %238 = vmatmul.bf16.gmra.mxu0 %v146
    %v239 = vpop.f32.mrf.mxu0
    %v240 = vadd.f32 %v155, %v239
    %v241 = vpop.f32.mrf.mxu0
    %v242 = vadd.f32 %v155, %v241
    %243 = vmatmul.bf16.gmra.mxu0 %v147
    %v244 = vpop.f32.mrf.mxu0
    %v245 = vadd.f32 %v155, %v244
    %v246 = vpop.f32.mrf.mxu0
    %v247 = vadd.f32 %v155, %v246
    %248 = vmatmul.bf16.gmra.mxu0 %v148
    %v249 = vpop.f32.mrf.mxu0
    %v250 = vadd.f32 %v155, %v249
    %v251 = vpop.f32.mrf.mxu0
    %v252 = vadd.f32 %v155, %v251
    %253 = vmatmul.bf16.gmra.mxu0 %v149
    %v254 = vpop.f32.mrf.mxu0
    %v255 = vadd.f32 %v155, %v254
    %v256 = vpop.f32.mrf.mxu0
    %v257 = vadd.f32 %v155, %v256
    %258 = vmatmul.bf16.gmra.mxu0 %v150
    %v259 = vpop.f32.mrf.mxu0
    %v260 = vadd.f32 %v155, %v259
    %v261 = vpop.f32.mrf.mxu0
    %v262 = vadd.f32 %v155, %v261
    %263 = vmatmul.bf16.gmra.mxu0 %v151
    %v264 = vpop.f32.mrf.mxu0
    %v265 = vadd.f32 %v155, %v264
    %v266 = vpop.f32.mrf.mxu0
    %v267 = vadd.f32 %v155, %v266
    %268 = vmatmul.bf16.gmra.mxu0 %v152
    %v269 = vpop.f32.mrf.mxu0
    %v270 = vadd.f32 %v155, %v269
    %v271 = vpop.f32.mrf.mxu0
    %v272 = vadd.f32 %v155, %v271
    %273 = vmatmul.bf16.gmra.mxu0 %v153
    %v274 = vpop.f32.mrf.mxu0
    %v275 = vadd.f32 %v155, %v274
    %v276 = vpop.f32.mrf.mxu0
    %277 = vdwg.mxu0
    %v278 = vmax.f32 %v215, 0.0
    %v279 = vmax.f32 %v217, 0.0
    %v280 = vmax.f32 %v220, 0.0
    %v281 = vmax.f32 %v222, 0.0
    %v282 = vmax.f32 %v225, 0.0
    %v283 = vmax.f32 %v227, 0.0
    %v284 = vmax.f32 %v230, 0.0
    %v285 = vmax.f32 %v232, 0.0
    %v286 = vmax.f32 %v235, 0.0
    %v287 = vmax.f32 %v237, 0.0
    %v288 = vmax.f32 %v240, 0.0
    %v289 = vmax.f32 %v242, 0.0
    %v290 = vmax.f32 %v245, 0.0
    %v291 = vmax.f32 %v247, 0.0
    %v292 = vmax.f32 %v250, 0.0
    %v293 = vmax.f32 %v252, 0.0
    %v294 = vmax.f32 %v255, 0.0
    %v295 = vmax.f32 %v257, 0.0
    %v296 = vmax.f32 %v260, 0.0
    %v297 = vmax.f32 %v262, 0.0
    %v298 = vmax.f32 %v265, 0.0
    %v299 = vmax.f32 %v267, 0.0
    %v300 = vmax.f32 %v270, 0.0
    %v301 = vmax.f32 %v272, 0.0
    %v302 = vmax.f32 %v275, 0.0
    %s303 = scalar_lea.vmem [#allocation5], 64
    %v304 = vld [vmem:[%s303] sm:$0xf]
    %v305 = vld [vmem:[%s303 + $0x4] sm:$0xf]
    %v306 = vld [vmem:[%s303 + $0x8] sm:$0xf]
    %v307 = vld [vmem:[%s303 + $0xc] sm:$0xf]
    %v308 = vld [vmem:[%s303 + $0x10] sm:$0xf]
    %v309 = vld [vmem:[%s303 + $0x14] sm:$0xf]
    %v310 = vld [vmem:[%s303 + $0x18] sm:$0xf]
    %v311 = vld [vmem:[%s303 + $0x1c] sm:$0xf]
    %v312 = vld [vmem:[%s303 + $0x20] sm:$0xf]
    %v313 = vld [vmem:[%s303 + $0x24] sm:$0xf]
    %v314 = vld [vmem:[%s303 + $0x28] sm:$0xf]
    %v315 = vld [vmem:[%s303 + $0x2c] sm:$0xf]
    %v316 = vld [vmem:[%s303 + $0x30] sm:$0xf]
    %v317 = vld [vmem:[%s303 + $0x34] sm:$0xf]
    %v318 = vld [vmem:[%s303 + $0x38] sm:$0xf]
    %v319 = vld [vmem:[%s303 + $0x3c] sm:$0xf]
    %s320 = scalar_lea.vmem [#allocation7], 1
    %v321 = vld [vmem:[%s320] sm:$0x1]
    %v322 = vpack.c.bf16 %v279, %v278
    %v323 = vpack.c.bf16 %v281, %v280
    %v324 = vpack.c.bf16 %v283, %v282
    %v325 = vpack.c.bf16 %v285, %v284
    %v326 = vpack.c.bf16 %v287, %v286
    %v327 = vpack.c.bf16 %v289, %v288
    %v328 = vpack.c.bf16 %v291, %v290
    %v329 = vpack.c.bf16 %v293, %v292
    %v330 = vpack.c.bf16 %v295, %v294
    %v331 = vpack.c.bf16 %v297, %v296
    %v332 = vpack.c.bf16 %v299, %v298
    %v333 = vpack.c.bf16 %v301, %v300
    %v334 = vpack.c.bf16 %v302, %v302
    %v336 = vperm.slane %v321, 0
    %v354 = vunpack.c.l.b16 %v304
    %v355 = vunpack.c.l.b16 %v305
    %v356 = vunpack.c.l.b16 %v306
    %v357 = vunpack.c.l.b16 %v307
    %v358 = vunpack.c.l.b16 %v308
    %v359 = vunpack.c.l.b16 %v309
    %v360 = vunpack.c.l.b16 %v310
    %v361 = vunpack.c.l.b16 %v311
    %v362 = vunpack.c.l.b16 %v312
    %v363 = vunpack.c.l.b16 %v313
    %v364 = vunpack.c.l.b16 %v314
    %v365 = vunpack.c.l.b16 %v315
    %v366 = vunpack.c.l.b16 %v316
    %v367 = vunpack.c.l.b16 %v317
    %v368 = vunpack.c.l.b16 %v318
    %v369 = vunpack.c.l.b16 %v319
    %v370 = vpack.c.b16 %v355, %v354
    %v371 = vpack.c.b16 %v357, %v356
    %v372 = vpack.c.b16 %v359, %v358
    %v373 = vpack.c.b16 %v361, %v360
    %v374 = vpack.c.b16 %v363, %v362
    %v375 = vpack.c.b16 %v365, %v364
    %v376 = vpack.c.b16 %v367, %v366
    %v377 = vpack.c.b16 %v369, %v368
    %386 = vmatpush.bf16.msra.mxu0 %v377
    %387 = vmatpush.bf16.msra.mxu0 %v376
    %388 = vmatpush.bf16.msra.mxu0 %v375
    %389 = vmatpush.bf16.msra.mxu0 %v374
    %390 = vmatpush.bf16.msra.mxu0 %v373
    %391 = vmatpush.bf16.msra.mxu0 %v372
    %392 = vmatpush.bf16.msra.mxu0 %v371
    %393 = vmatpush.bf16.msra.mxu0 %v370
    %394 = vmatmul.bf16.gmra.mxu0 %v322
    %v395 = vpop.f32.mrf.mxu0
    %v396 = vadd.f32 %v336, %v395
    %v397 = vpop.f32.mrf.mxu0
    %v398 = vadd.f32 %v336, %v397
    %399 = vmatmul.bf16.gmra.mxu0 %v323
    %v400 = vpop.f32.mrf.mxu0
    %v401 = vadd.f32 %v336, %v400
    %v402 = vpop.f32.mrf.mxu0
    %v403 = vadd.f32 %v336, %v402
    %404 = vmatmul.bf16.gmra.mxu0 %v324
    %v405 = vpop.f32.mrf.mxu0
    %v406 = vadd.f32 %v336, %v405
    %v407 = vpop.f32.mrf.mxu0
    %v408 = vadd.f32 %v336, %v407
    %409 = vmatmul.bf16.gmra.mxu0 %v325
    %v410 = vpop.f32.mrf.mxu0
    %v411 = vadd.f32 %v336, %v410
    %v412 = vpop.f32.mrf.mxu0
    %v413 = vadd.f32 %v336, %v412
    %414 = vmatmul.bf16.gmra.mxu0 %v326
    %v415 = vpop.f32.mrf.mxu0
    %v416 = vadd.f32 %v336, %v415
    %v417 = vpop.f32.mrf.mxu0
    %v418 = vadd.f32 %v336, %v417
    %419 = vmatmul.bf16.gmra.mxu0 %v327
    %v420 = vpop.f32.mrf.mxu0
    %v421 = vadd.f32 %v336, %v420
    %v422 = vpop.f32.mrf.mxu0
    %v423 = vadd.f32 %v336, %v422
    %424 = vmatmul.bf16.gmra.mxu0 %v328
    %v425 = vpop.f32.mrf.mxu0
    %v426 = vadd.f32 %v336, %v425
    %v427 = vpop.f32.mrf.mxu0
    %v428 = vadd.f32 %v336, %v427
    %429 = vmatmul.bf16.gmra.mxu0 %v329
    %v430 = vpop.f32.mrf.mxu0
    %v431 = vadd.f32 %v336, %v430
    %v432 = vpop.f32.mrf.mxu0
    %v433 = vadd.f32 %v336, %v432
    %434 = vmatmul.bf16.gmra.mxu0 %v330
    %v435 = vpop.f32.mrf.mxu0
    %v436 = vadd.f32 %v336, %v435
    %v437 = vpop.f32.mrf.mxu0
    %v438 = vadd.f32 %v336, %v437
    %439 = vmatmul.bf16.gmra.mxu0 %v331
    %v440 = vpop.f32.mrf.mxu0
    %v441 = vadd.f32 %v336, %v440
    %v442 = vpop.f32.mrf.mxu0
    %v443 = vadd.f32 %v336, %v442
    %444 = vmatmul.bf16.gmra.mxu0 %v332
    %v445 = vpop.f32.mrf.mxu0
    %v446 = vadd.f32 %v336, %v445
    %v447 = vpop.f32.mrf.mxu0
    %v448 = vadd.f32 %v336, %v447
    %449 = vmatmul.bf16.gmra.mxu0 %v333
    %v450 = vpop.f32.mrf.mxu0
    %v451 = vadd.f32 %v336, %v450
    %v452 = vpop.f32.mrf.mxu0
    %v453 = vadd.f32 %v336, %v452
    %454 = vmatmul.bf16.gmra.mxu0 %v334
    %v455 = vpop.f32.mrf.mxu0
    %v456 = vadd.f32 %v336, %v455
    %v457 = vpop.f32.mrf.mxu0
    %458 = vdwg.mxu0
    %v459 = vmax.f32 %v396, 0.0
    %v460 = vmax.f32 %v398, 0.0
    %v461 = vmax.f32 %v401, 0.0
    %v462 = vmax.f32 %v403, 0.0
    %v463 = vmax.f32 %v406, 0.0
    %v464 = vmax.f32 %v408, 0.0
    %v465 = vmax.f32 %v411, 0.0
    %v466 = vmax.f32 %v413, 0.0
    %v467 = vmax.f32 %v416, 0.0
    %v468 = vmax.f32 %v418, 0.0
    %v469 = vmax.f32 %v421, 0.0
    %v470 = vmax.f32 %v423, 0.0
    %v471 = vmax.f32 %v426, 0.0
    %v472 = vmax.f32 %v428, 0.0
    %v473 = vmax.f32 %v431, 0.0
    %v474 = vmax.f32 %v433, 0.0
    %v475 = vmax.f32 %v436, 0.0
    %v476 = vmax.f32 %v438, 0.0
    %v477 = vmax.f32 %v441, 0.0
    %v478 = vmax.f32 %v443, 0.0
    %v479 = vmax.f32 %v446, 0.0
    %v480 = vmax.f32 %v448, 0.0
    %v481 = vmax.f32 %v451, 0.0
    %v482 = vmax.f32 %v453, 0.0
    %v483 = vmax.f32 %v456, 0.0
    %s484 = scalar_lea.vmem [#allocation5], 128
    %v485 = vld [vmem:[%s484] sm:$0xf]
    %v486 = vld [vmem:[%s484 + $0x4] sm:$0xf]
    %v487 = vld [vmem:[%s484 + $0x8] sm:$0xf]
    %v488 = vld [vmem:[%s484 + $0xc] sm:$0xf]
    %v489 = vld [vmem:[%s484 + $0x10] sm:$0xf]
    %v490 = vld [vmem:[%s484 + $0x14] sm:$0xf]
    %v491 = vld [vmem:[%s484 + $0x18] sm:$0xf]
    %v492 = vld [vmem:[%s484 + $0x1c] sm:$0xf]
    %v493 = vld [vmem:[%s484 + $0x20] sm:$0xf]
    %v494 = vld [vmem:[%s484 + $0x24] sm:$0xf]
    %v495 = vld [vmem:[%s484 + $0x28] sm:$0xf]
    %v496 = vld [vmem:[%s484 + $0x2c] sm:$0xf]
    %v497 = vld [vmem:[%s484 + $0x30] sm:$0xf]
    %v498 = vld [vmem:[%s484 + $0x34] sm:$0xf]
    %v499 = vld [vmem:[%s484 + $0x38] sm:$0xf]
    %v500 = vld [vmem:[%s484 + $0x3c] sm:$0xf]
    %s501 = scalar_lea.vmem [#allocation7], 2
    %v502 = vld [vmem:[%s501] sm:$0x1]
    %v503 = vpack.c.bf16 %v460, %v459
    %v504 = vpack.c.bf16 %v462, %v461
    %v505 = vpack.c.bf16 %v464, %v463
    %v506 = vpack.c.bf16 %v466, %v465
    %v507 = vpack.c.bf16 %v468, %v467
    %v508 = vpack.c.bf16 %v470, %v469
    %v509 = vpack.c.bf16 %v472, %v471
    %v510 = vpack.c.bf16 %v474, %v473
    %v511 = vpack.c.bf16 %v476, %v475
    %v512 = vpack.c.bf16 %v478, %v477
    %v513 = vpack.c.bf16 %v480, %v479
    %v514 = vpack.c.bf16 %v482, %v481
    %v515 = vpack.c.bf16 %v483, %v483
    %v517 = vperm.slane %v502, 0
    %v535 = vunpack.c.l.b16 %v485
    %v536 = vunpack.c.l.b16 %v486
    %v537 = vunpack.c.l.b16 %v487
    %v538 = vunpack.c.l.b16 %v488
    %v539 = vunpack.c.l.b16 %v489
    %v540 = vunpack.c.l.b16 %v490
    %v541 = vunpack.c.l.b16 %v491
    %v542 = vunpack.c.l.b16 %v492
    %v543 = vunpack.c.l.b16 %v493
    %v544 = vunpack.c.l.b16 %v494
    %v545 = vunpack.c.l.b16 %v495
    %v546 = vunpack.c.l.b16 %v496
    %v547 = vunpack.c.l.b16 %v497
    %v548 = vunpack.c.l.b16 %v498
    %v549 = vunpack.c.l.b16 %v499
    %v550 = vunpack.c.l.b16 %v500
    %v551 = vpack.c.b16 %v536, %v535
    %v552 = vpack.c.b16 %v538, %v537
    %v553 = vpack.c.b16 %v540, %v539
    %v554 = vpack.c.b16 %v542, %v541
    %v555 = vpack.c.b16 %v544, %v543
    %v556 = vpack.c.b16 %v546, %v545
    %v557 = vpack.c.b16 %v548, %v547
    %v558 = vpack.c.b16 %v550, %v549
    %567 = vmatpush.bf16.msra.mxu0 %v558
    %568 = vmatpush.bf16.msra.mxu0 %v557
    %569 = vmatpush.bf16.msra.mxu0 %v556
    %570 = vmatpush.bf16.msra.mxu0 %v555
    %571 = vmatpush.bf16.msra.mxu0 %v554
    %572 = vmatpush.bf16.msra.mxu0 %v553
    %573 = vmatpush.bf16.msra.mxu0 %v552
    %574 = vmatpush.bf16.msra.mxu0 %v551
    %575 = vmatmul.bf16.gmra.mxu0 %v503
    %v576 = vpop.f32.mrf.mxu0
    %v577 = vadd.f32 %v517, %v576
    %v578 = vpop.f32.mrf.mxu0
    %v579 = vadd.f32 %v517, %v578
    %580 = vmatmul.bf16.gmra.mxu0 %v504
    %v581 = vpop.f32.mrf.mxu0
    %v582 = vadd.f32 %v517, %v581
    %v583 = vpop.f32.mrf.mxu0
    %v584 = vadd.f32 %v517, %v583
    %585 = vmatmul.bf16.gmra.mxu0 %v505
    %v586 = vpop.f32.mrf.mxu0
    %v587 = vadd.f32 %v517, %v586
    %v588 = vpop.f32.mrf.mxu0
    %v589 = vadd.f32 %v517, %v588
    %590 = vmatmul.bf16.gmra.mxu0 %v506
    %v591 = vpop.f32.mrf.mxu0
    %v592 = vadd.f32 %v517, %v591
    %v593 = vpop.f32.mrf.mxu0
    %v594 = vadd.f32 %v517, %v593
    %595 = vmatmul.bf16.gmra.mxu0 %v507
    %v596 = vpop.f32.mrf.mxu0
    %v597 = vadd.f32 %v517, %v596
    %v598 = vpop.f32.mrf.mxu0
    %v599 = vadd.f32 %v517, %v598
    %600 = vmatmul.bf16.gmra.mxu0 %v508
    %v601 = vpop.f32.mrf.mxu0
    %v602 = vadd.f32 %v517, %v601
    %v603 = vpop.f32.mrf.mxu0
    %v604 = vadd.f32 %v517, %v603
    %605 = vmatmul.bf16.gmra.mxu0 %v509
    %v606 = vpop.f32.mrf.mxu0
    %v607 = vadd.f32 %v517, %v606
    %v608 = vpop.f32.mrf.mxu0
    %v609 = vadd.f32 %v517, %v608
    %610 = vmatmul.bf16.gmra.mxu0 %v510
    %v611 = vpop.f32.mrf.mxu0
    %v612 = vadd.f32 %v517, %v611
    %v613 = vpop.f32.mrf.mxu0
    %v614 = vadd.f32 %v517, %v613
    %615 = vmatmul.bf16.gmra.mxu0 %v511
    %v616 = vpop.f32.mrf.mxu0
    %v617 = vadd.f32 %v517, %v616
    %v618 = vpop.f32.mrf.mxu0
    %v619 = vadd.f32 %v517, %v618
    %620 = vmatmul.bf16.gmra.mxu0 %v512
    %v621 = vpop.f32.mrf.mxu0
    %v622 = vadd.f32 %v517, %v621
    %v623 = vpop.f32.mrf.mxu0
    %v624 = vadd.f32 %v517, %v623
    %625 = vmatmul.bf16.gmra.mxu0 %v513
    %v626 = vpop.f32.mrf.mxu0
    %v627 = vadd.f32 %v517, %v626
    %v628 = vpop.f32.mrf.mxu0
    %v629 = vadd.f32 %v517, %v628
    %630 = vmatmul.bf16.gmra.mxu0 %v514
    %v631 = vpop.f32.mrf.mxu0
    %v632 = vadd.f32 %v517, %v631
    %v633 = vpop.f32.mrf.mxu0
    %v634 = vadd.f32 %v517, %v633
    %635 = vmatmul.bf16.gmra.mxu0 %v515
    %v636 = vpop.f32.mrf.mxu0
    %v637 = vadd.f32 %v517, %v636
    %v638 = vpop.f32.mrf.mxu0
    %639 = vdwg.mxu0
    %v640 = vmax.f32 %v577, 0.0
    %v641 = vmax.f32 %v579, 0.0
    %v642 = vmax.f32 %v582, 0.0
    %v643 = vmax.f32 %v584, 0.0
    %v644 = vmax.f32 %v587, 0.0
    %v645 = vmax.f32 %v589, 0.0
    %v646 = vmax.f32 %v592, 0.0
    %v647 = vmax.f32 %v594, 0.0
    %v648 = vmax.f32 %v597, 0.0
    %v649 = vmax.f32 %v599, 0.0
    %v650 = vmax.f32 %v602, 0.0
    %v651 = vmax.f32 %v604, 0.0
    %v652 = vmax.f32 %v607, 0.0
    %v653 = vmax.f32 %v609, 0.0
    %v654 = vmax.f32 %v612, 0.0
    %v655 = vmax.f32 %v614, 0.0
    %v656 = vmax.f32 %v617, 0.0
    %v657 = vmax.f32 %v619, 0.0
    %v658 = vmax.f32 %v622, 0.0
    %v659 = vmax.f32 %v624, 0.0
    %v660 = vmax.f32 %v627, 0.0
    %v661 = vmax.f32 %v629, 0.0
    %v662 = vmax.f32 %v632, 0.0
    %v663 = vmax.f32 %v634, 0.0
    %v664 = vmax.f32 %v637, 0.0
    %v665 = vld [vmem:[#allocation8] sm:$0xff]
    %v666 = vld [vmem:[#allocation8 + $0x8] sm:$0xff]
    %v667 = vld [vmem:[#allocation8 + $0x10] sm:$0xff]
    %v668 = vld [vmem:[#allocation8 + $0x18] sm:$0xff]
    %v669 = vld [vmem:[#allocation8 + $0x20] sm:$0xff]
    %v670 = vld [vmem:[#allocation8 + $0x28] sm:$0xff]
    %v671 = vld [vmem:[#allocation8 + $0x30] sm:$0xff]
    %v672 = vld [vmem:[#allocation8 + $0x38] sm:$0xff]
    %v673 = vld [vmem:[#allocation8 + $0x40] sm:$0xff]
    %v674 = vld [vmem:[#allocation8 + $0x48] sm:$0xff]
    %v675 = vld [vmem:[#allocation8 + $0x50] sm:$0xff]
    %v676 = vld [vmem:[#allocation8 + $0x58] sm:$0xff]
    %v677 = vld [vmem:[#allocation8 + $0x60] sm:$0xff]
    %v678 = vld [vmem:[#allocation8 + $0x68] sm:$0xff]
    %v679 = vld [vmem:[#allocation8 + $0x70] sm:$0xff]
    %v680 = vld [vmem:[#allocation8 + $0x78] sm:$0xff]
    %v681 = vld [vmem:[#allocation10] sm:$0x3]
    %v682 = vpack.c.bf16 %v641, %v640
    %v683 = vpack.c.bf16 %v643, %v642
    %v684 = vpack.c.bf16 %v645, %v644
    %v685 = vpack.c.bf16 %v647, %v646
    %v686 = vpack.c.bf16 %v649, %v648
    %v687 = vpack.c.bf16 %v651, %v650
    %v688 = vpack.c.bf16 %v653, %v652
    %v689 = vpack.c.bf16 %v655, %v654
    %v690 = vpack.c.bf16 %v657, %v656
    %v691 = vpack.c.bf16 %v659, %v658
    %v692 = vpack.c.bf16 %v661, %v660
    %v693 = vpack.c.bf16 %v663, %v662
    %v694 = vpack.c.bf16 %v664, %v664
    %v696 = vperm.slane %v681, 0
    %v697 = vperm.slane %v681, 1
    %v716 = vunpack.c.l.b16 %v665
    %v717 = vunpack.c.h.b16 %v665
    %v718 = vunpack.c.l.b16 %v666
    %v719 = vunpack.c.h.b16 %v666
    %v720 = vunpack.c.l.b16 %v667
    %v721 = vunpack.c.h.b16 %v667
    %v722 = vunpack.c.l.b16 %v668
    %v723 = vunpack.c.h.b16 %v668
    %v724 = vunpack.c.l.b16 %v669
    %v725 = vunpack.c.h.b16 %v669
    %v726 = vunpack.c.l.b16 %v670
    %v727 = vunpack.c.h.b16 %v670
    %v728 = vunpack.c.l.b16 %v671
    %v729 = vunpack.c.h.b16 %v671
    %v730 = vunpack.c.l.b16 %v672
    %v731 = vunpack.c.h.b16 %v672
    %v732 = vunpack.c.l.b16 %v673
    %v733 = vunpack.c.h.b16 %v673
    %v734 = vunpack.c.l.b16 %v674
    %v735 = vunpack.c.h.b16 %v674
    %v736 = vunpack.c.l.b16 %v675
    %v737 = vunpack.c.h.b16 %v675
    %v738 = vunpack.c.l.b16 %v676
    %v739 = vunpack.c.h.b16 %v676
    %v740 = vunpack.c.l.b16 %v677
    %v741 = vunpack.c.h.b16 %v677
    %v742 = vunpack.c.l.b16 %v678
    %v743 = vunpack.c.h.b16 %v678
    %v744 = vunpack.c.l.b16 %v679
    %v745 = vunpack.c.h.b16 %v679
    %v746 = vunpack.c.l.b16 %v680
    %v747 = vunpack.c.h.b16 %v680
    %v748 = vpack.c.b16 %v718, %v716
    %v749 = vpack.c.b16 %v719, %v717
    %v750 = vpack.c.b16 %v722, %v720
    %v751 = vpack.c.b16 %v723, %v721
    %v752 = vpack.c.b16 %v726, %v724
    %v753 = vpack.c.b16 %v727, %v725
    %v754 = vpack.c.b16 %v730, %v728
    %v755 = vpack.c.b16 %v731, %v729
    %v756 = vpack.c.b16 %v734, %v732
    %v757 = vpack.c.b16 %v735, %v733
    %v758 = vpack.c.b16 %v738, %v736
    %v759 = vpack.c.b16 %v739, %v737
    %v760 = vpack.c.b16 %v742, %v740
    %v761 = vpack.c.b16 %v743, %v741
    %v762 = vpack.c.b16 %v746, %v744
    %v763 = vpack.c.b16 %v747, %v745
    %780 = vmatpush.bf16.msra.mxu0 %v762
    %781 = vmatpush.bf16.msra.mxu0 %v760
    %782 = vmatpush.bf16.msra.mxu0 %v758
    %783 = vmatpush.bf16.msra.mxu0 %v756
    %784 = vmatpush.bf16.msra.mxu0 %v754
    %785 = vmatpush.bf16.msra.mxu0 %v752
    %786 = vmatpush.bf16.msra.mxu0 %v750
    %787 = vmatpush.bf16.msra.mxu0 %v748
    %788 = vmatmul.bf16.gmra.mxu0 %v682
    %v789 = vpop.f32.mrf.mxu0
    %v790 = vadd.f32 %v696, %v789
    %v791 = vpop.f32.mrf.mxu0
    %v792 = vadd.f32 %v696, %v791
    %793 = vmatmul.bf16.gmra.mxu0 %v683
    %v794 = vpop.f32.mrf.mxu0
    %v795 = vadd.f32 %v696, %v794
    %v796 = vpop.f32.mrf.mxu0
    %v797 = vadd.f32 %v696, %v796
    %798 = vmatmul.bf16.gmra.mxu0 %v684
    %v799 = vpop.f32.mrf.mxu0
    %v800 = vadd.f32 %v696, %v799
    %v801 = vpop.f32.mrf.mxu0
    %v802 = vadd.f32 %v696, %v801
    %803 = vmatmul.bf16.gmra.mxu0 %v685
    %v804 = vpop.f32.mrf.mxu0
    %v805 = vadd.f32 %v696, %v804
    %v806 = vpop.f32.mrf.mxu0
    %v807 = vadd.f32 %v696, %v806
    %808 = vmatmul.bf16.gmra.mxu0 %v686
    %v809 = vpop.f32.mrf.mxu0
    %v810 = vadd.f32 %v696, %v809
    %v811 = vpop.f32.mrf.mxu0
    %v812 = vadd.f32 %v696, %v811
    %813 = vmatmul.bf16.gmra.mxu0 %v687
    %v814 = vpop.f32.mrf.mxu0
    %v815 = vadd.f32 %v696, %v814
    %v816 = vpop.f32.mrf.mxu0
    %v817 = vadd.f32 %v696, %v816
    %818 = vmatmul.bf16.gmra.mxu0 %v688
    %v819 = vpop.f32.mrf.mxu0
    %v820 = vadd.f32 %v696, %v819
    %v821 = vpop.f32.mrf.mxu0
    %v822 = vadd.f32 %v696, %v821
    %823 = vmatmul.bf16.gmra.mxu0 %v689
    %v824 = vpop.f32.mrf.mxu0
    %v825 = vadd.f32 %v696, %v824
    %v826 = vpop.f32.mrf.mxu0
    %v827 = vadd.f32 %v696, %v826
    %828 = vmatmul.bf16.gmra.mxu0 %v690
    %v829 = vpop.f32.mrf.mxu0
    %v830 = vadd.f32 %v696, %v829
    %v831 = vpop.f32.mrf.mxu0
    %v832 = vadd.f32 %v696, %v831
    %833 = vmatmul.bf16.gmra.mxu0 %v691
    %v834 = vpop.f32.mrf.mxu0
    %v835 = vadd.f32 %v696, %v834
    %v836 = vpop.f32.mrf.mxu0
    %v837 = vadd.f32 %v696, %v836
    %838 = vmatmul.bf16.gmra.mxu0 %v692
    %v839 = vpop.f32.mrf.mxu0
    %v840 = vadd.f32 %v696, %v839
    %v841 = vpop.f32.mrf.mxu0
    %v842 = vadd.f32 %v696, %v841
    %843 = vmatmul.bf16.gmra.mxu0 %v693
    %v844 = vpop.f32.mrf.mxu0
    %v845 = vadd.f32 %v696, %v844
    %v846 = vpop.f32.mrf.mxu0
    %v847 = vadd.f32 %v696, %v846
    %848 = vmatmul.bf16.gmra.mxu0 %v694
    %v849 = vpop.f32.mrf.mxu0
    %v850 = vadd.f32 %v696, %v849
    %v851 = vpop.f32.mrf.mxu0
    %852 = vdwg.mxu0
    %853 = vmatpush.bf16.msra.mxu0 %v763
    %854 = vmatpush.bf16.msra.mxu0 %v761
    %855 = vmatpush.bf16.msra.mxu0 %v759
    %856 = vmatpush.bf16.msra.mxu0 %v757
    %857 = vmatpush.bf16.msra.mxu0 %v755
    %858 = vmatpush.bf16.msra.mxu0 %v753
    %859 = vmatpush.bf16.msra.mxu0 %v751
    %860 = vmatpush.bf16.msra.mxu0 %v749
    %861 = vmatmul.bf16.gmra.mxu0 %v682
    %v862 = vpop.f32.mrf.mxu0
    %v863 = vadd.f32 %v697, %v862
    %v864 = vpop.f32.mrf.mxu0
    %v865 = vadd.f32 %v697, %v864
    %866 = vmatmul.bf16.gmra.mxu0 %v683
    %v867 = vpop.f32.mrf.mxu0
    %v868 = vadd.f32 %v697, %v867
    %v869 = vpop.f32.mrf.mxu0
    %v870 = vadd.f32 %v697, %v869
    %871 = vmatmul.bf16.gmra.mxu0 %v684
    %v872 = vpop.f32.mrf.mxu0
    %v873 = vadd.f32 %v697, %v872
    %v874 = vpop.f32.mrf.mxu0
    %v875 = vadd.f32 %v697, %v874
    %876 = vmatmul.bf16.gmra.mxu0 %v685
    %v877 = vpop.f32.mrf.mxu0
    %v878 = vadd.f32 %v697, %v877
    %v879 = vpop.f32.mrf.mxu0
    %v880 = vadd.f32 %v697, %v879
    %881 = vmatmul.bf16.gmra.mxu0 %v686
    %v882 = vpop.f32.mrf.mxu0
    %v883 = vadd.f32 %v697, %v882
    %v884 = vpop.f32.mrf.mxu0
    %v885 = vadd.f32 %v697, %v884
    %886 = vmatmul.bf16.gmra.mxu0 %v687
    %v887 = vpop.f32.mrf.mxu0
    %v888 = vadd.f32 %v697, %v887
    %v889 = vpop.f32.mrf.mxu0
    %v890 = vadd.f32 %v697, %v889
    %891 = vmatmul.bf16.gmra.mxu0 %v688
    %v892 = vpop.f32.mrf.mxu0
    %v893 = vadd.f32 %v697, %v892
    %v894 = vpop.f32.mrf.mxu0
    %v895 = vadd.f32 %v697, %v894
    %896 = vmatmul.bf16.gmra.mxu0 %v689
    %v897 = vpop.f32.mrf.mxu0
    %v898 = vadd.f32 %v697, %v897
    %v899 = vpop.f32.mrf.mxu0
    %v900 = vadd.f32 %v697, %v899
    %901 = vmatmul.bf16.gmra.mxu0 %v690
    %v902 = vpop.f32.mrf.mxu0
    %v903 = vadd.f32 %v697, %v902
    %v904 = vpop.f32.mrf.mxu0
    %v905 = vadd.f32 %v697, %v904
    %906 = vmatmul.bf16.gmra.mxu0 %v691
    %v907 = vpop.f32.mrf.mxu0
    %v908 = vadd.f32 %v697, %v907
    %v909 = vpop.f32.mrf.mxu0
    %v910 = vadd.f32 %v697, %v909
    %911 = vmatmul.bf16.gmra.mxu0 %v692
    %v912 = vpop.f32.mrf.mxu0
    %v913 = vadd.f32 %v697, %v912
    %v914 = vpop.f32.mrf.mxu0
    %v915 = vadd.f32 %v697, %v914
    %916 = vmatmul.bf16.gmra.mxu0 %v693
    %v917 = vpop.f32.mrf.mxu0
    %v918 = vadd.f32 %v697, %v917
    %v919 = vpop.f32.mrf.mxu0
    %v920 = vadd.f32 %v697, %v919
    %921 = vmatmul.bf16.gmra.mxu0 %v694
    %v922 = vpop.f32.mrf.mxu0
    %v923 = vadd.f32 %v697, %v922
    %v924 = vpop.f32.mrf.mxu0
    %925 = vdwg.mxu0
    %v926 = vmax.f32 %v790, 0.0
    %v927 = vmax.f32 %v863, 0.0
    %v928 = vmax.f32 %v792, 0.0
    %v929 = vmax.f32 %v865, 0.0
    %v930 = vmax.f32 %v795, 0.0
    %v931 = vmax.f32 %v868, 0.0
    %v932 = vmax.f32 %v797, 0.0
    %v933 = vmax.f32 %v870, 0.0
    %v934 = vmax.f32 %v800, 0.0
    %v935 = vmax.f32 %v873, 0.0
    %v936 = vmax.f32 %v802, 0.0
    %v937 = vmax.f32 %v875, 0.0
    %v938 = vmax.f32 %v805, 0.0
    %v939 = vmax.f32 %v878, 0.0
    %v940 = vmax.f32 %v807, 0.0
    %v941 = vmax.f32 %v880, 0.0
    %v942 = vmax.f32 %v810, 0.0
    %v943 = vmax.f32 %v883, 0.0
    %v944 = vmax.f32 %v812, 0.0
    %v945 = vmax.f32 %v885, 0.0
    %v946 = vmax.f32 %v815, 0.0
    %v947 = vmax.f32 %v888, 0.0
    %v948 = vmax.f32 %v817, 0.0
    %v949 = vmax.f32 %v890, 0.0
    %v950 = vmax.f32 %v820, 0.0
    %v951 = vmax.f32 %v893, 0.0
    %v952 = vmax.f32 %v822, 0.0
    %v953 = vmax.f32 %v895, 0.0
    %v954 = vmax.f32 %v825, 0.0
    %v955 = vmax.f32 %v898, 0.0
    %v956 = vmax.f32 %v827, 0.0
    %v957 = vmax.f32 %v900, 0.0
    %v958 = vmax.f32 %v830, 0.0
    %v959 = vmax.f32 %v903, 0.0
    %v960 = vmax.f32 %v832, 0.0
    %v961 = vmax.f32 %v905, 0.0
    %v962 = vmax.f32 %v835, 0.0
    %v963 = vmax.f32 %v908, 0.0
    %v964 = vmax.f32 %v837, 0.0
    %v965 = vmax.f32 %v910, 0.0
    %v966 = vmax.f32 %v840, 0.0
    %v967 = vmax.f32 %v913, 0.0
    %v968 = vmax.f32 %v842, 0.0
    %v969 = vmax.f32 %v915, 0.0
    %v970 = vmax.f32 %v845, 0.0
    %v971 = vmax.f32 %v918, 0.0
    %v972 = vmax.f32 %v847, 0.0
    %v973 = vmax.f32 %v920, 0.0
    %v974 = vmax.f32 %v850, 0.0
    %v975 = vmax.f32 %v923, 0.0
    %s976 = scalar_lea.vmem [#allocation5], 192
    %v977 = vld [vmem:[%s976] sm:$0xf]
    %v978 = vld [vmem:[%s976 + $0x4] sm:$0xf]
    %v979 = vld [vmem:[%s976 + $0x8] sm:$0xf]
    %v980 = vld [vmem:[%s976 + $0xc] sm:$0xf]
    %v981 = vld [vmem:[%s976 + $0x10] sm:$0xf]
    %v982 = vld [vmem:[%s976 + $0x14] sm:$0xf]
    %v983 = vld [vmem:[%s976 + $0x18] sm:$0xf]
    %v984 = vld [vmem:[%s976 + $0x1c] sm:$0xf]
    %v985 = vld [vmem:[%s976 + $0x20] sm:$0xf]
    %v986 = vld [vmem:[%s976 + $0x24] sm:$0xf]
    %v987 = vld [vmem:[%s976 + $0x28] sm:$0xf]
    %v988 = vld [vmem:[%s976 + $0x2c] sm:$0xf]
    %v989 = vld [vmem:[%s976 + $0x30] sm:$0xf]
    %v990 = vld [vmem:[%s976 + $0x34] sm:$0xf]
    %v991 = vld [vmem:[%s976 + $0x38] sm:$0xf]
    %v992 = vld [vmem:[%s976 + $0x3c] sm:$0xf]
    %s993 = scalar_lea.vmem [#allocation7], 3
    %v994 = vld [vmem:[%s993] sm:$0x1]
    %v995 = vpack.c.bf16 %v928, %v926
    %v996 = vpack.c.bf16 %v932, %v930
    %v997 = vpack.c.bf16 %v936, %v934
    %v998 = vpack.c.bf16 %v940, %v938
    %v999 = vpack.c.bf16 %v944, %v942
    %v1000 = vpack.c.bf16 %v948, %v946
    %v1001 = vpack.c.bf16 %v952, %v950
    %v1002 = vpack.c.bf16 %v956, %v954
    %v1003 = vpack.c.bf16 %v960, %v958
    %v1004 = vpack.c.bf16 %v964, %v962
    %v1005 = vpack.c.bf16 %v968, %v966
    %v1006 = vpack.c.bf16 %v972, %v970
    %v1007 = vpack.c.bf16 %v974, %v974
    %v1009 = vperm.slane %v994, 0
    %v1027 = vunpack.c.l.b16 %v977
    %v1028 = vunpack.c.l.b16 %v978
    %v1029 = vunpack.c.l.b16 %v979
    %v1030 = vunpack.c.l.b16 %v980
    %v1031 = vunpack.c.l.b16 %v981
    %v1032 = vunpack.c.l.b16 %v982
    %v1033 = vunpack.c.l.b16 %v983
    %v1034 = vunpack.c.l.b16 %v984
    %v1035 = vunpack.c.l.b16 %v985
    %v1036 = vunpack.c.l.b16 %v986
    %v1037 = vunpack.c.l.b16 %v987
    %v1038 = vunpack.c.l.b16 %v988
    %v1039 = vunpack.c.l.b16 %v989
    %v1040 = vunpack.c.l.b16 %v990
    %v1041 = vunpack.c.l.b16 %v991
    %v1042 = vunpack.c.l.b16 %v992
    %v1043 = vpack.c.b16 %v1028, %v1027
    %v1044 = vpack.c.b16 %v1030, %v1029
    %v1045 = vpack.c.b16 %v1032, %v1031
    %v1046 = vpack.c.b16 %v1034, %v1033
    %v1047 = vpack.c.b16 %v1036, %v1035
    %v1048 = vpack.c.b16 %v1038, %v1037
    %v1049 = vpack.c.b16 %v1040, %v1039
    %v1050 = vpack.c.b16 %v1042, %v1041
    %1059 = vmatpush.bf16.msra.mxu0 %v1050
    %1060 = vmatpush.bf16.msra.mxu0 %v1049
    %1061 = vmatpush.bf16.msra.mxu0 %v1048
    %1062 = vmatpush.bf16.msra.mxu0 %v1047
    %1063 = vmatpush.bf16.msra.mxu0 %v1046
    %1064 = vmatpush.bf16.msra.mxu0 %v1045
    %1065 = vmatpush.bf16.msra.mxu0 %v1044
    %1066 = vmatpush.bf16.msra.mxu0 %v1043
    %1067 = vmatmul.bf16.gmra.mxu0 %v995
    %v1068 = vpop.f32.mrf.mxu0
    %v1069 = vadd.f32 %v1009, %v1068
    %v1070 = vpop.f32.mrf.mxu0
    %v1071 = vadd.f32 %v1009, %v1070
    %1072 = vmatmul.bf16.gmra.mxu0 %v996
    %v1073 = vpop.f32.mrf.mxu0
    %v1074 = vadd.f32 %v1009, %v1073
    %v1075 = vpop.f32.mrf.mxu0
    %v1076 = vadd.f32 %v1009, %v1075
    %1077 = vmatmul.bf16.gmra.mxu0 %v997
    %v1078 = vpop.f32.mrf.mxu0
    %v1079 = vadd.f32 %v1009, %v1078
    %v1080 = vpop.f32.mrf.mxu0
    %v1081 = vadd.f32 %v1009, %v1080
    %1082 = vmatmul.bf16.gmra.mxu0 %v998
    %v1083 = vpop.f32.mrf.mxu0
    %v1084 = vadd.f32 %v1009, %v1083
    %v1085 = vpop.f32.mrf.mxu0
    %v1086 = vadd.f32 %v1009, %v1085
    %1087 = vmatmul.bf16.gmra.mxu0 %v999
    %v1088 = vpop.f32.mrf.mxu0
    %v1089 = vadd.f32 %v1009, %v1088
    %v1090 = vpop.f32.mrf.mxu0
    %v1091 = vadd.f32 %v1009, %v1090
    %1092 = vmatmul.bf16.gmra.mxu0 %v1000
    %v1093 = vpop.f32.mrf.mxu0
    %v1094 = vadd.f32 %v1009, %v1093
    %v1095 = vpop.f32.mrf.mxu0
    %v1096 = vadd.f32 %v1009, %v1095
    %1097 = vmatmul.bf16.gmra.mxu0 %v1001
    %v1098 = vpop.f32.mrf.mxu0
    %v1099 = vadd.f32 %v1009, %v1098
    %v1100 = vpop.f32.mrf.mxu0
    %v1101 = vadd.f32 %v1009, %v1100
    %1102 = vmatmul.bf16.gmra.mxu0 %v1002
    %v1103 = vpop.f32.mrf.mxu0
    %v1104 = vadd.f32 %v1009, %v1103
    %v1105 = vpop.f32.mrf.mxu0
    %v1106 = vadd.f32 %v1009, %v1105
    %1107 = vmatmul.bf16.gmra.mxu0 %v1003
    %v1108 = vpop.f32.mrf.mxu0
    %v1109 = vadd.f32 %v1009, %v1108
    %v1110 = vpop.f32.mrf.mxu0
    %v1111 = vadd.f32 %v1009, %v1110
    %1112 = vmatmul.bf16.gmra.mxu0 %v1004
    %v1113 = vpop.f32.mrf.mxu0
    %v1114 = vadd.f32 %v1009, %v1113
    %v1115 = vpop.f32.mrf.mxu0
    %v1116 = vadd.f32 %v1009, %v1115
    %1117 = vmatmul.bf16.gmra.mxu0 %v1005
    %v1118 = vpop.f32.mrf.mxu0
    %v1119 = vadd.f32 %v1009, %v1118
    %v1120 = vpop.f32.mrf.mxu0
    %v1121 = vadd.f32 %v1009, %v1120
    %1122 = vmatmul.bf16.gmra.mxu0 %v1006
    %v1123 = vpop.f32.mrf.mxu0
    %v1124 = vadd.f32 %v1009, %v1123
    %v1125 = vpop.f32.mrf.mxu0
    %v1126 = vadd.f32 %v1009, %v1125
    %1127 = vmatmul.bf16.gmra.mxu0 %v1007
    %v1128 = vpop.f32.mrf.mxu0
    %v1129 = vadd.f32 %v1009, %v1128
    %v1130 = vpop.f32.mrf.mxu0
    %1131 = vdwg.mxu0
    %v1132 = vmax.f32 %v1069, 0.0
    %v1133 = vmax.f32 %v1071, 0.0
    %v1134 = vmax.f32 %v1074, 0.0
    %v1135 = vmax.f32 %v1076, 0.0
    %v1136 = vmax.f32 %v1079, 0.0
    %v1137 = vmax.f32 %v1081, 0.0
    %v1138 = vmax.f32 %v1084, 0.0
    %v1139 = vmax.f32 %v1086, 0.0
    %v1140 = vmax.f32 %v1089, 0.0
    %v1141 = vmax.f32 %v1091, 0.0
    %v1142 = vmax.f32 %v1094, 0.0
    %v1143 = vmax.f32 %v1096, 0.0
    %v1144 = vmax.f32 %v1099, 0.0
    %v1145 = vmax.f32 %v1101, 0.0
    %v1146 = vmax.f32 %v1104, 0.0
    %v1147 = vmax.f32 %v1106, 0.0
    %v1148 = vmax.f32 %v1109, 0.0
    %v1149 = vmax.f32 %v1111, 0.0
    %v1150 = vmax.f32 %v1114, 0.0
    %v1151 = vmax.f32 %v1116, 0.0
    %v1152 = vmax.f32 %v1119, 0.0
    %v1153 = vmax.f32 %v1121, 0.0
    %v1154 = vmax.f32 %v1124, 0.0
    %v1155 = vmax.f32 %v1126, 0.0
    %v1156 = vmax.f32 %v1129, 0.0
    %s1157 = scalar_lea.vmem [#allocation5], 256
    %v1158 = vld [vmem:[%s1157] sm:$0xf]
    %v1159 = vld [vmem:[%s1157 + $0x4] sm:$0xf]
    %v1160 = vld [vmem:[%s1157 + $0x8] sm:$0xf]
    %v1161 = vld [vmem:[%s1157 + $0xc] sm:$0xf]
    %v1162 = vld [vmem:[%s1157 + $0x10] sm:$0xf]
    %v1163 = vld [vmem:[%s1157 + $0x14] sm:$0xf]
    %v1164 = vld [vmem:[%s1157 + $0x18] sm:$0xf]
    %v1165 = vld [vmem:[%s1157 + $0x1c] sm:$0xf]
    %v1166 = vld [vmem:[%s1157 + $0x20] sm:$0xf]
    %v1167 = vld [vmem:[%s1157 + $0x24] sm:$0xf]
    %v1168 = vld [vmem:[%s1157 + $0x28] sm:$0xf]
    %v1169 = vld [vmem:[%s1157 + $0x2c] sm:$0xf]
    %v1170 = vld [vmem:[%s1157 + $0x30] sm:$0xf]
    %v1171 = vld [vmem:[%s1157 + $0x34] sm:$0xf]
    %v1172 = vld [vmem:[%s1157 + $0x38] sm:$0xf]
    %v1173 = vld [vmem:[%s1157 + $0x3c] sm:$0xf]
    %s1174 = scalar_lea.vmem [#allocation7], 4
    %v1175 = vld [vmem:[%s1174] sm:$0x1]
    %v1176 = vpack.c.bf16 %v1133, %v1132
    %v1177 = vpack.c.bf16 %v1135, %v1134
    %v1178 = vpack.c.bf16 %v1137, %v1136
    %v1179 = vpack.c.bf16 %v1139, %v1138
    %v1180 = vpack.c.bf16 %v1141, %v1140
    %v1181 = vpack.c.bf16 %v1143, %v1142
    %v1182 = vpack.c.bf16 %v1145, %v1144
    %v1183 = vpack.c.bf16 %v1147, %v1146
    %v1184 = vpack.c.bf16 %v1149, %v1148
    %v1185 = vpack.c.bf16 %v1151, %v1150
    %v1186 = vpack.c.bf16 %v1153, %v1152
    %v1187 = vpack.c.bf16 %v1155, %v1154
    %v1188 = vpack.c.bf16 %v1156, %v1156
    %v1190 = vperm.slane %v1175, 0
    %v1208 = vunpack.c.l.b16 %v1158
    %v1209 = vunpack.c.l.b16 %v1159
    %v1210 = vunpack.c.l.b16 %v1160
    %v1211 = vunpack.c.l.b16 %v1161
    %v1212 = vunpack.c.l.b16 %v1162
    %v1213 = vunpack.c.l.b16 %v1163
    %v1214 = vunpack.c.l.b16 %v1164
    %v1215 = vunpack.c.l.b16 %v1165
    %v1216 = vunpack.c.l.b16 %v1166
    %v1217 = vunpack.c.l.b16 %v1167
    %v1218 = vunpack.c.l.b16 %v1168
    %v1219 = vunpack.c.l.b16 %v1169
    %v1220 = vunpack.c.l.b16 %v1170
    %v1221 = vunpack.c.l.b16 %v1171
    %v1222 = vunpack.c.l.b16 %v1172
    %v1223 = vunpack.c.l.b16 %v1173
    %v1224 = vpack.c.b16 %v1209, %v1208
    %v1225 = vpack.c.b16 %v1211, %v1210
    %v1226 = vpack.c.b16 %v1213, %v1212
    %v1227 = vpack.c.b16 %v1215, %v1214
    %v1228 = vpack.c.b16 %v1217, %v1216
    %v1229 = vpack.c.b16 %v1219, %v1218
    %v1230 = vpack.c.b16 %v1221, %v1220
    %v1231 = vpack.c.b16 %v1223, %v1222
    %1240 = vmatpush.bf16.msra.mxu0 %v1231
    %1241 = vmatpush.bf16.msra.mxu0 %v1230
    %1242 = vmatpush.bf16.msra.mxu0 %v1229
    %1243 = vmatpush.bf16.msra.mxu0 %v1228
    %1244 = vmatpush.bf16.msra.mxu0 %v1227
    %1245 = vmatpush.bf16.msra.mxu0 %v1226
    %1246 = vmatpush.bf16.msra.mxu0 %v1225
    %1247 = vmatpush.bf16.msra.mxu0 %v1224
    %1248 = vmatmul.bf16.gmra.mxu0 %v1176
    %v1249 = vpop.f32.mrf.mxu0
    %v1250 = vadd.f32 %v1190, %v1249
    %v1251 = vpop.f32.mrf.mxu0
    %v1252 = vadd.f32 %v1190, %v1251
    %1253 = vmatmul.bf16.gmra.mxu0 %v1177
    %v1254 = vpop.f32.mrf.mxu0
    %v1255 = vadd.f32 %v1190, %v1254
    %v1256 = vpop.f32.mrf.mxu0
    %v1257 = vadd.f32 %v1190, %v1256
    %1258 = vmatmul.bf16.gmra.mxu0 %v1178
    %v1259 = vpop.f32.mrf.mxu0
    %v1260 = vadd.f32 %v1190, %v1259
    %v1261 = vpop.f32.mrf.mxu0
    %v1262 = vadd.f32 %v1190, %v1261
    %1263 = vmatmul.bf16.gmra.mxu0 %v1179
    %v1264 = vpop.f32.mrf.mxu0
    %v1265 = vadd.f32 %v1190, %v1264
    %v1266 = vpop.f32.mrf.mxu0
    %v1267 = vadd.f32 %v1190, %v1266
    %1268 = vmatmul.bf16.gmra.mxu0 %v1180
    %v1269 = vpop.f32.mrf.mxu0
    %v1270 = vadd.f32 %v1190, %v1269
    %v1271 = vpop.f32.mrf.mxu0
    %v1272 = vadd.f32 %v1190, %v1271
    %1273 = vmatmul.bf16.gmra.mxu0 %v1181
    %v1274 = vpop.f32.mrf.mxu0
    %v1275 = vadd.f32 %v1190, %v1274
    %v1276 = vpop.f32.mrf.mxu0
    %v1277 = vadd.f32 %v1190, %v1276
    %1278 = vmatmul.bf16.gmra.mxu0 %v1182
    %v1279 = vpop.f32.mrf.mxu0
    %v1280 = vadd.f32 %v1190, %v1279
    %v1281 = vpop.f32.mrf.mxu0
    %v1282 = vadd.f32 %v1190, %v1281
    %1283 = vmatmul.bf16.gmra.mxu0 %v1183
    %v1284 = vpop.f32.mrf.mxu0
    %v1285 = vadd.f32 %v1190, %v1284
    %v1286 = vpop.f32.mrf.mxu0
    %v1287 = vadd.f32 %v1190, %v1286
    %1288 = vmatmul.bf16.gmra.mxu0 %v1184
    %v1289 = vpop.f32.mrf.mxu0
    %v1290 = vadd.f32 %v1190, %v1289
    %v1291 = vpop.f32.mrf.mxu0
    %v1292 = vadd.f32 %v1190, %v1291
    %1293 = vmatmul.bf16.gmra.mxu0 %v1185
    %v1294 = vpop.f32.mrf.mxu0
    %v1295 = vadd.f32 %v1190, %v1294
    %v1296 = vpop.f32.mrf.mxu0
    %v1297 = vadd.f32 %v1190, %v1296
    %1298 = vmatmul.bf16.gmra.mxu0 %v1186
    %v1299 = vpop.f32.mrf.mxu0
    %v1300 = vadd.f32 %v1190, %v1299
    %v1301 = vpop.f32.mrf.mxu0
    %v1302 = vadd.f32 %v1190, %v1301
    %1303 = vmatmul.bf16.gmra.mxu0 %v1187
    %v1304 = vpop.f32.mrf.mxu0
    %v1305 = vadd.f32 %v1190, %v1304
    %v1306 = vpop.f32.mrf.mxu0
    %v1307 = vadd.f32 %v1190, %v1306
    %1308 = vmatmul.bf16.gmra.mxu0 %v1188
    %v1309 = vpop.f32.mrf.mxu0
    %v1310 = vadd.f32 %v1190, %v1309
    %v1311 = vpop.f32.mrf.mxu0
    %1312 = vdwg.mxu0
    %v1313 = vmax.f32 %v1250, 0.0
    %v1314 = vmax.f32 %v1252, 0.0
    %v1315 = vmax.f32 %v1255, 0.0
    %v1316 = vmax.f32 %v1257, 0.0
    %v1317 = vmax.f32 %v1260, 0.0
    %v1318 = vmax.f32 %v1262, 0.0
    %v1319 = vmax.f32 %v1265, 0.0
    %v1320 = vmax.f32 %v1267, 0.0
    %v1321 = vmax.f32 %v1270, 0.0
    %v1322 = vmax.f32 %v1272, 0.0
    %v1323 = vmax.f32 %v1275, 0.0
    %v1324 = vmax.f32 %v1277, 0.0
    %v1325 = vmax.f32 %v1280, 0.0
    %v1326 = vmax.f32 %v1282, 0.0
    %v1327 = vmax.f32 %v1285, 0.0
    %v1328 = vmax.f32 %v1287, 0.0
    %v1329 = vmax.f32 %v1290, 0.0
    %v1330 = vmax.f32 %v1292, 0.0
    %v1331 = vmax.f32 %v1295, 0.0
    %v1332 = vmax.f32 %v1297, 0.0
    %v1333 = vmax.f32 %v1300, 0.0
    %v1334 = vmax.f32 %v1302, 0.0
    %v1335 = vmax.f32 %v1305, 0.0
    %v1336 = vmax.f32 %v1307, 0.0
    %v1337 = vmax.f32 %v1310, 0.0
    %s1338 = scalar_lea.vmem [#allocation5], 320
    %v1339 = vld [vmem:[%s1338] sm:$0xf]
    %v1340 = vld [vmem:[%s1338 + $0x4] sm:$0xf]
    %v1341 = vld [vmem:[%s1338 + $0x8] sm:$0xf]
    %v1342 = vld [vmem:[%s1338 + $0xc] sm:$0xf]
    %v1343 = vld [vmem:[%s1338 + $0x10] sm:$0xf]
    %v1344 = vld [vmem:[%s1338 + $0x14] sm:$0xf]
    %v1345 = vld [vmem:[%s1338 + $0x18] sm:$0xf]
    %v1346 = vld [vmem:[%s1338 + $0x1c] sm:$0xf]
    %v1347 = vld [vmem:[%s1338 + $0x20] sm:$0xf]
    %v1348 = vld [vmem:[%s1338 + $0x24] sm:$0xf]
    %v1349 = vld [vmem:[%s1338 + $0x28] sm:$0xf]
    %v1350 = vld [vmem:[%s1338 + $0x2c] sm:$0xf]
    %v1351 = vld [vmem:[%s1338 + $0x30] sm:$0xf]
    %v1352 = vld [vmem:[%s1338 + $0x34] sm:$0xf]
    %v1353 = vld [vmem:[%s1338 + $0x38] sm:$0xf]
    %v1354 = vld [vmem:[%s1338 + $0x3c] sm:$0xf]
    %s1355 = scalar_lea.vmem [#allocation7], 5
    %v1356 = vld [vmem:[%s1355] sm:$0x1]
    %v1357 = vpack.c.bf16 %v929, %v927
    %v1358 = vpack.c.bf16 %v933, %v931
    %v1359 = vpack.c.bf16 %v937, %v935
    %v1360 = vpack.c.bf16 %v941, %v939
    %v1361 = vpack.c.bf16 %v945, %v943
    %v1362 = vpack.c.bf16 %v949, %v947
    %v1363 = vpack.c.bf16 %v953, %v951
    %v1364 = vpack.c.bf16 %v957, %v955
    %v1365 = vpack.c.bf16 %v961, %v959
    %v1366 = vpack.c.bf16 %v965, %v963
    %v1367 = vpack.c.bf16 %v969, %v967
    %v1368 = vpack.c.bf16 %v973, %v971
    %v1369 = vpack.c.bf16 %v975, %v975
    %v1371 = vperm.slane %v1356, 0
    %v1389 = vunpack.c.l.b16 %v1339
    %v1390 = vunpack.c.l.b16 %v1340
    %v1391 = vunpack.c.l.b16 %v1341
    %v1392 = vunpack.c.l.b16 %v1342
    %v1393 = vunpack.c.l.b16 %v1343
    %v1394 = vunpack.c.l.b16 %v1344
    %v1395 = vunpack.c.l.b16 %v1345
    %v1396 = vunpack.c.l.b16 %v1346
    %v1397 = vunpack.c.l.b16 %v1347
    %v1398 = vunpack.c.l.b16 %v1348
    %v1399 = vunpack.c.l.b16 %v1349
    %v1400 = vunpack.c.l.b16 %v1350
    %v1401 = vunpack.c.l.b16 %v1351
    %v1402 = vunpack.c.l.b16 %v1352
    %v1403 = vunpack.c.l.b16 %v1353
    %v1404 = vunpack.c.l.b16 %v1354
    %v1405 = vpack.c.b16 %v1390, %v1389
    %v1406 = vpack.c.b16 %v1392, %v1391
    %v1407 = vpack.c.b16 %v1394, %v1393
    %v1408 = vpack.c.b16 %v1396, %v1395
    %v1409 = vpack.c.b16 %v1398, %v1397
    %v1410 = vpack.c.b16 %v1400, %v1399
    %v1411 = vpack.c.b16 %v1402, %v1401
    %v1412 = vpack.c.b16 %v1404, %v1403
    %1421 = vmatpush.bf16.msra.mxu0 %v1412
    %1422 = vmatpush.bf16.msra.mxu0 %v1411
    %1423 = vmatpush.bf16.msra.mxu0 %v1410
    %1424 = vmatpush.bf16.msra.mxu0 %v1409
    %1425 = vmatpush.bf16.msra.mxu0 %v1408
    %1426 = vmatpush.bf16.msra.mxu0 %v1407
    %1427 = vmatpush.bf16.msra.mxu0 %v1406
    %1428 = vmatpush.bf16.msra.mxu0 %v1405
    %1429 = vmatmul.bf16.gmra.mxu0 %v1357
    %v1430 = vpop.f32.mrf.mxu0
    %v1431 = vadd.f32 %v1371, %v1430
    %v1432 = vpop.f32.mrf.mxu0
    %v1433 = vadd.f32 %v1371, %v1432
    %1434 = vmatmul.bf16.gmra.mxu0 %v1358
    %v1435 = vpop.f32.mrf.mxu0
    %v1436 = vadd.f32 %v1371, %v1435
    %v1437 = vpop.f32.mrf.mxu0
    %v1438 = vadd.f32 %v1371, %v1437
    %1439 = vmatmul.bf16.gmra.mxu0 %v1359
    %v1440 = vpop.f32.mrf.mxu0
    %v1441 = vadd.f32 %v1371, %v1440
    %v1442 = vpop.f32.mrf.mxu0
    %v1443 = vadd.f32 %v1371, %v1442
    %1444 = vmatmul.bf16.gmra.mxu0 %v1360
    %v1445 = vpop.f32.mrf.mxu0
    %v1446 = vadd.f32 %v1371, %v1445
    %v1447 = vpop.f32.mrf.mxu0
    %v1448 = vadd.f32 %v1371, %v1447
    %1449 = vmatmul.bf16.gmra.mxu0 %v1361
    %v1450 = vpop.f32.mrf.mxu0
    %v1451 = vadd.f32 %v1371, %v1450
    %v1452 = vpop.f32.mrf.mxu0
    %v1453 = vadd.f32 %v1371, %v1452
    %1454 = vmatmul.bf16.gmra.mxu0 %v1362
    %v1455 = vpop.f32.mrf.mxu0
    %v1456 = vadd.f32 %v1371, %v1455
    %v1457 = vpop.f32.mrf.mxu0
    %v1458 = vadd.f32 %v1371, %v1457
    %1459 = vmatmul.bf16.gmra.mxu0 %v1363
    %v1460 = vpop.f32.mrf.mxu0
    %v1461 = vadd.f32 %v1371, %v1460
    %v1462 = vpop.f32.mrf.mxu0
    %v1463 = vadd.f32 %v1371, %v1462
    %1464 = vmatmul.bf16.gmra.mxu0 %v1364
    %v1465 = vpop.f32.mrf.mxu0
    %v1466 = vadd.f32 %v1371, %v1465
    %v1467 = vpop.f32.mrf.mxu0
    %v1468 = vadd.f32 %v1371, %v1467
    %1469 = vmatmul.bf16.gmra.mxu0 %v1365
    %v1470 = vpop.f32.mrf.mxu0
    %v1471 = vadd.f32 %v1371, %v1470
    %v1472 = vpop.f32.mrf.mxu0
    %v1473 = vadd.f32 %v1371, %v1472
    %1474 = vmatmul.bf16.gmra.mxu0 %v1366
    %v1475 = vpop.f32.mrf.mxu0
    %v1476 = vadd.f32 %v1371, %v1475
    %v1477 = vpop.f32.mrf.mxu0
    %v1478 = vadd.f32 %v1371, %v1477
    %1479 = vmatmul.bf16.gmra.mxu0 %v1367
    %v1480 = vpop.f32.mrf.mxu0
    %v1481 = vadd.f32 %v1371, %v1480
    %v1482 = vpop.f32.mrf.mxu0
    %v1483 = vadd.f32 %v1371, %v1482
    %1484 = vmatmul.bf16.gmra.mxu0 %v1368
    %v1485 = vpop.f32.mrf.mxu0
    %v1486 = vadd.f32 %v1371, %v1485
    %v1487 = vpop.f32.mrf.mxu0
    %v1488 = vadd.f32 %v1371, %v1487
    %1489 = vmatmul.bf16.gmra.mxu0 %v1369
    %v1490 = vpop.f32.mrf.mxu0
    %v1491 = vadd.f32 %v1371, %v1490
    %v1492 = vpop.f32.mrf.mxu0
    %1493 = vdwg.mxu0
    %v1494 = vmax.f32 %v1431, 0.0
    %v1495 = vmax.f32 %v1433, 0.0
    %v1496 = vmax.f32 %v1436, 0.0
    %v1497 = vmax.f32 %v1438, 0.0
    %v1498 = vmax.f32 %v1441, 0.0
    %v1499 = vmax.f32 %v1443, 0.0
    %v1500 = vmax.f32 %v1446, 0.0
    %v1501 = vmax.f32 %v1448, 0.0
    %v1502 = vmax.f32 %v1451, 0.0
    %v1503 = vmax.f32 %v1453, 0.0
    %v1504 = vmax.f32 %v1456, 0.0
    %v1505 = vmax.f32 %v1458, 0.0
    %v1506 = vmax.f32 %v1461, 0.0
    %v1507 = vmax.f32 %v1463, 0.0
    %v1508 = vmax.f32 %v1466, 0.0
    %v1509 = vmax.f32 %v1468, 0.0
    %v1510 = vmax.f32 %v1471, 0.0
    %v1511 = vmax.f32 %v1473, 0.0
    %v1512 = vmax.f32 %v1476, 0.0
    %v1513 = vmax.f32 %v1478, 0.0
    %v1514 = vmax.f32 %v1481, 0.0
    %v1515 = vmax.f32 %v1483, 0.0
    %v1516 = vmax.f32 %v1486, 0.0
    %v1517 = vmax.f32 %v1488, 0.0
    %v1518 = vmax.f32 %v1491, 0.0
    %s1519 = scalar_lea.vmem [#allocation5], 384
    %v1520 = vld [vmem:[%s1519] sm:$0xf]
    %v1521 = vld [vmem:[%s1519 + $0x4] sm:$0xf]
    %v1522 = vld [vmem:[%s1519 + $0x8] sm:$0xf]
    %v1523 = vld [vmem:[%s1519 + $0xc] sm:$0xf]
    %v1524 = vld [vmem:[%s1519 + $0x10] sm:$0xf]
    %v1525 = vld [vmem:[%s1519 + $0x14] sm:$0xf]
    %v1526 = vld [vmem:[%s1519 + $0x18] sm:$0xf]
    %v1527 = vld [vmem:[%s1519 + $0x1c] sm:$0xf]
    %v1528 = vld [vmem:[%s1519 + $0x20] sm:$0xf]
    %v1529 = vld [vmem:[%s1519 + $0x24] sm:$0xf]
    %v1530 = vld [vmem:[%s1519 + $0x28] sm:$0xf]
    %v1531 = vld [vmem:[%s1519 + $0x2c] sm:$0xf]
    %v1532 = vld [vmem:[%s1519 + $0x30] sm:$0xf]
    %v1533 = vld [vmem:[%s1519 + $0x34] sm:$0xf]
    %v1534 = vld [vmem:[%s1519 + $0x38] sm:$0xf]
    %v1535 = vld [vmem:[%s1519 + $0x3c] sm:$0xf]
    %s1536 = scalar_lea.vmem [#allocation7], 6
    %v1537 = vld [vmem:[%s1536] sm:$0x1]
    %v1538 = vpack.c.bf16 %v1495, %v1494
    %v1539 = vpack.c.bf16 %v1497, %v1496
    %v1540 = vpack.c.bf16 %v1499, %v1498
    %v1541 = vpack.c.bf16 %v1501, %v1500
    %v1542 = vpack.c.bf16 %v1503, %v1502
    %v1543 = vpack.c.bf16 %v1505, %v1504
    %v1544 = vpack.c.bf16 %v1507, %v1506
    %v1545 = vpack.c.bf16 %v1509, %v1508
    %v1546 = vpack.c.bf16 %v1511, %v1510
    %v1547 = vpack.c.bf16 %v1513, %v1512
    %v1548 = vpack.c.bf16 %v1515, %v1514
    %v1549 = vpack.c.bf16 %v1517, %v1516
    %v1550 = vpack.c.bf16 %v1518, %v1518
    %v1552 = vperm.slane %v1537, 0
    %v1570 = vunpack.c.l.b16 %v1520
    %v1571 = vunpack.c.l.b16 %v1521
    %v1572 = vunpack.c.l.b16 %v1522
    %v1573 = vunpack.c.l.b16 %v1523
    %v1574 = vunpack.c.l.b16 %v1524
    %v1575 = vunpack.c.l.b16 %v1525
    %v1576 = vunpack.c.l.b16 %v1526
    %v1577 = vunpack.c.l.b16 %v1527
    %v1578 = vunpack.c.l.b16 %v1528
    %v1579 = vunpack.c.l.b16 %v1529
    %v1580 = vunpack.c.l.b16 %v1530
    %v1581 = vunpack.c.l.b16 %v1531
    %v1582 = vunpack.c.l.b16 %v1532
    %v1583 = vunpack.c.l.b16 %v1533
    %v1584 = vunpack.c.l.b16 %v1534
    %v1585 = vunpack.c.l.b16 %v1535
    %v1586 = vpack.c.b16 %v1571, %v1570
    %v1587 = vpack.c.b16 %v1573, %v1572
    %v1588 = vpack.c.b16 %v1575, %v1574
    %v1589 = vpack.c.b16 %v1577, %v1576
    %v1590 = vpack.c.b16 %v1579, %v1578
    %v1591 = vpack.c.b16 %v1581, %v1580
    %v1592 = vpack.c.b16 %v1583, %v1582
    %v1593 = vpack.c.b16 %v1585, %v1584
    %1602 = vmatpush.bf16.msra.mxu0 %v1593
    %1603 = vmatpush.bf16.msra.mxu0 %v1592
    %1604 = vmatpush.bf16.msra.mxu0 %v1591
    %1605 = vmatpush.bf16.msra.mxu0 %v1590
    %1606 = vmatpush.bf16.msra.mxu0 %v1589
    %1607 = vmatpush.bf16.msra.mxu0 %v1588
    %1608 = vmatpush.bf16.msra.mxu0 %v1587
    %1609 = vmatpush.bf16.msra.mxu0 %v1586
    %1610 = vmatmul.bf16.gmra.mxu0 %v1538
    %v1611 = vpop.f32.mrf.mxu0
    %v1612 = vadd.f32 %v1552, %v1611
    %v1613 = vpop.f32.mrf.mxu0
    %v1614 = vadd.f32 %v1552, %v1613
    %1615 = vmatmul.bf16.gmra.mxu0 %v1539
    %v1616 = vpop.f32.mrf.mxu0
    %v1617 = vadd.f32 %v1552, %v1616
    %v1618 = vpop.f32.mrf.mxu0
    %v1619 = vadd.f32 %v1552, %v1618
    %1620 = vmatmul.bf16.gmra.mxu0 %v1540
    %v1621 = vpop.f32.mrf.mxu0
    %v1622 = vadd.f32 %v1552, %v1621
    %v1623 = vpop.f32.mrf.mxu0
    %v1624 = vadd.f32 %v1552, %v1623
    %1625 = vmatmul.bf16.gmra.mxu0 %v1541
    %v1626 = vpop.f32.mrf.mxu0
    %v1627 = vadd.f32 %v1552, %v1626
    %v1628 = vpop.f32.mrf.mxu0
    %v1629 = vadd.f32 %v1552, %v1628
    %1630 = vmatmul.bf16.gmra.mxu0 %v1542
    %v1631 = vpop.f32.mrf.mxu0
    %v1632 = vadd.f32 %v1552, %v1631
    %v1633 = vpop.f32.mrf.mxu0
    %v1634 = vadd.f32 %v1552, %v1633
    %1635 = vmatmul.bf16.gmra.mxu0 %v1543
    %v1636 = vpop.f32.mrf.mxu0
    %v1637 = vadd.f32 %v1552, %v1636
    %v1638 = vpop.f32.mrf.mxu0
    %v1639 = vadd.f32 %v1552, %v1638
    %1640 = vmatmul.bf16.gmra.mxu0 %v1544
    %v1641 = vpop.f32.mrf.mxu0
    %v1642 = vadd.f32 %v1552, %v1641
    %v1643 = vpop.f32.mrf.mxu0
    %v1644 = vadd.f32 %v1552, %v1643
    %1645 = vmatmul.bf16.gmra.mxu0 %v1545
    %v1646 = vpop.f32.mrf.mxu0
    %v1647 = vadd.f32 %v1552, %v1646
    %v1648 = vpop.f32.mrf.mxu0
    %v1649 = vadd.f32 %v1552, %v1648
    %1650 = vmatmul.bf16.gmra.mxu0 %v1546
    %v1651 = vpop.f32.mrf.mxu0
    %v1652 = vadd.f32 %v1552, %v1651
    %v1653 = vpop.f32.mrf.mxu0
    %v1654 = vadd.f32 %v1552, %v1653
    %1655 = vmatmul.bf16.gmra.mxu0 %v1547
    %v1656 = vpop.f32.mrf.mxu0
    %v1657 = vadd.f32 %v1552, %v1656
    %v1658 = vpop.f32.mrf.mxu0
    %v1659 = vadd.f32 %v1552, %v1658
    %1660 = vmatmul.bf16.gmra.mxu0 %v1548
    %v1661 = vpop.f32.mrf.mxu0
    %v1662 = vadd.f32 %v1552, %v1661
    %v1663 = vpop.f32.mrf.mxu0
    %v1664 = vadd.f32 %v1552, %v1663
    %1665 = vmatmul.bf16.gmra.mxu0 %v1549
    %v1666 = vpop.f32.mrf.mxu0
    %v1667 = vadd.f32 %v1552, %v1666
    %v1668 = vpop.f32.mrf.mxu0
    %v1669 = vadd.f32 %v1552, %v1668
    %1670 = vmatmul.bf16.gmra.mxu0 %v1550
    %v1671 = vpop.f32.mrf.mxu0
    %v1672 = vadd.f32 %v1552, %v1671
    %v1673 = vpop.f32.mrf.mxu0
    %1674 = vdwg.mxu0
    %v1675 = vmax.f32 %v1612, 0.0
    %v1676 = vmax.f32 %v1614, 0.0
    %v1677 = vmax.f32 %v1617, 0.0
    %v1678 = vmax.f32 %v1619, 0.0
    %v1679 = vmax.f32 %v1622, 0.0
    %v1680 = vmax.f32 %v1624, 0.0
    %v1681 = vmax.f32 %v1627, 0.0
    %v1682 = vmax.f32 %v1629, 0.0
    %v1683 = vmax.f32 %v1632, 0.0
    %v1684 = vmax.f32 %v1634, 0.0
    %v1685 = vmax.f32 %v1637, 0.0
    %v1686 = vmax.f32 %v1639, 0.0
    %v1687 = vmax.f32 %v1642, 0.0
    %v1688 = vmax.f32 %v1644, 0.0
    %v1689 = vmax.f32 %v1647, 0.0
    %v1690 = vmax.f32 %v1649, 0.0
    %v1691 = vmax.f32 %v1652, 0.0
    %v1692 = vmax.f32 %v1654, 0.0
    %v1693 = vmax.f32 %v1657, 0.0
    %v1694 = vmax.f32 %v1659, 0.0
    %v1695 = vmax.f32 %v1662, 0.0
    %v1696 = vmax.f32 %v1664, 0.0
    %v1697 = vmax.f32 %v1667, 0.0
    %v1698 = vmax.f32 %v1669, 0.0
    %v1699 = vmax.f32 %v1672, 0.0
    %1700 = vst [vmem:[#allocation11] sm:$0xff] %v1675
    %1701 = vst [vmem:[#allocation11 + $0x8] sm:$0xff] %v1676
    %1702 = vst [vmem:[#allocation11 + $0x10] sm:$0xff] %v1677
    %1703 = vst [vmem:[#allocation11 + $0x18] sm:$0xff] %v1678
    %1704 = vst [vmem:[#allocation11 + $0x20] sm:$0xff] %v1679
    %1705 = vst [vmem:[#allocation11 + $0x28] sm:$0xff] %v1680
    %1706 = vst [vmem:[#allocation11 + $0x30] sm:$0xff] %v1681
    %1707 = vst [vmem:[#allocation11 + $0x38] sm:$0xff] %v1682
    %1708 = vst [vmem:[#allocation11 + $0x40] sm:$0xff] %v1683
    %1709 = vst [vmem:[#allocation11 + $0x48] sm:$0xff] %v1684
    %1710 = vst [vmem:[#allocation11 + $0x50] sm:$0xff] %v1685
    %1711 = vst [vmem:[#allocation11 + $0x58] sm:$0xff] %v1686
    %1712 = vst [vmem:[#allocation11 + $0x60] sm:$0xff] %v1687
    %1713 = vst [vmem:[#allocation11 + $0x68] sm:$0xff] %v1688
    %1714 = vst [vmem:[#allocation11 + $0x70] sm:$0xff] %v1689
    %1715 = vst [vmem:[#allocation11 + $0x78] sm:$0xff] %v1690
    %1716 = vst [vmem:[#allocation11 + $0x80] sm:$0xff] %v1691
    %1717 = vst [vmem:[#allocation11 + $0x88] sm:$0xff] %v1692
    %1718 = vst [vmem:[#allocation11 + $0x90] sm:$0xff] %v1693
    %1719 = vst [vmem:[#allocation11 + $0x98] sm:$0xff] %v1694
    %1720 = vst [vmem:[#allocation11 + $0xa0] sm:$0xff] %v1695
    %1721 = vst [vmem:[#allocation11 + $0xa8] sm:$0xff] %v1696
    %1722 = vst [vmem:[#allocation11 + $0xb0] sm:$0xff] %v1697
    %1723 = vst [vmem:[#allocation11 + $0xb8] sm:$0xff] %v1698
    %1724 = vst [vmem:[#allocation11 + $0xc0] sm:$0xff] %v1699
    %v1725 = vsub.f32 %v1313, %v99
    %v1726 = vsub.f32 %v1314, %v100
    %v1727 = vsub.f32 %v1315, %v101
    %v1728 = vsub.f32 %v1316, %v102
    %v1729 = vsub.f32 %v1317, %v103
    %v1730 = vsub.f32 %v1318, %v104
    %v1731 = vsub.f32 %v1319, %v105
    %v1732 = vsub.f32 %v1320, %v106
    %v1733 = vsub.f32 %v1321, %v107
    %v1734 = vsub.f32 %v1322, %v108
    %v1735 = vsub.f32 %v1323, %v109
    %v1736 = vsub.f32 %v1324, %v110
    %v1737 = vsub.f32 %v1325, %v111
    %v1738 = vsub.f32 %v1326, %v112
    %v1739 = vsub.f32 %v1327, %v113
    %v1740 = vsub.f32 %v1328, %v114
    %v1741 = vsub.f32 %v1329, %v115
    %v1742 = vsub.f32 %v1330, %v116
    %v1743 = vsub.f32 %v1331, %v117
    %v1744 = vsub.f32 %v1332, %v118
    %v1745 = vsub.f32 %v1333, %v119
    %v1746 = vsub.f32 %v1334, %v120
    %v1747 = vsub.f32 %v1335, %v121
    %v1748 = vsub.f32 %v1336, %v122
    %v1749 = vsub.f32 %v1337, %v123
    %s1750 = scalar_lea.vmem [#allocation5], 448
    %v1751 = vld [vmem:[%s1750] sm:$0xf]
    %v1752 = vld [vmem:[%s1750 + $0x4] sm:$0xf]
    %v1753 = vld [vmem:[%s1750 + $0x8] sm:$0xf]
    %v1754 = vld [vmem:[%s1750 + $0xc] sm:$0xf]
    %v1755 = vld [vmem:[%s1750 + $0x10] sm:$0xf]
    %v1756 = vld [vmem:[%s1750 + $0x14] sm:$0xf]
    %v1757 = vld [vmem:[%s1750 + $0x18] sm:$0xf]
    %v1758 = vld [vmem:[%s1750 + $0x1c] sm:$0xf]
    %v1759 = vld [vmem:[%s1750 + $0x20] sm:$0xf]
    %v1760 = vld [vmem:[%s1750 + $0x24] sm:$0xf]
    %v1761 = vld [vmem:[%s1750 + $0x28] sm:$0xf]
    %v1762 = vld [vmem:[%s1750 + $0x2c] sm:$0xf]
    %v1763 = vld [vmem:[%s1750 + $0x30] sm:$0xf]
    %v1764 = vld [vmem:[%s1750 + $0x34] sm:$0xf]
    %v1765 = vld [vmem:[%s1750 + $0x38] sm:$0xf]
    %v1766 = vld [vmem:[%s1750 + $0x3c] sm:$0xf]
    %s1767 = scalar_lea.vmem [#allocation7], 7
    %v1768 = vld [vmem:[%s1767] sm:$0x1]
    %v1769 = vpack.c.bf16 %v1726, %v1725
    %v1770 = vpack.c.bf16 %v1728, %v1727
    %v1771 = vpack.c.bf16 %v1730, %v1729
    %v1772 = vpack.c.bf16 %v1732, %v1731
    %v1773 = vpack.c.bf16 %v1734, %v1733
    %v1774 = vpack.c.bf16 %v1736, %v1735
    %v1775 = vpack.c.bf16 %v1738, %v1737
    %v1776 = vpack.c.bf16 %v1740, %v1739
    %v1777 = vpack.c.bf16 %v1742, %v1741
    %v1778 = vpack.c.bf16 %v1744, %v1743
    %v1779 = vpack.c.bf16 %v1746, %v1745
    %v1780 = vpack.c.bf16 %v1748, %v1747
    %v1781 = vpack.c.bf16 %v1749, %v1749
    %v1783 = vperm.slane %v1768, 0
    %v1801 = vunpack.c.l.b16 %v1751
    %v1802 = vunpack.c.l.b16 %v1752
    %v1803 = vunpack.c.l.b16 %v1753
    %v1804 = vunpack.c.l.b16 %v1754
    %v1805 = vunpack.c.l.b16 %v1755
    %v1806 = vunpack.c.l.b16 %v1756
    %v1807 = vunpack.c.l.b16 %v1757
    %v1808 = vunpack.c.l.b16 %v1758
    %v1809 = vunpack.c.l.b16 %v1759
    %v1810 = vunpack.c.l.b16 %v1760
    %v1811 = vunpack.c.l.b16 %v1761
    %v1812 = vunpack.c.l.b16 %v1762
    %v1813 = vunpack.c.l.b16 %v1763
    %v1814 = vunpack.c.l.b16 %v1764
    %v1815 = vunpack.c.l.b16 %v1765
    %v1816 = vunpack.c.l.b16 %v1766
    %v1817 = vpack.c.b16 %v1802, %v1801
    %v1818 = vpack.c.b16 %v1804, %v1803
    %v1819 = vpack.c.b16 %v1806, %v1805
    %v1820 = vpack.c.b16 %v1808, %v1807
    %v1821 = vpack.c.b16 %v1810, %v1809
    %v1822 = vpack.c.b16 %v1812, %v1811
    %v1823 = vpack.c.b16 %v1814, %v1813
    %v1824 = vpack.c.b16 %v1816, %v1815
    %1833 = vmatpush.bf16.msra.mxu0 %v1824
    %1834 = vmatpush.bf16.msra.mxu0 %v1823
    %1835 = vmatpush.bf16.msra.mxu0 %v1822
    %1836 = vmatpush.bf16.msra.mxu0 %v1821
    %1837 = vmatpush.bf16.msra.mxu0 %v1820
    %1838 = vmatpush.bf16.msra.mxu0 %v1819
    %1839 = vmatpush.bf16.msra.mxu0 %v1818
    %1840 = vmatpush.bf16.msra.mxu0 %v1817
    %1841 = vmatmul.bf16.gmra.mxu0 %v1769
    %v1842 = vpop.f32.mrf.mxu0
    %v1843 = vadd.f32 %v1783, %v1842
    %v1844 = vpop.f32.mrf.mxu0
    %v1845 = vadd.f32 %v1783, %v1844
    %1846 = vmatmul.bf16.gmra.mxu0 %v1770
    %v1847 = vpop.f32.mrf.mxu0
    %v1848 = vadd.f32 %v1783, %v1847
    %v1849 = vpop.f32.mrf.mxu0
    %v1850 = vadd.f32 %v1783, %v1849
    %1851 = vmatmul.bf16.gmra.mxu0 %v1771
    %v1852 = vpop.f32.mrf.mxu0
    %v1853 = vadd.f32 %v1783, %v1852
    %v1854 = vpop.f32.mrf.mxu0
    %v1855 = vadd.f32 %v1783, %v1854
    %1856 = vmatmul.bf16.gmra.mxu0 %v1772
    %v1857 = vpop.f32.mrf.mxu0
    %v1858 = vadd.f32 %v1783, %v1857
    %v1859 = vpop.f32.mrf.mxu0
    %v1860 = vadd.f32 %v1783, %v1859
    %1861 = vmatmul.bf16.gmra.mxu0 %v1773
    %v1862 = vpop.f32.mrf.mxu0
    %v1863 = vadd.f32 %v1783, %v1862
    %v1864 = vpop.f32.mrf.mxu0
    %v1865 = vadd.f32 %v1783, %v1864
    %1866 = vmatmul.bf16.gmra.mxu0 %v1774
    %v1867 = vpop.f32.mrf.mxu0
    %v1868 = vadd.f32 %v1783, %v1867
    %v1869 = vpop.f32.mrf.mxu0
    %v1870 = vadd.f32 %v1783, %v1869
    %1871 = vmatmul.bf16.gmra.mxu0 %v1775
    %v1872 = vpop.f32.mrf.mxu0
    %v1873 = vadd.f32 %v1783, %v1872
    %v1874 = vpop.f32.mrf.mxu0
    %v1875 = vadd.f32 %v1783, %v1874
    %1876 = vmatmul.bf16.gmra.mxu0 %v1776
    %v1877 = vpop.f32.mrf.mxu0
    %v1878 = vadd.f32 %v1783, %v1877
    %v1879 = vpop.f32.mrf.mxu0
    %v1880 = vadd.f32 %v1783, %v1879
    %1881 = vmatmul.bf16.gmra.mxu0 %v1777
    %v1882 = vpop.f32.mrf.mxu0
    %v1883 = vadd.f32 %v1783, %v1882
    %v1884 = vpop.f32.mrf.mxu0
    %v1885 = vadd.f32 %v1783, %v1884
    %1886 = vmatmul.bf16.gmra.mxu0 %v1778
    %v1887 = vpop.f32.mrf.mxu0
    %v1888 = vadd.f32 %v1783, %v1887
    %v1889 = vpop.f32.mrf.mxu0
    %v1890 = vadd.f32 %v1783, %v1889
    %1891 = vmatmul.bf16.gmra.mxu0 %v1779
    %v1892 = vpop.f32.mrf.mxu0
    %v1893 = vadd.f32 %v1783, %v1892
    %v1894 = vpop.f32.mrf.mxu0
    %v1895 = vadd.f32 %v1783, %v1894
    %1896 = vmatmul.bf16.gmra.mxu0 %v1780
    %v1897 = vpop.f32.mrf.mxu0
    %v1898 = vadd.f32 %v1783, %v1897
    %v1899 = vpop.f32.mrf.mxu0
    %v1900 = vadd.f32 %v1783, %v1899
    %1901 = vmatmul.bf16.gmra.mxu0 %v1781
    %v1902 = vpop.f32.mrf.mxu0
    %v1903 = vadd.f32 %v1783, %v1902
    %v1904 = vpop.f32.mrf.mxu0
    %1905 = vdwg.mxu0
    %v1906 = vmax.f32 %v1843, 0.0
    %v1907 = vmax.f32 %v1845, 0.0
    %v1908 = vmax.f32 %v1848, 0.0
    %v1909 = vmax.f32 %v1850, 0.0
    %v1910 = vmax.f32 %v1853, 0.0
    %v1911 = vmax.f32 %v1855, 0.0
    %v1912 = vmax.f32 %v1858, 0.0
    %v1913 = vmax.f32 %v1860, 0.0
    %v1914 = vmax.f32 %v1863, 0.0
    %v1915 = vmax.f32 %v1865, 0.0
    %v1916 = vmax.f32 %v1868, 0.0
    %v1917 = vmax.f32 %v1870, 0.0
    %v1918 = vmax.f32 %v1873, 0.0
    %v1919 = vmax.f32 %v1875, 0.0
    %v1920 = vmax.f32 %v1878, 0.0
    %v1921 = vmax.f32 %v1880, 0.0
    %v1922 = vmax.f32 %v1883, 0.0
    %v1923 = vmax.f32 %v1885, 0.0
    %v1924 = vmax.f32 %v1888, 0.0
    %v1925 = vmax.f32 %v1890, 0.0
    %v1926 = vmax.f32 %v1893, 0.0
    %v1927 = vmax.f32 %v1895, 0.0
    %v1928 = vmax.f32 %v1898, 0.0
    %v1929 = vmax.f32 %v1900, 0.0
    %v1930 = vmax.f32 %v1903, 0.0
    %s1931 = scalar_lea.vmem [#allocation5], 512
    %v1932 = vld [vmem:[%s1931] sm:$0xf]
    %v1933 = vld [vmem:[%s1931 + $0x4] sm:$0xf]
    %v1934 = vld [vmem:[%s1931 + $0x8] sm:$0xf]
    %v1935 = vld [vmem:[%s1931 + $0xc] sm:$0xf]
    %v1936 = vld [vmem:[%s1931 + $0x10] sm:$0xf]
    %v1937 = vld [vmem:[%s1931 + $0x14] sm:$0xf]
    %v1938 = vld [vmem:[%s1931 + $0x18] sm:$0xf]
    %v1939 = vld [vmem:[%s1931 + $0x1c] sm:$0xf]
    %v1940 = vld [vmem:[%s1931 + $0x20] sm:$0xf]
    %v1941 = vld [vmem:[%s1931 + $0x24] sm:$0xf]
    %v1942 = vld [vmem:[%s1931 + $0x28] sm:$0xf]
    %v1943 = vld [vmem:[%s1931 + $0x2c] sm:$0xf]
    %v1944 = vld [vmem:[%s1931 + $0x30] sm:$0xf]
    %v1945 = vld [vmem:[%s1931 + $0x34] sm:$0xf]
    %v1946 = vld [vmem:[%s1931 + $0x38] sm:$0xf]
    %v1947 = vld [vmem:[%s1931 + $0x3c] sm:$0xf]
    %s1948 = scalar_lea.vmem [#allocation7], 8
    %v1949 = vld [vmem:[%s1948] sm:$0x1]
    %v1950 = vpack.c.bf16 %v1907, %v1906
    %v1951 = vpack.c.bf16 %v1909, %v1908
    %v1952 = vpack.c.bf16 %v1911, %v1910
    %v1953 = vpack.c.bf16 %v1913, %v1912
    %v1954 = vpack.c.bf16 %v1915, %v1914
    %v1955 = vpack.c.bf16 %v1917, %v1916
    %v1956 = vpack.c.bf16 %v1919, %v1918
    %v1957 = vpack.c.bf16 %v1921, %v1920
    %v1958 = vpack.c.bf16 %v1923, %v1922
    %v1959 = vpack.c.bf16 %v1925, %v1924
    %v1960 = vpack.c.bf16 %v1927, %v1926
    %v1961 = vpack.c.bf16 %v1929, %v1928
    %v1962 = vpack.c.bf16 %v1930, %v1930
    %v1964 = vperm.slane %v1949, 0
    %v1982 = vunpack.c.l.b16 %v1932
    %v1983 = vunpack.c.l.b16 %v1933
    %v1984 = vunpack.c.l.b16 %v1934
    %v1985 = vunpack.c.l.b16 %v1935
    %v1986 = vunpack.c.l.b16 %v1936
    %v1987 = vunpack.c.l.b16 %v1937
    %v1988 = vunpack.c.l.b16 %v1938
    %v1989 = vunpack.c.l.b16 %v1939
    %v1990 = vunpack.c.l.b16 %v1940
    %v1991 = vunpack.c.l.b16 %v1941
    %v1992 = vunpack.c.l.b16 %v1942
    %v1993 = vunpack.c.l.b16 %v1943
    %v1994 = vunpack.c.l.b16 %v1944
    %v1995 = vunpack.c.l.b16 %v1945
    %v1996 = vunpack.c.l.b16 %v1946
    %v1997 = vunpack.c.l.b16 %v1947
    %v1998 = vpack.c.b16 %v1983, %v1982
    %v1999 = vpack.c.b16 %v1985, %v1984
    %v2000 = vpack.c.b16 %v1987, %v1986
    %v2001 = vpack.c.b16 %v1989, %v1988
    %v2002 = vpack.c.b16 %v1991, %v1990
    %v2003 = vpack.c.b16 %v1993, %v1992
    %v2004 = vpack.c.b16 %v1995, %v1994
    %v2005 = vpack.c.b16 %v1997, %v1996
    %2014 = vmatpush.bf16.msra.mxu0 %v2005
    %2015 = vmatpush.bf16.msra.mxu0 %v2004
    %2016 = vmatpush.bf16.msra.mxu0 %v2003
    %2017 = vmatpush.bf16.msra.mxu0 %v2002
    %2018 = vmatpush.bf16.msra.mxu0 %v2001
    %2019 = vmatpush.bf16.msra.mxu0 %v2000
    %2020 = vmatpush.bf16.msra.mxu0 %v1999
    %2021 = vmatpush.bf16.msra.mxu0 %v1998
    %2022 = vmatmul.bf16.gmra.mxu0 %v1950
    %v2023 = vpop.f32.mrf.mxu0
    %v2024 = vadd.f32 %v1964, %v2023
    %v2025 = vpop.f32.mrf.mxu0
    %v2026 = vadd.f32 %v1964, %v2025
    %2027 = vmatmul.bf16.gmra.mxu0 %v1951
    %v2028 = vpop.f32.mrf.mxu0
    %v2029 = vadd.f32 %v1964, %v2028
    %v2030 = vpop.f32.mrf.mxu0
    %v2031 = vadd.f32 %v1964, %v2030
    %2032 = vmatmul.bf16.gmra.mxu0 %v1952
    %v2033 = vpop.f32.mrf.mxu0
    %v2034 = vadd.f32 %v1964, %v2033
    %v2035 = vpop.f32.mrf.mxu0
    %v2036 = vadd.f32 %v1964, %v2035
    %2037 = vmatmul.bf16.gmra.mxu0 %v1953
    %v2038 = vpop.f32.mrf.mxu0
    %v2039 = vadd.f32 %v1964, %v2038
    %v2040 = vpop.f32.mrf.mxu0
    %v2041 = vadd.f32 %v1964, %v2040
    %2042 = vmatmul.bf16.gmra.mxu0 %v1954
    %v2043 = vpop.f32.mrf.mxu0
    %v2044 = vadd.f32 %v1964, %v2043
    %v2045 = vpop.f32.mrf.mxu0
    %v2046 = vadd.f32 %v1964, %v2045
    %2047 = vmatmul.bf16.gmra.mxu0 %v1955
    %v2048 = vpop.f32.mrf.mxu0
    %v2049 = vadd.f32 %v1964, %v2048
    %v2050 = vpop.f32.mrf.mxu0
    %v2051 = vadd.f32 %v1964, %v2050
    %2052 = vmatmul.bf16.gmra.mxu0 %v1956
    %v2053 = vpop.f32.mrf.mxu0
    %v2054 = vadd.f32 %v1964, %v2053
    %v2055 = vpop.f32.mrf.mxu0
    %v2056 = vadd.f32 %v1964, %v2055
    %2057 = vmatmul.bf16.gmra.mxu0 %v1957
    %v2058 = vpop.f32.mrf.mxu0
    %v2059 = vadd.f32 %v1964, %v2058
    %v2060 = vpop.f32.mrf.mxu0
    %v2061 = vadd.f32 %v1964, %v2060
    %2062 = vmatmul.bf16.gmra.mxu0 %v1958
    %v2063 = vpop.f32.mrf.mxu0
    %v2064 = vadd.f32 %v1964, %v2063
    %v2065 = vpop.f32.mrf.mxu0
    %v2066 = vadd.f32 %v1964, %v2065
    %2067 = vmatmul.bf16.gmra.mxu0 %v1959
    %v2068 = vpop.f32.mrf.mxu0
    %v2069 = vadd.f32 %v1964, %v2068
    %v2070 = vpop.f32.mrf.mxu0
    %v2071 = vadd.f32 %v1964, %v2070
    %2072 = vmatmul.bf16.gmra.mxu0 %v1960
    %v2073 = vpop.f32.mrf.mxu0
    %v2074 = vadd.f32 %v1964, %v2073
    %v2075 = vpop.f32.mrf.mxu0
    %v2076 = vadd.f32 %v1964, %v2075
    %2077 = vmatmul.bf16.gmra.mxu0 %v1961
    %v2078 = vpop.f32.mrf.mxu0
    %v2079 = vadd.f32 %v1964, %v2078
    %v2080 = vpop.f32.mrf.mxu0
    %v2081 = vadd.f32 %v1964, %v2080
    %2082 = vmatmul.bf16.gmra.mxu0 %v1962
    %v2083 = vpop.f32.mrf.mxu0
    %v2084 = vadd.f32 %v1964, %v2083
    %v2085 = vpop.f32.mrf.mxu0
    %2086 = vdwg.mxu0
    %v2087 = vmax.f32 %v2024, 0.0
    %v2088 = vmax.f32 %v2026, 0.0
    %v2089 = vmax.f32 %v2029, 0.0
    %v2090 = vmax.f32 %v2031, 0.0
    %v2091 = vmax.f32 %v2034, 0.0
    %v2092 = vmax.f32 %v2036, 0.0
    %v2093 = vmax.f32 %v2039, 0.0
    %v2094 = vmax.f32 %v2041, 0.0
    %v2095 = vmax.f32 %v2044, 0.0
    %v2096 = vmax.f32 %v2046, 0.0
    %v2097 = vmax.f32 %v2049, 0.0
    %v2098 = vmax.f32 %v2051, 0.0
    %v2099 = vmax.f32 %v2054, 0.0
    %v2100 = vmax.f32 %v2056, 0.0
    %v2101 = vmax.f32 %v2059, 0.0
    %v2102 = vmax.f32 %v2061, 0.0
    %v2103 = vmax.f32 %v2064, 0.0
    %v2104 = vmax.f32 %v2066, 0.0
    %v2105 = vmax.f32 %v2069, 0.0
    %v2106 = vmax.f32 %v2071, 0.0
    %v2107 = vmax.f32 %v2074, 0.0
    %v2108 = vmax.f32 %v2076, 0.0
    %v2109 = vmax.f32 %v2079, 0.0
    %v2110 = vmax.f32 %v2081, 0.0
    %v2111 = vmax.f32 %v2084, 0.0
    %s2112 = scalar_lea.vmem [#allocation5], 576
    %v2113 = vld [vmem:[%s2112] sm:$0xf]
    %v2114 = vld [vmem:[%s2112 + $0x4] sm:$0xf]
    %v2115 = vld [vmem:[%s2112 + $0x8] sm:$0xf]
    %v2116 = vld [vmem:[%s2112 + $0xc] sm:$0xf]
    %v2117 = vld [vmem:[%s2112 + $0x10] sm:$0xf]
    %v2118 = vld [vmem:[%s2112 + $0x14] sm:$0xf]
    %v2119 = vld [vmem:[%s2112 + $0x18] sm:$0xf]
    %v2120 = vld [vmem:[%s2112 + $0x1c] sm:$0xf]
    %v2121 = vld [vmem:[%s2112 + $0x20] sm:$0xf]
    %v2122 = vld [vmem:[%s2112 + $0x24] sm:$0xf]
    %v2123 = vld [vmem:[%s2112 + $0x28] sm:$0xf]
    %v2124 = vld [vmem:[%s2112 + $0x2c] sm:$0xf]
    %v2125 = vld [vmem:[%s2112 + $0x30] sm:$0xf]
    %v2126 = vld [vmem:[%s2112 + $0x34] sm:$0xf]
    %v2127 = vld [vmem:[%s2112 + $0x38] sm:$0xf]
    %v2128 = vld [vmem:[%s2112 + $0x3c] sm:$0xf]
    %s2129 = scalar_lea.vmem [#allocation7], 9
    %v2130 = vld [vmem:[%s2129] sm:$0x1]
    %v2131 = vpack.c.bf16 %v2088, %v2087
    %v2132 = vpack.c.bf16 %v2090, %v2089
    %v2133 = vpack.c.bf16 %v2092, %v2091
    %v2134 = vpack.c.bf16 %v2094, %v2093
    %v2135 = vpack.c.bf16 %v2096, %v2095
    %v2136 = vpack.c.bf16 %v2098, %v2097
    %v2137 = vpack.c.bf16 %v2100, %v2099
    %v2138 = vpack.c.bf16 %v2102, %v2101
    %v2139 = vpack.c.bf16 %v2104, %v2103
    %v2140 = vpack.c.bf16 %v2106, %v2105
    %v2141 = vpack.c.bf16 %v2108, %v2107
    %v2142 = vpack.c.bf16 %v2110, %v2109
    %v2143 = vpack.c.bf16 %v2111, %v2111
    %v2145 = vperm.slane %v2130, 0
    %v2163 = vunpack.c.l.b16 %v2113
    %v2164 = vunpack.c.l.b16 %v2114
    %v2165 = vunpack.c.l.b16 %v2115
    %v2166 = vunpack.c.l.b16 %v2116
    %v2167 = vunpack.c.l.b16 %v2117
    %v2168 = vunpack.c.l.b16 %v2118
    %v2169 = vunpack.c.l.b16 %v2119
    %v2170 = vunpack.c.l.b16 %v2120
    %v2171 = vunpack.c.l.b16 %v2121
    %v2172 = vunpack.c.l.b16 %v2122
    %v2173 = vunpack.c.l.b16 %v2123
    %v2174 = vunpack.c.l.b16 %v2124
    %v2175 = vunpack.c.l.b16 %v2125
    %v2176 = vunpack.c.l.b16 %v2126
    %v2177 = vunpack.c.l.b16 %v2127
    %v2178 = vunpack.c.l.b16 %v2128
    %v2179 = vpack.c.b16 %v2164, %v2163
    %v2180 = vpack.c.b16 %v2166, %v2165
    %v2181 = vpack.c.b16 %v2168, %v2167
    %v2182 = vpack.c.b16 %v2170, %v2169
    %v2183 = vpack.c.b16 %v2172, %v2171
    %v2184 = vpack.c.b16 %v2174, %v2173
    %v2185 = vpack.c.b16 %v2176, %v2175
    %v2186 = vpack.c.b16 %v2178, %v2177
    %2195 = vmatpush.bf16.msra.mxu0 %v2186
    %2196 = vmatpush.bf16.msra.mxu0 %v2185
    %2197 = vmatpush.bf16.msra.mxu0 %v2184
    %2198 = vmatpush.bf16.msra.mxu0 %v2183
    %2199 = vmatpush.bf16.msra.mxu0 %v2182
    %2200 = vmatpush.bf16.msra.mxu0 %v2181
    %2201 = vmatpush.bf16.msra.mxu0 %v2180
    %2202 = vmatpush.bf16.msra.mxu0 %v2179
    %2203 = vmatmul.bf16.gmra.mxu0 %v2131
    %v2204 = vpop.f32.mrf.mxu0
    %v2205 = vadd.f32 %v2145, %v2204
    %v2206 = vpop.f32.mrf.mxu0
    %v2207 = vadd.f32 %v2145, %v2206
    %2208 = vmatmul.bf16.gmra.mxu0 %v2132
    %v2209 = vpop.f32.mrf.mxu0
    %v2210 = vadd.f32 %v2145, %v2209
    %v2211 = vpop.f32.mrf.mxu0
    %v2212 = vadd.f32 %v2145, %v2211
    %2213 = vmatmul.bf16.gmra.mxu0 %v2133
    %v2214 = vpop.f32.mrf.mxu0
    %v2215 = vadd.f32 %v2145, %v2214
    %v2216 = vpop.f32.mrf.mxu0
    %v2217 = vadd.f32 %v2145, %v2216
    %2218 = vmatmul.bf16.gmra.mxu0 %v2134
    %v2219 = vpop.f32.mrf.mxu0
    %v2220 = vadd.f32 %v2145, %v2219
    %v2221 = vpop.f32.mrf.mxu0
    %v2222 = vadd.f32 %v2145, %v2221
    %2223 = vmatmul.bf16.gmra.mxu0 %v2135
    %v2224 = vpop.f32.mrf.mxu0
    %v2225 = vadd.f32 %v2145, %v2224
    %v2226 = vpop.f32.mrf.mxu0
    %v2227 = vadd.f32 %v2145, %v2226
    %2228 = vmatmul.bf16.gmra.mxu0 %v2136
    %v2229 = vpop.f32.mrf.mxu0
    %v2230 = vadd.f32 %v2145, %v2229
    %v2231 = vpop.f32.mrf.mxu0
    %v2232 = vadd.f32 %v2145, %v2231
    %2233 = vmatmul.bf16.gmra.mxu0 %v2137
    %v2234 = vpop.f32.mrf.mxu0
    %v2235 = vadd.f32 %v2145, %v2234
    %v2236 = vpop.f32.mrf.mxu0
    %v2237 = vadd.f32 %v2145, %v2236
    %2238 = vmatmul.bf16.gmra.mxu0 %v2138
    %v2239 = vpop.f32.mrf.mxu0
    %v2240 = vadd.f32 %v2145, %v2239
    %v2241 = vpop.f32.mrf.mxu0
    %v2242 = vadd.f32 %v2145, %v2241
    %2243 = vmatmul.bf16.gmra.mxu0 %v2139
    %v2244 = vpop.f32.mrf.mxu0
    %v2245 = vadd.f32 %v2145, %v2244
    %v2246 = vpop.f32.mrf.mxu0
    %v2247 = vadd.f32 %v2145, %v2246
    %2248 = vmatmul.bf16.gmra.mxu0 %v2140
    %v2249 = vpop.f32.mrf.mxu0
    %v2250 = vadd.f32 %v2145, %v2249
    %v2251 = vpop.f32.mrf.mxu0
    %v2252 = vadd.f32 %v2145, %v2251
    %2253 = vmatmul.bf16.gmra.mxu0 %v2141
    %v2254 = vpop.f32.mrf.mxu0
    %v2255 = vadd.f32 %v2145, %v2254
    %v2256 = vpop.f32.mrf.mxu0
    %v2257 = vadd.f32 %v2145, %v2256
    %2258 = vmatmul.bf16.gmra.mxu0 %v2142
    %v2259 = vpop.f32.mrf.mxu0
    %v2260 = vadd.f32 %v2145, %v2259
    %v2261 = vpop.f32.mrf.mxu0
    %v2262 = vadd.f32 %v2145, %v2261
    %2263 = vmatmul.bf16.gmra.mxu0 %v2143
    %v2264 = vpop.f32.mrf.mxu0
    %v2265 = vadd.f32 %v2145, %v2264
    %v2266 = vpop.f32.mrf.mxu0
    %2267 = vdwg.mxu0
    %v2268 = vmax.f32 %v2205, 0.0
    %v2269 = vmax.f32 %v2207, 0.0
    %v2270 = vmax.f32 %v2210, 0.0
    %v2271 = vmax.f32 %v2212, 0.0
    %v2272 = vmax.f32 %v2215, 0.0
    %v2273 = vmax.f32 %v2217, 0.0
    %v2274 = vmax.f32 %v2220, 0.0
    %v2275 = vmax.f32 %v2222, 0.0
    %v2276 = vmax.f32 %v2225, 0.0
    %v2277 = vmax.f32 %v2227, 0.0
    %v2278 = vmax.f32 %v2230, 0.0
    %v2279 = vmax.f32 %v2232, 0.0
    %v2280 = vmax.f32 %v2235, 0.0
    %v2281 = vmax.f32 %v2237, 0.0
    %v2282 = vmax.f32 %v2240, 0.0
    %v2283 = vmax.f32 %v2242, 0.0
    %v2284 = vmax.f32 %v2245, 0.0
    %v2285 = vmax.f32 %v2247, 0.0
    %v2286 = vmax.f32 %v2250, 0.0
    %v2287 = vmax.f32 %v2252, 0.0
    %v2288 = vmax.f32 %v2255, 0.0
    %v2289 = vmax.f32 %v2257, 0.0
    %v2290 = vmax.f32 %v2260, 0.0
    %v2291 = vmax.f32 %v2262, 0.0
    %v2292 = vmax.f32 %v2265, 0.0
    %s2293 = scalar_lea.vmem [#allocation8], 128
    %v2294 = vld [vmem:[%s2293] sm:$0xff]
    %v2295 = vld [vmem:[%s2293 + $0x8] sm:$0xff]
    %v2296 = vld [vmem:[%s2293 + $0x10] sm:$0xff]
    %v2297 = vld [vmem:[%s2293 + $0x18] sm:$0xff]
    %v2298 = vld [vmem:[%s2293 + $0x20] sm:$0xff]
    %v2299 = vld [vmem:[%s2293 + $0x28] sm:$0xff]
    %v2300 = vld [vmem:[%s2293 + $0x30] sm:$0xff]
    %v2301 = vld [vmem:[%s2293 + $0x38] sm:$0xff]
    %v2302 = vld [vmem:[%s2293 + $0x40] sm:$0xff]
    %v2303 = vld [vmem:[%s2293 + $0x48] sm:$0xff]
    %v2304 = vld [vmem:[%s2293 + $0x50] sm:$0xff]
    %v2305 = vld [vmem:[%s2293 + $0x58] sm:$0xff]
    %v2306 = vld [vmem:[%s2293 + $0x60] sm:$0xff]
    %v2307 = vld [vmem:[%s2293 + $0x68] sm:$0xff]
    %v2308 = vld [vmem:[%s2293 + $0x70] sm:$0xff]
    %v2309 = vld [vmem:[%s2293 + $0x78] sm:$0xff]
    %s2310 = scalar_lea.vmem [#allocation10], 2
    %v2311 = vld [vmem:[%s2310] sm:$0x3]
    %v2312 = vpack.c.bf16 %v2269, %v2268
    %v2313 = vpack.c.bf16 %v2271, %v2270
    %v2314 = vpack.c.bf16 %v2273, %v2272
    %v2315 = vpack.c.bf16 %v2275, %v2274
    %v2316 = vpack.c.bf16 %v2277, %v2276
    %v2317 = vpack.c.bf16 %v2279, %v2278
    %v2318 = vpack.c.bf16 %v2281, %v2280
    %v2319 = vpack.c.bf16 %v2283, %v2282
    %v2320 = vpack.c.bf16 %v2285, %v2284
    %v2321 = vpack.c.bf16 %v2287, %v2286
    %v2322 = vpack.c.bf16 %v2289, %v2288
    %v2323 = vpack.c.bf16 %v2291, %v2290
    %v2324 = vpack.c.bf16 %v2292, %v2292
    %v2326 = vperm.slane %v2311, 1
    %v2344 = vunpack.c.h.b16 %v2294
    %v2345 = vunpack.c.h.b16 %v2295
    %v2346 = vunpack.c.h.b16 %v2296
    %v2347 = vunpack.c.h.b16 %v2297
    %v2348 = vunpack.c.h.b16 %v2298
    %v2349 = vunpack.c.h.b16 %v2299
    %v2350 = vunpack.c.h.b16 %v2300
    %v2351 = vunpack.c.h.b16 %v2301
    %v2352 = vunpack.c.h.b16 %v2302
    %v2353 = vunpack.c.h.b16 %v2303
    %v2354 = vunpack.c.h.b16 %v2304
    %v2355 = vunpack.c.h.b16 %v2305
    %v2356 = vunpack.c.h.b16 %v2306
    %v2357 = vunpack.c.h.b16 %v2307
    %v2358 = vunpack.c.h.b16 %v2308
    %v2359 = vunpack.c.h.b16 %v2309
    %v2360 = vpack.c.b16 %v2345, %v2344
    %v2361 = vpack.c.b16 %v2347, %v2346
    %v2362 = vpack.c.b16 %v2349, %v2348
    %v2363 = vpack.c.b16 %v2351, %v2350
    %v2364 = vpack.c.b16 %v2353, %v2352
    %v2365 = vpack.c.b16 %v2355, %v2354
    %v2366 = vpack.c.b16 %v2357, %v2356
    %v2367 = vpack.c.b16 %v2359, %v2358
    %2376 = vmatpush.bf16.msra.mxu0 %v2367
    %2377 = vmatpush.bf16.msra.mxu0 %v2366
    %2378 = vmatpush.bf16.msra.mxu0 %v2365
    %2379 = vmatpush.bf16.msra.mxu0 %v2364
    %2380 = vmatpush.bf16.msra.mxu0 %v2363
    %2381 = vmatpush.bf16.msra.mxu0 %v2362
    %2382 = vmatpush.bf16.msra.mxu0 %v2361
    %2383 = vmatpush.bf16.msra.mxu0 %v2360
    %2384 = vmatmul.bf16.gmra.mxu0 %v2312
    %v2385 = vpop.f32.mrf.mxu0
    %v2386 = vadd.f32 %v2326, %v2385
    %v2387 = vpop.f32.mrf.mxu0
    %v2388 = vadd.f32 %v2326, %v2387
    %2389 = vmatmul.bf16.gmra.mxu0 %v2313
    %v2390 = vpop.f32.mrf.mxu0
    %v2391 = vadd.f32 %v2326, %v2390
    %v2392 = vpop.f32.mrf.mxu0
    %v2393 = vadd.f32 %v2326, %v2392
    %2394 = vmatmul.bf16.gmra.mxu0 %v2314
    %v2395 = vpop.f32.mrf.mxu0
    %v2396 = vadd.f32 %v2326, %v2395
    %v2397 = vpop.f32.mrf.mxu0
    %v2398 = vadd.f32 %v2326, %v2397
    %2399 = vmatmul.bf16.gmra.mxu0 %v2315
    %v2400 = vpop.f32.mrf.mxu0
    %v2401 = vadd.f32 %v2326, %v2400
    %v2402 = vpop.f32.mrf.mxu0
    %v2403 = vadd.f32 %v2326, %v2402
    %2404 = vmatmul.bf16.gmra.mxu0 %v2316
    %v2405 = vpop.f32.mrf.mxu0
    %v2406 = vadd.f32 %v2326, %v2405
    %v2407 = vpop.f32.mrf.mxu0
    %v2408 = vadd.f32 %v2326, %v2407
    %2409 = vmatmul.bf16.gmra.mxu0 %v2317
    %v2410 = vpop.f32.mrf.mxu0
    %v2411 = vadd.f32 %v2326, %v2410
    %v2412 = vpop.f32.mrf.mxu0
    %v2413 = vadd.f32 %v2326, %v2412
    %2414 = vmatmul.bf16.gmra.mxu0 %v2318
    %v2415 = vpop.f32.mrf.mxu0
    %v2416 = vadd.f32 %v2326, %v2415
    %v2417 = vpop.f32.mrf.mxu0
    %v2418 = vadd.f32 %v2326, %v2417
    %2419 = vmatmul.bf16.gmra.mxu0 %v2319
    %v2420 = vpop.f32.mrf.mxu0
    %v2421 = vadd.f32 %v2326, %v2420
    %v2422 = vpop.f32.mrf.mxu0
    %v2423 = vadd.f32 %v2326, %v2422
    %2424 = vmatmul.bf16.gmra.mxu0 %v2320
    %v2425 = vpop.f32.mrf.mxu0
    %v2426 = vadd.f32 %v2326, %v2425
    %v2427 = vpop.f32.mrf.mxu0
    %v2428 = vadd.f32 %v2326, %v2427
    %2429 = vmatmul.bf16.gmra.mxu0 %v2321
    %v2430 = vpop.f32.mrf.mxu0
    %v2431 = vadd.f32 %v2326, %v2430
    %v2432 = vpop.f32.mrf.mxu0
    %v2433 = vadd.f32 %v2326, %v2432
    %2434 = vmatmul.bf16.gmra.mxu0 %v2322
    %v2435 = vpop.f32.mrf.mxu0
    %v2436 = vadd.f32 %v2326, %v2435
    %v2437 = vpop.f32.mrf.mxu0
    %v2438 = vadd.f32 %v2326, %v2437
    %2439 = vmatmul.bf16.gmra.mxu0 %v2323
    %v2440 = vpop.f32.mrf.mxu0
    %v2441 = vadd.f32 %v2326, %v2440
    %v2442 = vpop.f32.mrf.mxu0
    %v2443 = vadd.f32 %v2326, %v2442
    %2444 = vmatmul.bf16.gmra.mxu0 %v2324
    %v2445 = vpop.f32.mrf.mxu0
    %v2446 = vadd.f32 %v2326, %v2445
    %v2447 = vpop.f32.mrf.mxu0
    %2448 = vdwg.mxu0
    %v2449 = vmax.f32 %v2386, 0.0
    %v2450 = vmax.f32 %v2388, 0.0
    %v2451 = vmax.f32 %v2391, 0.0
    %v2452 = vmax.f32 %v2393, 0.0
    %v2453 = vmax.f32 %v2396, 0.0
    %v2454 = vmax.f32 %v2398, 0.0
    %v2455 = vmax.f32 %v2401, 0.0
    %v2456 = vmax.f32 %v2403, 0.0
    %v2457 = vmax.f32 %v2406, 0.0
    %v2458 = vmax.f32 %v2408, 0.0
    %v2459 = vmax.f32 %v2411, 0.0
    %v2460 = vmax.f32 %v2413, 0.0
    %v2461 = vmax.f32 %v2416, 0.0
    %v2462 = vmax.f32 %v2418, 0.0
    %v2463 = vmax.f32 %v2421, 0.0
    %v2464 = vmax.f32 %v2423, 0.0
    %v2465 = vmax.f32 %v2426, 0.0
    %v2466 = vmax.f32 %v2428, 0.0
    %v2467 = vmax.f32 %v2431, 0.0
    %v2468 = vmax.f32 %v2433, 0.0
    %v2469 = vmax.f32 %v2436, 0.0
    %v2470 = vmax.f32 %v2438, 0.0
    %v2471 = vmax.f32 %v2441, 0.0
    %v2472 = vmax.f32 %v2443, 0.0
    %v2473 = vmax.f32 %v2446, 0.0
    %s2474 = scalar_lea.vmem [#allocation5], 768
    %v2475 = vld [vmem:[%s2474] sm:$0xf]
    %v2476 = vld [vmem:[%s2474 + $0x4] sm:$0xf]
    %v2477 = vld [vmem:[%s2474 + $0x8] sm:$0xf]
    %v2478 = vld [vmem:[%s2474 + $0xc] sm:$0xf]
    %v2479 = vld [vmem:[%s2474 + $0x10] sm:$0xf]
    %v2480 = vld [vmem:[%s2474 + $0x14] sm:$0xf]
    %v2481 = vld [vmem:[%s2474 + $0x18] sm:$0xf]
    %v2482 = vld [vmem:[%s2474 + $0x1c] sm:$0xf]
    %v2483 = vld [vmem:[%s2474 + $0x20] sm:$0xf]
    %v2484 = vld [vmem:[%s2474 + $0x24] sm:$0xf]
    %v2485 = vld [vmem:[%s2474 + $0x28] sm:$0xf]
    %v2486 = vld [vmem:[%s2474 + $0x2c] sm:$0xf]
    %v2487 = vld [vmem:[%s2474 + $0x30] sm:$0xf]
    %v2488 = vld [vmem:[%s2474 + $0x34] sm:$0xf]
    %v2489 = vld [vmem:[%s2474 + $0x38] sm:$0xf]
    %v2490 = vld [vmem:[%s2474 + $0x3c] sm:$0xf]
    %s2491 = scalar_lea.vmem [#allocation7], 12
    %v2492 = vld [vmem:[%s2491] sm:$0x1]
    %v2493 = vpack.c.bf16 %v2450, %v2449
    %v2494 = vpack.c.bf16 %v2452, %v2451
    %v2495 = vpack.c.bf16 %v2454, %v2453
    %v2496 = vpack.c.bf16 %v2456, %v2455
    %v2497 = vpack.c.bf16 %v2458, %v2457
    %v2498 = vpack.c.bf16 %v2460, %v2459
    %v2499 = vpack.c.bf16 %v2462, %v2461
    %v2500 = vpack.c.bf16 %v2464, %v2463
    %v2501 = vpack.c.bf16 %v2466, %v2465
    %v2502 = vpack.c.bf16 %v2468, %v2467
    %v2503 = vpack.c.bf16 %v2470, %v2469
    %v2504 = vpack.c.bf16 %v2472, %v2471
    %v2505 = vpack.c.bf16 %v2473, %v2473
    %v2507 = vperm.slane %v2492, 0
    %v2525 = vunpack.c.l.b16 %v2475
    %v2526 = vunpack.c.l.b16 %v2476
    %v2527 = vunpack.c.l.b16 %v2477
    %v2528 = vunpack.c.l.b16 %v2478
    %v2529 = vunpack.c.l.b16 %v2479
    %v2530 = vunpack.c.l.b16 %v2480
    %v2531 = vunpack.c.l.b16 %v2481
    %v2532 = vunpack.c.l.b16 %v2482
    %v2533 = vunpack.c.l.b16 %v2483
    %v2534 = vunpack.c.l.b16 %v2484
    %v2535 = vunpack.c.l.b16 %v2485
    %v2536 = vunpack.c.l.b16 %v2486
    %v2537 = vunpack.c.l.b16 %v2487
    %v2538 = vunpack.c.l.b16 %v2488
    %v2539 = vunpack.c.l.b16 %v2489
    %v2540 = vunpack.c.l.b16 %v2490
    %v2541 = vpack.c.b16 %v2526, %v2525
    %v2542 = vpack.c.b16 %v2528, %v2527
    %v2543 = vpack.c.b16 %v2530, %v2529
    %v2544 = vpack.c.b16 %v2532, %v2531
    %v2545 = vpack.c.b16 %v2534, %v2533
    %v2546 = vpack.c.b16 %v2536, %v2535
    %v2547 = vpack.c.b16 %v2538, %v2537
    %v2548 = vpack.c.b16 %v2540, %v2539
    %2557 = vmatpush.bf16.msra.mxu0 %v2548
    %2558 = vmatpush.bf16.msra.mxu0 %v2547
    %2559 = vmatpush.bf16.msra.mxu0 %v2546
    %2560 = vmatpush.bf16.msra.mxu0 %v2545
    %2561 = vmatpush.bf16.msra.mxu0 %v2544
    %2562 = vmatpush.bf16.msra.mxu0 %v2543
    %2563 = vmatpush.bf16.msra.mxu0 %v2542
    %2564 = vmatpush.bf16.msra.mxu0 %v2541
    %2565 = vmatmul.bf16.gmra.mxu0 %v2493
    %v2566 = vpop.f32.mrf.mxu0
    %v2567 = vadd.f32 %v2507, %v2566
    %v2568 = vpop.f32.mrf.mxu0
    %v2569 = vadd.f32 %v2507, %v2568
    %2570 = vmatmul.bf16.gmra.mxu0 %v2494
    %v2571 = vpop.f32.mrf.mxu0
    %v2572 = vadd.f32 %v2507, %v2571
    %v2573 = vpop.f32.mrf.mxu0
    %v2574 = vadd.f32 %v2507, %v2573
    %2575 = vmatmul.bf16.gmra.mxu0 %v2495
    %v2576 = vpop.f32.mrf.mxu0
    %v2577 = vadd.f32 %v2507, %v2576
    %v2578 = vpop.f32.mrf.mxu0
    %v2579 = vadd.f32 %v2507, %v2578
    %2580 = vmatmul.bf16.gmra.mxu0 %v2496
    %v2581 = vpop.f32.mrf.mxu0
    %v2582 = vadd.f32 %v2507, %v2581
    %v2583 = vpop.f32.mrf.mxu0
    %v2584 = vadd.f32 %v2507, %v2583
    %2585 = vmatmul.bf16.gmra.mxu0 %v2497
    %v2586 = vpop.f32.mrf.mxu0
    %v2587 = vadd.f32 %v2507, %v2586
    %v2588 = vpop.f32.mrf.mxu0
    %v2589 = vadd.f32 %v2507, %v2588
    %2590 = vmatmul.bf16.gmra.mxu0 %v2498
    %v2591 = vpop.f32.mrf.mxu0
    %v2592 = vadd.f32 %v2507, %v2591
    %v2593 = vpop.f32.mrf.mxu0
    %v2594 = vadd.f32 %v2507, %v2593
    %2595 = vmatmul.bf16.gmra.mxu0 %v2499
    %v2596 = vpop.f32.mrf.mxu0
    %v2597 = vadd.f32 %v2507, %v2596
    %v2598 = vpop.f32.mrf.mxu0
    %v2599 = vadd.f32 %v2507, %v2598
    %2600 = vmatmul.bf16.gmra.mxu0 %v2500
    %v2601 = vpop.f32.mrf.mxu0
    %v2602 = vadd.f32 %v2507, %v2601
    %v2603 = vpop.f32.mrf.mxu0
    %v2604 = vadd.f32 %v2507, %v2603
    %2605 = vmatmul.bf16.gmra.mxu0 %v2501
    %v2606 = vpop.f32.mrf.mxu0
    %v2607 = vadd.f32 %v2507, %v2606
    %v2608 = vpop.f32.mrf.mxu0
    %v2609 = vadd.f32 %v2507, %v2608
    %2610 = vmatmul.bf16.gmra.mxu0 %v2502
    %v2611 = vpop.f32.mrf.mxu0
    %v2612 = vadd.f32 %v2507, %v2611
    %v2613 = vpop.f32.mrf.mxu0
    %v2614 = vadd.f32 %v2507, %v2613
    %2615 = vmatmul.bf16.gmra.mxu0 %v2503
    %v2616 = vpop.f32.mrf.mxu0
    %v2617 = vadd.f32 %v2507, %v2616
    %v2618 = vpop.f32.mrf.mxu0
    %v2619 = vadd.f32 %v2507, %v2618
    %2620 = vmatmul.bf16.gmra.mxu0 %v2504
    %v2621 = vpop.f32.mrf.mxu0
    %v2622 = vadd.f32 %v2507, %v2621
    %v2623 = vpop.f32.mrf.mxu0
    %v2624 = vadd.f32 %v2507, %v2623
    %2625 = vmatmul.bf16.gmra.mxu0 %v2505
    %v2626 = vpop.f32.mrf.mxu0
    %v2627 = vadd.f32 %v2507, %v2626
    %v2628 = vpop.f32.mrf.mxu0
    %2629 = vdwg.mxu0
    %v2630 = vmax.f32 %v2567, 0.0
    %v2631 = vmax.f32 %v2569, 0.0
    %v2632 = vmax.f32 %v2572, 0.0
    %v2633 = vmax.f32 %v2574, 0.0
    %v2634 = vmax.f32 %v2577, 0.0
    %v2635 = vmax.f32 %v2579, 0.0
    %v2636 = vmax.f32 %v2582, 0.0
    %v2637 = vmax.f32 %v2584, 0.0
    %v2638 = vmax.f32 %v2587, 0.0
    %v2639 = vmax.f32 %v2589, 0.0
    %v2640 = vmax.f32 %v2592, 0.0
    %v2641 = vmax.f32 %v2594, 0.0
    %v2642 = vmax.f32 %v2597, 0.0
    %v2643 = vmax.f32 %v2599, 0.0
    %v2644 = vmax.f32 %v2602, 0.0
    %v2645 = vmax.f32 %v2604, 0.0
    %v2646 = vmax.f32 %v2607, 0.0
    %v2647 = vmax.f32 %v2609, 0.0
    %v2648 = vmax.f32 %v2612, 0.0
    %v2649 = vmax.f32 %v2614, 0.0
    %v2650 = vmax.f32 %v2617, 0.0
    %v2651 = vmax.f32 %v2619, 0.0
    %v2652 = vmax.f32 %v2622, 0.0
    %v2653 = vmax.f32 %v2624, 0.0
    %v2654 = vmax.f32 %v2627, 0.0
    %s2655 = scalar_lea.vmem [#allocation5], 832
    %v2656 = vld [vmem:[%s2655] sm:$0xf]
    %v2657 = vld [vmem:[%s2655 + $0x4] sm:$0xf]
    %v2658 = vld [vmem:[%s2655 + $0x8] sm:$0xf]
    %v2659 = vld [vmem:[%s2655 + $0xc] sm:$0xf]
    %v2660 = vld [vmem:[%s2655 + $0x10] sm:$0xf]
    %v2661 = vld [vmem:[%s2655 + $0x14] sm:$0xf]
    %v2662 = vld [vmem:[%s2655 + $0x18] sm:$0xf]
    %v2663 = vld [vmem:[%s2655 + $0x1c] sm:$0xf]
    %v2664 = vld [vmem:[%s2655 + $0x20] sm:$0xf]
    %v2665 = vld [vmem:[%s2655 + $0x24] sm:$0xf]
    %v2666 = vld [vmem:[%s2655 + $0x28] sm:$0xf]
    %v2667 = vld [vmem:[%s2655 + $0x2c] sm:$0xf]
    %v2668 = vld [vmem:[%s2655 + $0x30] sm:$0xf]
    %v2669 = vld [vmem:[%s2655 + $0x34] sm:$0xf]
    %v2670 = vld [vmem:[%s2655 + $0x38] sm:$0xf]
    %v2671 = vld [vmem:[%s2655 + $0x3c] sm:$0xf]
    %s2672 = scalar_lea.vmem [#allocation7], 13
    %v2673 = vld [vmem:[%s2672] sm:$0x1]
    %v2674 = vpack.c.bf16 %v2631, %v2630
    %v2675 = vpack.c.bf16 %v2633, %v2632
    %v2676 = vpack.c.bf16 %v2635, %v2634
    %v2677 = vpack.c.bf16 %v2637, %v2636
    %v2678 = vpack.c.bf16 %v2639, %v2638
    %v2679 = vpack.c.bf16 %v2641, %v2640
    %v2680 = vpack.c.bf16 %v2643, %v2642
    %v2681 = vpack.c.bf16 %v2645, %v2644
    %v2682 = vpack.c.bf16 %v2647, %v2646
    %v2683 = vpack.c.bf16 %v2649, %v2648
    %v2684 = vpack.c.bf16 %v2651, %v2650
    %v2685 = vpack.c.bf16 %v2653, %v2652
    %v2686 = vpack.c.bf16 %v2654, %v2654
    %v2688 = vperm.slane %v2673, 0
    %v2706 = vunpack.c.l.b16 %v2656
    %v2707 = vunpack.c.l.b16 %v2657
    %v2708 = vunpack.c.l.b16 %v2658
    %v2709 = vunpack.c.l.b16 %v2659
    %v2710 = vunpack.c.l.b16 %v2660
    %v2711 = vunpack.c.l.b16 %v2661
    %v2712 = vunpack.c.l.b16 %v2662
    %v2713 = vunpack.c.l.b16 %v2663
    %v2714 = vunpack.c.l.b16 %v2664
    %v2715 = vunpack.c.l.b16 %v2665
    %v2716 = vunpack.c.l.b16 %v2666
    %v2717 = vunpack.c.l.b16 %v2667
    %v2718 = vunpack.c.l.b16 %v2668
    %v2719 = vunpack.c.l.b16 %v2669
    %v2720 = vunpack.c.l.b16 %v2670
    %v2721 = vunpack.c.l.b16 %v2671
    %v2722 = vpack.c.b16 %v2707, %v2706
    %v2723 = vpack.c.b16 %v2709, %v2708
    %v2724 = vpack.c.b16 %v2711, %v2710
    %v2725 = vpack.c.b16 %v2713, %v2712
    %v2726 = vpack.c.b16 %v2715, %v2714
    %v2727 = vpack.c.b16 %v2717, %v2716
    %v2728 = vpack.c.b16 %v2719, %v2718
    %v2729 = vpack.c.b16 %v2721, %v2720
    %2738 = vmatpush.bf16.msra.mxu0 %v2729
    %2739 = vmatpush.bf16.msra.mxu0 %v2728
    %2740 = vmatpush.bf16.msra.mxu0 %v2727
    %2741 = vmatpush.bf16.msra.mxu0 %v2726
    %2742 = vmatpush.bf16.msra.mxu0 %v2725
    %2743 = vmatpush.bf16.msra.mxu0 %v2724
    %2744 = vmatpush.bf16.msra.mxu0 %v2723
    %2745 = vmatpush.bf16.msra.mxu0 %v2722
    %2746 = vmatmul.bf16.gmra.mxu0 %v2674
    %v2747 = vpop.f32.mrf.mxu0
    %v2748 = vadd.f32 %v2688, %v2747
    %v2749 = vpop.f32.mrf.mxu0
    %v2750 = vadd.f32 %v2688, %v2749
    %2751 = vmatmul.bf16.gmra.mxu0 %v2675
    %v2752 = vpop.f32.mrf.mxu0
    %v2753 = vadd.f32 %v2688, %v2752
    %v2754 = vpop.f32.mrf.mxu0
    %v2755 = vadd.f32 %v2688, %v2754
    %2756 = vmatmul.bf16.gmra.mxu0 %v2676
    %v2757 = vpop.f32.mrf.mxu0
    %v2758 = vadd.f32 %v2688, %v2757
    %v2759 = vpop.f32.mrf.mxu0
    %v2760 = vadd.f32 %v2688, %v2759
    %2761 = vmatmul.bf16.gmra.mxu0 %v2677
    %v2762 = vpop.f32.mrf.mxu0
    %v2763 = vadd.f32 %v2688, %v2762
    %v2764 = vpop.f32.mrf.mxu0
    %v2765 = vadd.f32 %v2688, %v2764
    %2766 = vmatmul.bf16.gmra.mxu0 %v2678
    %v2767 = vpop.f32.mrf.mxu0
    %v2768 = vadd.f32 %v2688, %v2767
    %v2769 = vpop.f32.mrf.mxu0
    %v2770 = vadd.f32 %v2688, %v2769
    %2771 = vmatmul.bf16.gmra.mxu0 %v2679
    %v2772 = vpop.f32.mrf.mxu0
    %v2773 = vadd.f32 %v2688, %v2772
    %v2774 = vpop.f32.mrf.mxu0
    %v2775 = vadd.f32 %v2688, %v2774
    %2776 = vmatmul.bf16.gmra.mxu0 %v2680
    %v2777 = vpop.f32.mrf.mxu0
    %v2778 = vadd.f32 %v2688, %v2777
    %v2779 = vpop.f32.mrf.mxu0
    %v2780 = vadd.f32 %v2688, %v2779
    %2781 = vmatmul.bf16.gmra.mxu0 %v2681
    %v2782 = vpop.f32.mrf.mxu0
    %v2783 = vadd.f32 %v2688, %v2782
    %v2784 = vpop.f32.mrf.mxu0
    %v2785 = vadd.f32 %v2688, %v2784
    %2786 = vmatmul.bf16.gmra.mxu0 %v2682
    %v2787 = vpop.f32.mrf.mxu0
    %v2788 = vadd.f32 %v2688, %v2787
    %v2789 = vpop.f32.mrf.mxu0
    %v2790 = vadd.f32 %v2688, %v2789
    %2791 = vmatmul.bf16.gmra.mxu0 %v2683
    %v2792 = vpop.f32.mrf.mxu0
    %v2793 = vadd.f32 %v2688, %v2792
    %v2794 = vpop.f32.mrf.mxu0
    %v2795 = vadd.f32 %v2688, %v2794
    %2796 = vmatmul.bf16.gmra.mxu0 %v2684
    %v2797 = vpop.f32.mrf.mxu0
    %v2798 = vadd.f32 %v2688, %v2797
    %v2799 = vpop.f32.mrf.mxu0
    %v2800 = vadd.f32 %v2688, %v2799
    %2801 = vmatmul.bf16.gmra.mxu0 %v2685
    %v2802 = vpop.f32.mrf.mxu0
    %v2803 = vadd.f32 %v2688, %v2802
    %v2804 = vpop.f32.mrf.mxu0
    %v2805 = vadd.f32 %v2688, %v2804
    %2806 = vmatmul.bf16.gmra.mxu0 %v2686
    %v2807 = vpop.f32.mrf.mxu0
    %v2808 = vadd.f32 %v2688, %v2807
    %v2809 = vpop.f32.mrf.mxu0
    %2810 = vdwg.mxu0
    %v2811 = vmax.f32 %v2748, 0.0
    %v2812 = vmax.f32 %v2750, 0.0
    %v2813 = vmax.f32 %v2753, 0.0
    %v2814 = vmax.f32 %v2755, 0.0
    %v2815 = vmax.f32 %v2758, 0.0
    %v2816 = vmax.f32 %v2760, 0.0
    %v2817 = vmax.f32 %v2763, 0.0
    %v2818 = vmax.f32 %v2765, 0.0
    %v2819 = vmax.f32 %v2768, 0.0
    %v2820 = vmax.f32 %v2770, 0.0
    %v2821 = vmax.f32 %v2773, 0.0
    %v2822 = vmax.f32 %v2775, 0.0
    %v2823 = vmax.f32 %v2778, 0.0
    %v2824 = vmax.f32 %v2780, 0.0
    %v2825 = vmax.f32 %v2783, 0.0
    %v2826 = vmax.f32 %v2785, 0.0
    %v2827 = vmax.f32 %v2788, 0.0
    %v2828 = vmax.f32 %v2790, 0.0
    %v2829 = vmax.f32 %v2793, 0.0
    %v2830 = vmax.f32 %v2795, 0.0
    %v2831 = vmax.f32 %v2798, 0.0
    %v2832 = vmax.f32 %v2800, 0.0
    %v2833 = vmax.f32 %v2803, 0.0
    %v2834 = vmax.f32 %v2805, 0.0
    %v2835 = vmax.f32 %v2808, 0.0
    %v2836 = vld [vmem:[#allocation11] sm:$0xff]
    %v2837 = vld [vmem:[#allocation11 + $0x8] sm:$0xff]
    %v2838 = vld [vmem:[#allocation11 + $0x10] sm:$0xff]
    %v2839 = vld [vmem:[#allocation11 + $0x18] sm:$0xff]
    %v2840 = vld [vmem:[#allocation11 + $0x20] sm:$0xff]
    %v2841 = vld [vmem:[#allocation11 + $0x28] sm:$0xff]
    %v2842 = vld [vmem:[#allocation11 + $0x30] sm:$0xff]
    %v2843 = vld [vmem:[#allocation11 + $0x38] sm:$0xff]
    %v2844 = vld [vmem:[#allocation11 + $0x40] sm:$0xff]
    %v2845 = vld [vmem:[#allocation11 + $0x48] sm:$0xff]
    %v2846 = vld [vmem:[#allocation11 + $0x50] sm:$0xff]
    %v2847 = vld [vmem:[#allocation11 + $0x58] sm:$0xff]
    %v2848 = vld [vmem:[#allocation11 + $0x60] sm:$0xff]
    %v2849 = vld [vmem:[#allocation11 + $0x68] sm:$0xff]
    %v2850 = vld [vmem:[#allocation11 + $0x70] sm:$0xff]
    %v2851 = vld [vmem:[#allocation11 + $0x78] sm:$0xff]
    %v2852 = vld [vmem:[#allocation11 + $0x80] sm:$0xff]
    %v2853 = vld [vmem:[#allocation11 + $0x88] sm:$0xff]
    %v2854 = vld [vmem:[#allocation11 + $0x90] sm:$0xff]
    %v2855 = vld [vmem:[#allocation11 + $0x98] sm:$0xff]
    %v2856 = vld [vmem:[#allocation11 + $0xa0] sm:$0xff]
    %v2857 = vld [vmem:[#allocation11 + $0xa8] sm:$0xff]
    %v2858 = vld [vmem:[#allocation11 + $0xb0] sm:$0xff]
    %v2859 = vld [vmem:[#allocation11 + $0xb8] sm:$0xff]
    %v2860 = vld [vmem:[#allocation11 + $0xc0] sm:$0xff]
    %v2861 = vadd.f32 %v2836, %v2811
    %v2862 = vadd.f32 %v2837, %v2812
    %v2863 = vadd.f32 %v2838, %v2813
    %v2864 = vadd.f32 %v2839, %v2814
    %v2865 = vadd.f32 %v2840, %v2815
    %v2866 = vadd.f32 %v2841, %v2816
    %v2867 = vadd.f32 %v2842, %v2817
    %v2868 = vadd.f32 %v2843, %v2818
    %v2869 = vadd.f32 %v2844, %v2819
    %v2870 = vadd.f32 %v2845, %v2820
    %v2871 = vadd.f32 %v2846, %v2821
    %v2872 = vadd.f32 %v2847, %v2822
    %v2873 = vadd.f32 %v2848, %v2823
    %v2874 = vadd.f32 %v2849, %v2824
    %v2875 = vadd.f32 %v2850, %v2825
    %v2876 = vadd.f32 %v2851, %v2826
    %v2877 = vadd.f32 %v2852, %v2827
    %v2878 = vadd.f32 %v2853, %v2828
    %v2879 = vadd.f32 %v2854, %v2829
    %v2880 = vadd.f32 %v2855, %v2830
    %v2881 = vadd.f32 %v2856, %v2831
    %v2882 = vadd.f32 %v2857, %v2832
    %v2883 = vadd.f32 %v2858, %v2833
    %v2884 = vadd.f32 %v2859, %v2834
    %v2885 = vadd.f32 %v2860, %v2835
    %2886 = vst [vmem:[#allocation11] sm:$0xff] %v2861
    %2887 = vst [vmem:[#allocation11 + $0x8] sm:$0xff] %v2862
    %2888 = vst [vmem:[#allocation11 + $0x10] sm:$0xff] %v2863
    %2889 = vst [vmem:[#allocation11 + $0x18] sm:$0xff] %v2864
    %2890 = vst [vmem:[#allocation11 + $0x20] sm:$0xff] %v2865
    %2891 = vst [vmem:[#allocation11 + $0x28] sm:$0xff] %v2866
    %2892 = vst [vmem:[#allocation11 + $0x30] sm:$0xff] %v2867
    %2893 = vst [vmem:[#allocation11 + $0x38] sm:$0xff] %v2868
    %2894 = vst [vmem:[#allocation11 + $0x40] sm:$0xff] %v2869
    %2895 = vst [vmem:[#allocation11 + $0x48] sm:$0xff] %v2870
    %2896 = vst [vmem:[#allocation11 + $0x50] sm:$0xff] %v2871
    %2897 = vst [vmem:[#allocation11 + $0x58] sm:$0xff] %v2872
    %2898 = vst [vmem:[#allocation11 + $0x60] sm:$0xff] %v2873
    %2899 = vst [vmem:[#allocation11 + $0x68] sm:$0xff] %v2874
    %2900 = vst [vmem:[#allocation11 + $0x70] sm:$0xff] %v2875
    %2901 = vst [vmem:[#allocation11 + $0x78] sm:$0xff] %v2876
    %2902 = vst [vmem:[#allocation11 + $0x80] sm:$0xff] %v2877
    %2903 = vst [vmem:[#allocation11 + $0x88] sm:$0xff] %v2878
    %2904 = vst [vmem:[#allocation11 + $0x90] sm:$0xff] %v2879
    %2905 = vst [vmem:[#allocation11 + $0x98] sm:$0xff] %v2880
    %2906 = vst [vmem:[#allocation11 + $0xa0] sm:$0xff] %v2881
    %2907 = vst [vmem:[#allocation11 + $0xa8] sm:$0xff] %v2882
    %2908 = vst [vmem:[#allocation11 + $0xb0] sm:$0xff] %v2883
    %2909 = vst [vmem:[#allocation11 + $0xb8] sm:$0xff] %v2884
    %2910 = vst [vmem:[#allocation11 + $0xc0] sm:$0xff] %v2885
    // Predicated region
    $region42: #{tpu_custom_call.1} parent=1 // pred_check
      _
    $region43: #{tpu_custom_call.1} parent=1 // pred_check_branch
      %2912 = sbr.rel (0) target = $region45
    $region44: #{tpu_custom_call.1} parent=1 // pred_region
      %2914 = vsyncadd [#allocation4], 0
      %s2915 = sshll.u32 [#allocation11], 4
      %s2916 = int_to_ptr.vmem [resolvable:$true] %s2915
      %s2917 = sshll.u32 %s5, 4
      %s2918 = int_to_ptr.hbm [resolvable:$true] %s2917
      %2923 = dma.vmem_to_hbm [thread:$0]  %s2916, 3200, %s2918, [#allocation4], 128, 128, 8
    $region45: #{tpu_custom_call.1} parent=1 // pred_fallthru
      _
    // Predicated region
    $region46: #{tpu_custom_call.1} parent=1 // pred_check
      _
    $region47: #{tpu_custom_call.1} parent=1 // pred_check_branch
      %2925 = sbr.rel (0) target = $region49
    $region48: #{tpu_custom_call.1} parent=1 // pred_region
      %2927 = dma.done [#allocation4], 3200
    $region49: #{tpu_custom_call.1} parent=1 // pred_fallthru
      _
    %2928 = vsyncpa [#allocation3], 1
    %2929 = vsyncpa [#allocation6], 1
    %2930 = vsyncpa [#allocation9], 1
    %2931 = vsyncpa [#allocation4], 1

</llo_original>
